<compile_context>
chip_gen: v6e
topology: v6e:2x2x1
jax: 0.10.0
libtpu: 0.0.40
codegen_flags: <defaults>
</compile_context>

<pallas_src>
import functools

import jax
import jax.numpy as jnp
import numpy as np
from jax import lax
from jax.experimental import pallas as pl
from jax.experimental.pallas import tpu as pltpu

C = 64          # fixed by the module (in/out channels of both convs)
KH = KW = 3     # 3x3 convs, padding=1, stride=1
BN_EPS = 1e-5


def _residual_block_kernel(x_ref, w1_ref, w2_ref, b1_ref, b2_ref, out_ref,
                           *, H, W, Wp):
    """One batch element per grid step.

    x_ref  : (1, H, W, C)  f32  input image (NHWC), also the residual branch
    w1_ref : (9*C, C)      bf16 conv1 weights, BN1 scale folded, tap-major K
    w2_ref : (9*C, C)      bf16 conv2 weights, BN2 scale folded
    b1_ref : (1, C)        f32  folded BN1 bias
    b2_ref : (1, C)        f32  folded BN2 bias
    out_ref: (1, H, W, C)  f32
    """
    Hp = H + 2
    L = Hp * Wp
    # flat-index shift of tap (dy, dx): image row y lives at padded row y+1,
    # column x at padded column x (zero cols at [W, Wp), zero rows 0 and H+1).
    shifts = tuple((dy - 1) * Wp + (dx - 1)
                   for dy in range(KH) for dx in range(KW))

    x = x_ref[0]                                        # (H, W, C) f32

    def pad_plane(img):
        """Embed (H, W, C) at rows [1, H], cols [0, W) of a zeroed (Hp, Wp, C)
        plane and flatten to (L, C).  All pieces are (8,128)-tile aligned."""
        zrow = jnp.zeros((1, Wp, C), img.dtype)
        zcol = jnp.zeros((H, Wp - W, C), img.dtype)
        body = jnp.concatenate([img, zcol], axis=1)     # (H, Wp, C)
        return jnp.concatenate([zrow, body, zrow], axis=0).reshape(L, C)

    def conv3x3(flat_f32, w_ref):
        """3x3 conv over the flattened padded plane as one concatenated-K
        matmul: rolls (XLU) build the 9 taps, a single MXU dot accumulates
        over K = 9*C in f32.  Wrap-around rows land in the zero ring or are
        discarded, so no masking of the matmul itself is needed."""
        cols = []
        for s in shifts:
            shifted = flat_f32 if s == 0 else pltpu.roll(
                flat_f32, shift=(-s) % L, axis=0)
            cols.append(shifted.astype(jnp.bfloat16))
        im2col = jnp.concatenate(cols, axis=-1)         # (L, 9*C) bf16
        return jnp.dot(im2col, w_ref[...],
                       preferred_element_type=jnp.float32)  # (L, C) f32

    xflat = pad_plane(x)                                # (L, C), true zero ring

    # ---- conv1 (BN1 scale folded into w1) + bias + LeakyReLU(0.2) ----
    y1 = conv3x3(xflat, w1_ref) + b1_ref[...]
    y1 = jnp.where(y1 >= 0.0, y1, 0.2 * y1)
    # Drop the garbage ring and re-embed in a true zero ring so conv2 sees
    # correct zero padding (interior fully rewritten; ring always zero).
    y1 = pad_plane(y1.reshape(Hp, Wp, C)[1:H + 1, 0:W, :])

    # ---- conv2 (BN2 scale folded into w2) + bias ----
    y2 = conv3x3(y1, w2_ref) + b2_ref[...]
    # Keep the valid interior: leading-dim offset + tile-aligned column slice.
    y2 = y2.reshape(Hp, Wp, C)[1:H + 1, 0:W, :]

    # ---- residual add ----
    out_ref[0] = (y2 + x).astype(out_ref.dtype)


def _fold_bn_into_conv(w_oihw, gamma, beta, rmean, rvar):
    """Fold inference BN into the conv: returns ((9*Cin, Cout) bf16, (1,Cout) f32)."""
    scale = gamma / jnp.sqrt(rvar + BN_EPS)                         # (Cout,)
    bias = (beta - rmean * scale).reshape(1, -1).astype(jnp.float32)
    w = w_oihw.astype(jnp.float32) * scale[:, None, None, None]     # (Cout,Cin,3,3)
    w = jnp.transpose(w, (2, 3, 1, 0)).reshape(KH * KW * C, C)      # tap-major K
    return w.astype(jnp.bfloat16), bias


def residual_block_pallas_nhwc(x_nhwc, w1_oihw, w2_oihw,
                               g1, beta1, rm1, rv1, g2, beta2, rm2, rv2):
    """x_nhwc: (N, H, W, 64) float32 -> (N, H, W, 64) float32."""
    N, H, W, Cin = x_nhwc.shape
    assert Cin == C
    Wp = ((W + 2 + 7) // 8) * 8        # padded width, multiple of 8 (>= W + 2)

    w1, b1 = _fold_bn_into_conv(w1_oihw, g1, beta1, rm1, rv1)
    w2, b2 = _fold_bn_into_conv(w2_oihw, g2, beta2, rm2, rv2)

    kernel = functools.partial(_residual_block_kernel, H=H, W=W, Wp=Wp)

    return pl.pallas_call(
        kernel,
        out_shape=jax.ShapeDtypeStruct((N, H, W, C), jnp.float32),
        grid_spec=pltpu.PrefetchScalarGridSpec(
            num_scalar_prefetch=0,
            grid=(N,),
            in_specs=[
                pl.BlockSpec((1, H, W, C), lambda n: (n, 0, 0, 0)),
                pl.BlockSpec((KH * KW * C, C), lambda n: (0, 0)),
                pl.BlockSpec((KH * KW * C, C), lambda n: (0, 0)),
                pl.BlockSpec((1, C), lambda n: (0, 0)),
                pl.BlockSpec((1, C), lambda n: (0, 0)),
            ],
            out_specs=pl.BlockSpec((1, H, W, C), lambda n: (n, 0, 0, 0)),
        ),
        compiler_params=pltpu.CompilerParams(
            dimension_semantics=("parallel",)),
    )(x_nhwc.astype(jnp.float32), w1, w2, b1, b2)


def residual_block_pallas(x_nchw, *params):
    """NCHW boundary wrapper matching the PyTorch convention.

    When chaining many blocks, keep activations NHWC between blocks and call
    `residual_block_pallas_nhwc` directly to hoist these transposes.
    """
    x = jnp.transpose(x_nchw, (0, 2, 3, 1))
    out = residual_block_pallas_nhwc(x, *params)
    return jnp.transpose(out, (0, 3, 1, 2))


def residual_block_reference(x_nchw, w1_oihw, w2_oihw,
                             g1, beta1, rm1, rv1, g2, beta2, rm2, rv2):
    """Pure-JAX f32 reference (NCHW, mirrors the PyTorch forward)."""
    def conv(x, w):
        return lax.conv_general_dilated(
            x, w, window_strides=(1, 1), padding=((1, 1), (1, 1)),
            dimension_numbers=("NCHW", "OIHW", "NCHW"))

    def bn(x, g, b, rm, rv):
        inv = g / jnp.sqrt(rv + BN_EPS)
        return x * inv[None, :, None, None] + (b - rm * inv)[None, :, None, None]

    y = bn(conv(x_nchw, w1_oihw), g1, beta1, rm1, rv1)
    y = jnp.where(y >= 0, y, 0.2 * y)
    y = bn(conv(y, w2_oihw), g2, beta2, rm2, rv2)
    return y + x_nchw


if __name__ == "__main__":
    key = jax.random.PRNGKey(0)
    ks = jax.random.split(key, 9)

    N, H, W = 2, 16, 16
    x = jax.random.normal(ks[0], (N, C, H, W), jnp.float32)

    # Conv weights (OIHW), small scale.
    w1 = jax.random.normal(ks[1], (C, C, KH, KW), jnp.float32) * 0.05
    w2 = jax.random.normal(ks[2], (C, C, KH, KW), jnp.float32) * 0.05

    # BN params / running stats (deterministic, non-trivial).
    g1 = 1.0 + 0.1 * jax.random.normal(ks[3], (C,), jnp.float32)
    beta1 = 0.1 * jax.random.normal(ks[4], (C,), jnp.float32)
    rm1 = 0.1 * jax.random.normal(ks[5], (C,), jnp.float32)
    rv1 = jnp.abs(1.0 + 0.1 * jax.random.normal(ks[6], (C,), jnp.float32))
    g2 = 1.0 + 0.1 * jax.random.normal(ks[7], (C,), jnp.float32)
    beta2 = 0.1 * jax.random.normal(ks[8], (C,), jnp.float32)
    rm2 = jnp.zeros((C,), jnp.float32)
    rv2 = jnp.ones((C,), jnp.float32)

    args = (x, w1, w2, g1, beta1, rm1, rv1, g2, beta2, rm2, rv2)

    out = jax.block_until_ready(residual_block_pallas(*args))
    ref = jax.block_until_ready(residual_block_reference(*args))

    assert out.shape == (N, C, H, W)
    # bf16 MXU operands vs f32 reference -> loosen tolerance (~1e-2 level).
    np.testing.assert_allclose(np.asarray(out), np.asarray(ref),
                               rtol=5e-2, atol=5e-2)
    print("KERNEL_OK")
</pallas_src>

<mosaic_0001>
module attributes {stable_mosaic.version = 11 : i64} {
  func.func @_residual_block_kernel(%arg0: i32, %arg1: memref<1x16x16x64xf32, #tpu.memory_space<vmem>>, %arg2: memref<576x64xbf16, #tpu.memory_space<vmem>>, %arg3: memref<576x64xbf16, #tpu.memory_space<vmem>>, %arg4: memref<1x64xf32, #tpu.memory_space<vmem>>, %arg5: memref<1x64xf32, #tpu.memory_space<vmem>>, %arg6: memref<1x16x16x64xf32, #tpu.memory_space<vmem>>) attributes {dimension_semantics = [#tpu.dimension_semantics<parallel>], iteration_bounds = array<i64: 2>, scalar_prefetch = 0 : i64, scratch_operands = 0 : i64, tpu.core_type = #tpu.core_type<tc>, window_params = [{transform_indices = @transform_0, window_bounds = array<i64: 1, 16, 16, 64>}, {pipeline_mode = #tpu.pipeline_mode<synchronous>, transform_indices = @transform_1, window_bounds = array<i64: 576, 64>}, {pipeline_mode = #tpu.pipeline_mode<synchronous>, transform_indices = @transform_2, window_bounds = array<i64: 576, 64>}, {pipeline_mode = #tpu.pipeline_mode<synchronous>, transform_indices = @transform_3, window_bounds = array<i64: 1, 64>}, {pipeline_mode = #tpu.pipeline_mode<synchronous>, transform_indices = @transform_4, window_bounds = array<i64: 1, 64>}, {transform_indices = @transform_5, window_bounds = array<i64: 1, 16, 16, 64>}]} {
    %c0 = arith.constant 0 : index
    %c0_0 = arith.constant 0 : index
    %c0_1 = arith.constant 0 : index
    %c0_2 = arith.constant 0 : index
    %0 = vector.load %arg1[%c0, %c0_0, %c0_1, %c0_2] : memref<1x16x16x64xf32, #tpu.memory_space<vmem>>, vector<1x16x16x64xf32>
    %1 = vector.shape_cast %0 : vector<1x16x16x64xf32> to vector<16x16x64xf32>
    %cst = arith.constant 0.000000e+00 : f32
    %2 = vector.broadcast %cst : f32 to vector<1x24x64xf32>
    %cst_3 = arith.constant 0.000000e+00 : f32
    %3 = vector.broadcast %cst_3 : f32 to vector<16x8x64xf32>
    %4 = tpu.concatenate %1, %3 in 1 : vector<16x16x64xf32>, vector<16x8x64xf32> -> vector<16x24x64xf32>
    %5 = tpu.concatenate %2, %4, %2 in 0 : vector<1x24x64xf32>, vector<16x24x64xf32>, vector<1x24x64xf32> -> vector<18x24x64xf32>
    %6 = vector.shape_cast %5 : vector<18x24x64xf32> to vector<432x64xf32>
    %c25_i32 = arith.constant 25 : i32
    %7 = tpu.dynamic_rotate %6 by %c25_i32 dim 0 : vector<432x64xf32>, i32 -> vector<432x64xf32>
    %8 = arith.truncf %7 : vector<432x64xf32> to vector<432x64xbf16>
    %c24_i32 = arith.constant 24 : i32
    %9 = tpu.dynamic_rotate %6 by %c24_i32 dim 0 : vector<432x64xf32>, i32 -> vector<432x64xf32>
    %10 = arith.truncf %9 : vector<432x64xf32> to vector<432x64xbf16>
    %c23_i32 = arith.constant 23 : i32
    %11 = tpu.dynamic_rotate %6 by %c23_i32 dim 0 : vector<432x64xf32>, i32 -> vector<432x64xf32>
    %12 = arith.truncf %11 : vector<432x64xf32> to vector<432x64xbf16>
    %c1_i32 = arith.constant 1 : i32
    %13 = tpu.dynamic_rotate %6 by %c1_i32 dim 0 : vector<432x64xf32>, i32 -> vector<432x64xf32>
    %14 = arith.truncf %13 : vector<432x64xf32> to vector<432x64xbf16>
    %15 = arith.truncf %6 : vector<432x64xf32> to vector<432x64xbf16>
    %c431_i32 = arith.constant 431 : i32
    %16 = tpu.dynamic_rotate %6 by %c431_i32 dim 0 : vector<432x64xf32>, i32 -> vector<432x64xf32>
    %17 = arith.truncf %16 : vector<432x64xf32> to vector<432x64xbf16>
    %c409_i32 = arith.constant 409 : i32
    %18 = tpu.dynamic_rotate %6 by %c409_i32 dim 0 : vector<432x64xf32>, i32 -> vector<432x64xf32>
    %19 = arith.truncf %18 : vector<432x64xf32> to vector<432x64xbf16>
    %c408_i32 = arith.constant 408 : i32
    %20 = tpu.dynamic_rotate %6 by %c408_i32 dim 0 : vector<432x64xf32>, i32 -> vector<432x64xf32>
    %21 = arith.truncf %20 : vector<432x64xf32> to vector<432x64xbf16>
    %c407_i32 = arith.constant 407 : i32
    %22 = tpu.dynamic_rotate %6 by %c407_i32 dim 0 : vector<432x64xf32>, i32 -> vector<432x64xf32>
    %23 = arith.truncf %22 : vector<432x64xf32> to vector<432x64xbf16>
    %24 = tpu.concatenate %8, %10, %12, %14, %15, %17, %19, %21, %23 in 1 : vector<432x64xbf16>, vector<432x64xbf16>, vector<432x64xbf16>, vector<432x64xbf16>, vector<432x64xbf16>, vector<432x64xbf16>, vector<432x64xbf16>, vector<432x64xbf16>, vector<432x64xbf16> -> vector<432x576xbf16>
    %c0_4 = arith.constant 0 : index
    %c0_5 = arith.constant 0 : index
    %25 = vector.load %arg2[%c0_4, %c0_5] : memref<576x64xbf16, #tpu.memory_space<vmem>>, vector<576x64xbf16>
    %cst_6 = arith.constant dense<0.000000e+00> : vector<432x64xf32>
    %26 = tpu.matmul %24, %25, %cst_6 {dimension_numbers = #tpu.dot_dimension_numbers<[1], [0], [0], [1], [0, 0, 1, 1], [], []>} : vector<432x576xbf16>, vector<576x64xbf16>, vector<432x64xf32> -> vector<432x64xf32>
    %c0_7 = arith.constant 0 : index
    %c0_8 = arith.constant 0 : index
    %27 = vector.load %arg4[%c0_7, %c0_8] : memref<1x64xf32, #tpu.memory_space<vmem>>, vector<1x64xf32>
    %28 = vector.broadcast %27 : vector<1x64xf32> to vector<432x64xf32>
    %29 = arith.addf %26, %28 : vector<432x64xf32>
    %cst_9 = arith.constant 0.000000e+00 : f32
    %30 = vector.broadcast %cst_9 : f32 to vector<432x64xf32>
    %31 = arith.cmpf oge, %29, %30 : vector<432x64xf32>
    %cst_10 = arith.constant 2.000000e-01 : f32
    %32 = vector.broadcast %cst_10 : f32 to vector<432x64xf32>
    %33 = arith.mulf %32, %29 : vector<432x64xf32>
    %34 = arith.select %31, %29, %33 : vector<432x64xi1>, vector<432x64xf32>
    %35 = vector.shape_cast %34 : vector<432x64xf32> to vector<18x24x64xf32>
    %36 = vector.extract_strided_slice %35 {offsets = [1, 0, 0], sizes = [16, 16, 64], strides = [1, 1, 1]} : vector<18x24x64xf32> to vector<16x16x64xf32>
    %cst_11 = arith.constant 0.000000e+00 : f32
    %37 = vector.broadcast %cst_11 : f32 to vector<1x24x64xf32>
    %cst_12 = arith.constant 0.000000e+00 : f32
    %38 = vector.broadcast %cst_12 : f32 to vector<16x8x64xf32>
    %39 = tpu.concatenate %36, %38 in 1 : vector<16x16x64xf32>, vector<16x8x64xf32> -> vector<16x24x64xf32>
    %40 = tpu.concatenate %37, %39, %37 in 0 : vector<1x24x64xf32>, vector<16x24x64xf32>, vector<1x24x64xf32> -> vector<18x24x64xf32>
    %41 = vector.shape_cast %40 : vector<18x24x64xf32> to vector<432x64xf32>
    %c25_i32_13 = arith.constant 25 : i32
    %42 = tpu.dynamic_rotate %41 by %c25_i32_13 dim 0 : vector<432x64xf32>, i32 -> vector<432x64xf32>
    %43 = arith.truncf %42 : vector<432x64xf32> to vector<432x64xbf16>
    %c24_i32_14 = arith.constant 24 : i32
    %44 = tpu.dynamic_rotate %41 by %c24_i32_14 dim 0 : vector<432x64xf32>, i32 -> vector<432x64xf32>
    %45 = arith.truncf %44 : vector<432x64xf32> to vector<432x64xbf16>
    %c23_i32_15 = arith.constant 23 : i32
    %46 = tpu.dynamic_rotate %41 by %c23_i32_15 dim 0 : vector<432x64xf32>, i32 -> vector<432x64xf32>
    %47 = arith.truncf %46 : vector<432x64xf32> to vector<432x64xbf16>
    %c1_i32_16 = arith.constant 1 : i32
    %48 = tpu.dynamic_rotate %41 by %c1_i32_16 dim 0 : vector<432x64xf32>, i32 -> vector<432x64xf32>
    %49 = arith.truncf %48 : vector<432x64xf32> to vector<432x64xbf16>
    %50 = arith.truncf %41 : vector<432x64xf32> to vector<432x64xbf16>
    %c431_i32_17 = arith.constant 431 : i32
    %51 = tpu.dynamic_rotate %41 by %c431_i32_17 dim 0 : vector<432x64xf32>, i32 -> vector<432x64xf32>
    %52 = arith.truncf %51 : vector<432x64xf32> to vector<432x64xbf16>
    %c409_i32_18 = arith.constant 409 : i32
    %53 = tpu.dynamic_rotate %41 by %c409_i32_18 dim 0 : vector<432x64xf32>, i32 -> vector<432x64xf32>
    %54 = arith.truncf %53 : vector<432x64xf32> to vector<432x64xbf16>
    %c408_i32_19 = arith.constant 408 : i32
    %55 = tpu.dynamic_rotate %41 by %c408_i32_19 dim 0 : vector<432x64xf32>, i32 -> vector<432x64xf32>
    %56 = arith.truncf %55 : vector<432x64xf32> to vector<432x64xbf16>
    %c407_i32_20 = arith.constant 407 : i32
    %57 = tpu.dynamic_rotate %41 by %c407_i32_20 dim 0 : vector<432x64xf32>, i32 -> vector<432x64xf32>
    %58 = arith.truncf %57 : vector<432x64xf32> to vector<432x64xbf16>
    %59 = tpu.concatenate %43, %45, %47, %49, %50, %52, %54, %56, %58 in 1 : vector<432x64xbf16>, vector<432x64xbf16>, vector<432x64xbf16>, vector<432x64xbf16>, vector<432x64xbf16>, vector<432x64xbf16>, vector<432x64xbf16>, vector<432x64xbf16>, vector<432x64xbf16> -> vector<432x576xbf16>
    %c0_21 = arith.constant 0 : index
    %c0_22 = arith.constant 0 : index
    %60 = vector.load %arg3[%c0_21, %c0_22] : memref<576x64xbf16, #tpu.memory_space<vmem>>, vector<576x64xbf16>
    %cst_23 = arith.constant dense<0.000000e+00> : vector<432x64xf32>
    %61 = tpu.matmul %59, %60, %cst_23 {dimension_numbers = #tpu.dot_dimension_numbers<[1], [0], [0], [1], [0, 0, 1, 1], [], []>} : vector<432x576xbf16>, vector<576x64xbf16>, vector<432x64xf32> -> vector<432x64xf32>
    %c0_24 = arith.constant 0 : index
    %c0_25 = arith.constant 0 : index
    %62 = vector.load %arg5[%c0_24, %c0_25] : memref<1x64xf32, #tpu.memory_space<vmem>>, vector<1x64xf32>
    %63 = vector.broadcast %62 : vector<1x64xf32> to vector<432x64xf32>
    %64 = arith.addf %61, %63 : vector<432x64xf32>
    %65 = vector.shape_cast %64 : vector<432x64xf32> to vector<18x24x64xf32>
    %66 = vector.extract_strided_slice %65 {offsets = [1, 0, 0], sizes = [16, 16, 64], strides = [1, 1, 1]} : vector<18x24x64xf32> to vector<16x16x64xf32>
    %67 = arith.addf %66, %1 : vector<16x16x64xf32>
    %c0_26 = arith.constant 0 : index
    %c0_27 = arith.constant 0 : index
    %c0_28 = arith.constant 0 : index
    %c0_29 = arith.constant 0 : index
    %68 = vector.load %arg6[%c0_26, %c0_27, %c0_28, %c0_29] : memref<1x16x16x64xf32, #tpu.memory_space<vmem>>, vector<1x16x16x64xf32>
    %69 = vector.shape_cast %68 : vector<1x16x16x64xf32> to vector<16x16x64xf32>
    %70 = vector.shape_cast %67 : vector<16x16x64xf32> to vector<1x16x16x64xf32>
    tpu.vector_store %arg6[%c0_26, %c0_27, %c0_28, %c0_29], %70 {strides = array<i32>} : memref<1x16x16x64xf32, #tpu.memory_space<vmem>>, vector<1x16x16x64xf32>,
    return
  }
  func.func @transform_0(%arg0: i32) -> (i32, i32, i32, i32) {
    %c0_i32 = arith.constant 0 : i32
    %c0_i32_0 = arith.constant 0 : i32
    %c0_i32_1 = arith.constant 0 : i32
    %c0_i32_2 = arith.constant 0 : i32
    return %arg0, %c0_i32, %c0_i32_0, %c0_i32_1 : i32, i32, i32, i32
  }
  func.func @transform_1(%arg0: i32) -> (i32, i32) {
    %c0_i32 = arith.constant 0 : i32
    %c0_i32_0 = arith.constant 0 : i32
    %c0_i32_1 = arith.constant 0 : i32
    return %c0_i32, %c0_i32_0 : i32, i32
  }
  func.func @transform_2(%arg0: i32) -> (i32, i32) {
    %c0_i32 = arith.constant 0 : i32
    %c0_i32_0 = arith.constant 0 : i32
    %c0_i32_1 = arith.constant 0 : i32
    return %c0_i32, %c0_i32_0 : i32, i32
  }
  func.func @transform_3(%arg0: i32) -> (i32, i32) {
    %c0_i32 = arith.constant 0 : i32
    %c0_i32_0 = arith.constant 0 : i32
    %c0_i32_1 = arith.constant 0 : i32
    return %c0_i32, %c0_i32_0 : i32, i32
  }
  func.func @transform_4(%arg0: i32) -> (i32, i32) {
    %c0_i32 = arith.constant 0 : i32
    %c0_i32_0 = arith.constant 0 : i32
    %c0_i32_1 = arith.constant 0 : i32
    return %c0_i32, %c0_i32_0 : i32, i32
  }
  func.func @transform_5(%arg0: i32) -> (i32, i32, i32, i32) {
    %c0_i32 = arith.constant 0 : i32
    %c0_i32_0 = arith.constant 0 : i32
    %c0_i32_1 = arith.constant 0 : i32
    %c0_i32_2 = arith.constant 0 : i32
    return %arg0, %c0_i32, %c0_i32_0, %c0_i32_1 : i32, i32, i32, i32
  }
}

</mosaic_0001>

<llo_original>
// kernel: tpu_custom_call.1
$region0: #{tpu_custom_call.1}
  #allocation0 [shape = 'u32[]', space=smem, size = 0x4, offset = 0x4, fixed_abs, tag = 'smem constant byte address 0x4 - core index']
  #allocation1 [shape = 'u32[144,128]{1,0:T(1,128)}', space=vmem, size = 0x12000, scoped, tag = 'internal scratch']
  %s0 = inlined_call_operand.vmem [shape: f32[2,16,16,64], index: 0, kind: input, shape index: {}]
  %s1 = inlined_call_operand.vmem [shape: bf16[576,64], index: 1, kind: input, shape index: {}]
  %s2 = inlined_call_operand.vmem [shape: bf16[576,64], index: 2, kind: input, shape index: {}]
  %s3 = inlined_call_operand.vmem [shape: f32[1,64], index: 3, kind: input, shape index: {}]
  %s4 = inlined_call_operand.vmem [shape: f32[1,64], index: 4, kind: input, shape index: {}]
  %s5 = inlined_call_operand.hbm [shape: f32[2,16,16,64], index: 5, kind: output, shape index: {}]
  %s6 = sld [smem:[#allocation0]]
  $region53: #{tpu_custom_call.1} parent=0
    _
  %s8 = ssub.s32 1, %s6
  %s9 = scalar_select 0, %s8, %s6
  $region1: #{tpu_custom_call.1} parent=0
    #allocation2 [shape = 'u8[262144]{0}', space=vmem, size = 0x40000, scoped, tag = 'output window, operand 0']
    #allocation3 [shape = 's32[2]{0}', space=sflag, size = 0x8, scoped, tag = 'scoped memory for tpu_custom_call.1']
    %10 = vsyncpa [#allocation3], 0
    %s11 = scalar_lea.sflag [#allocation3], 1
    %12 = vsyncpa %s11, 0
    loop: start=0, step=1, limit=4
    $region2: #{tpu_custom_call.1} parent=1 // loop_pre_header
      _
    $region3: #{tpu_custom_call.1} parent=1 // loop_header
      %s14 = sphi 0, %s18
      %p15 = scmp.ge.s32.totalorder %s14, 4
      %s24 = sphi 0, %s26
      %s27 = sphi 0, %s24
      %s28 = sphi 0, %s27
      %s44 = sphi 0, %s28
      %s48 = sphi 0, %s48
      %s50 = sphi 0, %s48
      %s51 = sphi 0, %s50
      %s65 = sphi 0, %s51
      %s69 = sphi 0, %s69
      %s71 = sphi 0, %s69
      %s72 = sphi 0, %s71
      %s86 = sphi 0, %s72
      %s90 = sphi 0, %s90
      %s92 = sphi 0, %s90
      %s93 = sphi 0, %s92
      %s107 = sphi 0, %s93
      %s111 = sphi 0, %s111
      %s113 = sphi 0, %s111
      %s114 = sphi 0, %s113
      %s128 = sphi 0, %s114
      %s134 = sphi 0, %s136
      %s137 = sphi 0, %s134
      %s138 = sphi 0, %s137
      %s154 = sphi 0, %s138
    $region4: #{tpu_custom_call.1} parent=1 // loop_header_branch
      %17 = sbr.rel (%p15) target = $region8
    $region5: #{tpu_custom_call.1} parent=1 // loop_body
      %s19 = ssub.s32 %s14, 1
      %s20 = ssub.s32 %s14, 2
      %s21 = sadd.s32 %s14, 1
      %s22 = ssub.s32 %s14, %s21
      %p23 = scmp.eq.s32.totalorder %s22, 0
      %s25 = sadd.s32 %s24, 1
      %s26 = scalar_select %p23, %s24, %s25
      %p29 = pneg %p23
      %p30 = scmp.eq.s32.totalorder %s14, 1
      %p31 = por %p29, %p30
      %p32 = scmp.ne.s32.totalorder %s24, %s27
      %p33 = scmp.eq.s32.totalorder %s14, 0
      %p34 = por %p32, %p33
      %p35 = scmp.ne.s32.totalorder %s24, %s27
      %p36 = scmp.eq.s32.totalorder %s19, 1
      %p37 = por %p35, %p36
      %p38 = scmp.ne.s32.totalorder %s27, %s28
      %p39 = scmp.eq.s32.totalorder %s19, 0
      %p40 = por %p38, %p39
      %p41 = scmp.ne.s32.totalorder %s27, %s28
      %p42 = scmp.eq.s32.totalorder %s20, 1
      %p43 = por %p41, %p42
      %p45 = scmp.ne.s32.totalorder %s28, %s44
      %p46 = scmp.eq.s32.totalorder %s20, 0
      %p47 = por %p45, %p46
      %s49 = sadd.s32 %s48, 1
      %p52 = scmp.eq.s32.totalorder %s14, 1
      %p53 = scmp.ne.s32.totalorder %s48, %s50
      %p54 = scmp.eq.s32.totalorder %s14, 0
      %p55 = por %p53, %p54
      %p56 = scmp.ne.s32.totalorder %s48, %s50
      %p57 = scmp.eq.s32.totalorder %s19, 1
      %p58 = por %p56, %p57
      %p59 = scmp.ne.s32.totalorder %s50, %s51
      %p60 = scmp.eq.s32.totalorder %s19, 0
      %p61 = por %p59, %p60
      %p62 = scmp.ne.s32.totalorder %s50, %s51
      %p63 = scmp.eq.s32.totalorder %s20, 1
      %p64 = por %p62, %p63
      %p66 = scmp.ne.s32.totalorder %s51, %s65
      %p67 = scmp.eq.s32.totalorder %s20, 0
      %p68 = por %p66, %p67
      %s70 = sadd.s32 %s69, 1
      %p73 = scmp.eq.s32.totalorder %s14, 1
      %p74 = scmp.ne.s32.totalorder %s69, %s71
      %p75 = scmp.eq.s32.totalorder %s14, 0
      %p76 = por %p74, %p75
      %p77 = scmp.ne.s32.totalorder %s69, %s71
      %p78 = scmp.eq.s32.totalorder %s19, 1
      %p79 = por %p77, %p78
      %p80 = scmp.ne.s32.totalorder %s71, %s72
      %p81 = scmp.eq.s32.totalorder %s19, 0
      %p82 = por %p80, %p81
      %p83 = scmp.ne.s32.totalorder %s71, %s72
      %p84 = scmp.eq.s32.totalorder %s20, 1
      %p85 = por %p83, %p84
      %p87 = scmp.ne.s32.totalorder %s72, %s86
      %p88 = scmp.eq.s32.totalorder %s20, 0
      %p89 = por %p87, %p88
      %s91 = sadd.s32 %s90, 1
      %p94 = scmp.eq.s32.totalorder %s14, 1
      %p95 = scmp.ne.s32.totalorder %s90, %s92
      %p96 = scmp.eq.s32.totalorder %s14, 0
      %p97 = por %p95, %p96
      %p98 = scmp.ne.s32.totalorder %s90, %s92
      %p99 = scmp.eq.s32.totalorder %s19, 1
      %p100 = por %p98, %p99
      %p101 = scmp.ne.s32.totalorder %s92, %s93
      %p102 = scmp.eq.s32.totalorder %s19, 0
      %p103 = por %p101, %p102
      %p104 = scmp.ne.s32.totalorder %s92, %s93
      %p105 = scmp.eq.s32.totalorder %s20, 1
      %p106 = por %p104, %p105
      %p108 = scmp.ne.s32.totalorder %s93, %s107
      %p109 = scmp.eq.s32.totalorder %s20, 0
      %p110 = por %p108, %p109
      %s112 = sadd.s32 %s111, 1
      %p115 = scmp.eq.s32.totalorder %s14, 1
      %p116 = scmp.ne.s32.totalorder %s111, %s113
      %p117 = scmp.eq.s32.totalorder %s14, 0
      %p118 = por %p116, %p117
      %p119 = scmp.ne.s32.totalorder %s111, %s113
      %p120 = scmp.eq.s32.totalorder %s19, 1
      %p121 = por %p119, %p120
      %p122 = scmp.ne.s32.totalorder %s113, %s114
      %p123 = scmp.eq.s32.totalorder %s19, 0
      %p124 = por %p122, %p123
      %p125 = scmp.ne.s32.totalorder %s113, %s114
      %p126 = scmp.eq.s32.totalorder %s20, 1
      %p127 = por %p125, %p126
      %p129 = scmp.ne.s32.totalorder %s114, %s128
      %p130 = scmp.eq.s32.totalorder %s20, 0
      %p131 = por %p129, %p130
      %s132 = ssub.s32 %s14, %s21
      %p133 = scmp.eq.s32.totalorder %s132, 0
      %s135 = sadd.s32 %s134, 1
      %s136 = scalar_select %p133, %s134, %s135
      %p139 = pneg %p133
      %p140 = scmp.eq.s32.totalorder %s14, 1
      %p141 = por %p139, %p140
      %p142 = scmp.ne.s32.totalorder %s134, %s137
      %p143 = scmp.eq.s32.totalorder %s14, 0
      %p144 = por %p142, %p143
      %p145 = scmp.ne.s32.totalorder %s134, %s137
      %p146 = scmp.eq.s32.totalorder %s19, 1
      %p147 = por %p145, %p146
      %p148 = scmp.ne.s32.totalorder %s137, %s138
      %p149 = scmp.eq.s32.totalorder %s19, 0
      %p150 = por %p148, %p149
      %p151 = scmp.ne.s32.totalorder %s137, %s138
      %p152 = scmp.eq.s32.totalorder %s20, 1
      %p153 = por %p151, %p152
      %p155 = scmp.ne.s32.totalorder %s138, %s154
      %p156 = scmp.eq.s32.totalorder %s20, 0
      %p157 = por %p155, %p156
      %p158 = scmp.le.s32.totalorder 1, %s14
      %p159 = scmp.lt.s32.totalorder %s14, 3
      %p160 = pnand %p158, %p159
      %p161 = pneg %p160
      // Predicated region
      $region9: #{tpu_custom_call.1} parent=5 // pred_check
        _
      $region10: #{tpu_custom_call.1} parent=5 // pred_check_branch
        %163 = sbr.rel (%p160) target = $region12
      $region11: #{tpu_custom_call.1} parent=5 // pred_region
        %s164 = ssub.s32 %s14, 1
        // Predicated region
        $region13: #{tpu_custom_call.1} parent=11 // pred_check
          %p165 = pneg %p61
        $region14: #{tpu_custom_call.1} parent=11 // pred_check_branch
          %167 = sbr.rel (%p165) target = $region16
        $region15: #{tpu_custom_call.1} parent=11 // pred_region
          _
        $region16: #{tpu_custom_call.1} parent=11 // pred_fallthru
          _
        // Predicated region
        $region17: #{tpu_custom_call.1} parent=11 // pred_check
          %p168 = pneg %p82
        $region18: #{tpu_custom_call.1} parent=11 // pred_check_branch
          %170 = sbr.rel (%p168) target = $region20
        $region19: #{tpu_custom_call.1} parent=11 // pred_region
          _
        $region20: #{tpu_custom_call.1} parent=11 // pred_fallthru
          _
        // Predicated region
        $region21: #{tpu_custom_call.1} parent=11 // pred_check
          %p171 = pneg %p103
        $region22: #{tpu_custom_call.1} parent=11 // pred_check_branch
          %173 = sbr.rel (%p171) target = $region24
        $region23: #{tpu_custom_call.1} parent=11 // pred_region
          _
        $region24: #{tpu_custom_call.1} parent=11 // pred_fallthru
          _
        // Predicated region
        $region25: #{tpu_custom_call.1} parent=11 // pred_check
          %p174 = pneg %p124
        $region26: #{tpu_custom_call.1} parent=11 // pred_check_branch
          %176 = sbr.rel (%p174) target = $region28
        $region27: #{tpu_custom_call.1} parent=11 // pred_region
          _
        $region28: #{tpu_custom_call.1} parent=11 // pred_fallthru
          _
      $region12: #{tpu_custom_call.1} parent=5 // pred_fallthru
        _
      %p177 = scmp.lt.s32.totalorder %s14, 2
      // Predicated region
      $region29: #{tpu_custom_call.1} parent=5 // pred_check
        %p178 = pneg %p177
      $region30: #{tpu_custom_call.1} parent=5 // pred_check_branch
        %180 = sbr.rel (%p178) target = $region32
      $region31: #{tpu_custom_call.1} parent=5 // pred_region
        // Predicated region
        $region33: #{tpu_custom_call.1} parent=31 // pred_check
          %p181 = pneg %p34
        $region34: #{tpu_custom_call.1} parent=31 // pred_check_branch
          %183 = sbr.rel (%p181) target = $region36
        $region35: #{tpu_custom_call.1} parent=31 // pred_region
          %p184 = scmp.lt.s32.totalorder %s14, 1
          %s185 = scalar_select %p184, %s14, 1
          %s186 = smul.addr %s185, 32
          %s187 = smul.addr %s186, 8
          %s188 = scalar_lea.vmem %s0, %s187
        $region36: #{tpu_custom_call.1} parent=31 // pred_fallthru
          _
      $region32: #{tpu_custom_call.1} parent=5 // pred_fallthru
        _
      %p189 = scmp.le.s32.totalorder 1, %s14
      %p190 = scmp.lt.s32.totalorder %s14, 3
      %p191 = pnand %p189, %p190
      %p192 = pneg %p191
      // Predicated region
      $region37: #{tpu_custom_call.1} parent=5 // pred_check
        _
      $region38: #{tpu_custom_call.1} parent=5 // pred_check_branch
        %194 = sbr.rel (%p191) target = $region40
      $region39: #{tpu_custom_call.1} parent=5 // pred_region
        %s195 = ssub.s32 %s14, 1
        %p196 = scmp.lt.s32.totalorder %s19, 1
        %s197 = scalar_select %p196, %s19, 1
        %s198 = smul.addr %s197, 32
        %s199 = smul.addr %s198, 8
        %s200 = scalar_lea.vmem %s0, %s199
        %p201 = pneg %p40
        %p202 = pneg %p37
        %p203 = pneg %p61
        %p204 = pneg %p58
        %p205 = pneg %p82
        %p206 = pneg %p79
        %p207 = pneg %p103
        %p208 = pneg %p100
        %p209 = pneg %p124
        %p210 = pneg %p121
        %p211 = pneg %p150
        %p212 = pneg %p147
        %s213 = sand.u32 %s137, 1
        %s214 = scalar_lea.sflag [#allocation3], %s213
        %s215 = sand.u32 %s137, 1
        %s216 = smul.addr %s215, 256
        %s217 = scalar_lea.vmem [#allocation2], %s216
        %p218 = scmp.lt.s32.totalorder %s19, 1
        %s219 = scalar_select %p218, %s19, 1
        %s220 = smul.addr %s219, 32
        %s221 = smul.addr %s220, 8
        %s222 = scalar_lea.vmem %s0, %s221
        %v224 = vld [vmem:[%s222] sm:$0xff]
        %v225 = vld [vmem:[%s222 + $0x8] sm:$0xff]
        %v226 = vld [vmem:[%s222 + $0x10] sm:$0xff]
        %v227 = vld [vmem:[%s222 + $0x18] sm:$0xff]
        %v228 = vld [vmem:[%s222 + $0x20] sm:$0xff]
        %v229 = vld [vmem:[%s222 + $0x28] sm:$0xff]
        %v230 = vld [vmem:[%s222 + $0x30] sm:$0xff]
        %v231 = vld [vmem:[%s222 + $0x38] sm:$0xff]
        %v232 = vld [vmem:[%s222 + $0x40] sm:$0xff]
        %v233 = vld [vmem:[%s222 + $0x48] sm:$0xff]
        %v234 = vld [vmem:[%s222 + $0x50] sm:$0xff]
        %v235 = vld [vmem:[%s222 + $0x58] sm:$0xff]
        %v236 = vld [vmem:[%s222 + $0x60] sm:$0xff]
        %v237 = vld [vmem:[%s222 + $0x68] sm:$0xff]
        %v238 = vld [vmem:[%s222 + $0x70] sm:$0xff]
        %v239 = vld [vmem:[%s222 + $0x78] sm:$0xff]
        %v240 = vld [vmem:[%s222 + $0x80] sm:$0xff]
        %v241 = vld [vmem:[%s222 + $0x88] sm:$0xff]
        %v242 = vld [vmem:[%s222 + $0x90] sm:$0xff]
        %v243 = vld [vmem:[%s222 + $0x98] sm:$0xff]
        %v244 = vld [vmem:[%s222 + $0xa0] sm:$0xff]
        %v245 = vld [vmem:[%s222 + $0xa8] sm:$0xff]
        %v246 = vld [vmem:[%s222 + $0xb0] sm:$0xff]
        %v247 = vld [vmem:[%s222 + $0xb8] sm:$0xff]
        %v248 = vld [vmem:[%s222 + $0xc0] sm:$0xff]
        %v249 = vld [vmem:[%s222 + $0xc8] sm:$0xff]
        %v250 = vld [vmem:[%s222 + $0xd0] sm:$0xff]
        %v251 = vld [vmem:[%s222 + $0xd8] sm:$0xff]
        %v252 = vld [vmem:[%s222 + $0xe0] sm:$0xff]
        %v253 = vld [vmem:[%s222 + $0xe8] sm:$0xff]
        %v254 = vld [vmem:[%s222 + $0xf0] sm:$0xff]
        %v255 = vld [vmem:[%s222 + $0xf8] sm:$0xff]
        %v256 = vrot.slane %v224, 7
        %v257 = vrot.slane %v225, 7
        %v258 = vrot.slane %v226, 7
        %v259 = vrot.slane %v227, 7
        %v260 = vrot.slane %v228, 7
        %v261 = vrot.slane %v229, 7
        %v262 = vrot.slane %v230, 7
        %v263 = vrot.slane %v231, 7
        %v264 = vrot.slane %v232, 7
        %v265 = vrot.slane %v233, 7
        %v266 = vrot.slane %v234, 7
        %v267 = vrot.slane %v235, 7
        %v268 = vrot.slane %v236, 7
        %v269 = vrot.slane %v237, 7
        %v270 = vrot.slane %v238, 7
        %v271 = vrot.slane %v239, 7
        %v272 = vrot.slane %v240, 7
        %v273 = vrot.slane %v241, 7
        %v274 = vrot.slane %v242, 7
        %v275 = vrot.slane %v243, 7
        %v276 = vrot.slane %v244, 7
        %v277 = vrot.slane %v245, 7
        %v278 = vrot.slane %v246, 7
        %v279 = vrot.slane %v247, 7
        %v280 = vrot.slane %v248, 7
        %v281 = vrot.slane %v249, 7
        %v282 = vrot.slane %v250, 7
        %v283 = vrot.slane %v251, 7
        %v284 = vrot.slane %v252, 7
        %v285 = vrot.slane %v253, 7
        %v286 = vrot.slane %v254, 7
        %v287 = vrot.slane %v255, 7
        %v288 = vlaneseq
        %v289 = vshrl.u32 %v288, 7
        %vm290 = vcmp.lt.s32.totalorder %v289, 1
        %v291 = vsel %vm290, %v287, 0.0
        %v292 = vsel %vm290, %v286, %v287
        %v293 = vsel %vm290, 0.0, %v286
        %v294 = vsel %vm290, %v285, 0.0
        %v295 = vsel %vm290, %v284, %v285
        %v296 = vsel %vm290, 0.0, %v284
        %v297 = vsel %vm290, %v283, 0.0
        %v298 = vsel %vm290, %v282, %v283
        %v299 = vsel %vm290, 0.0, %v282
        %v300 = vsel %vm290, %v281, 0.0
        %v301 = vsel %vm290, %v280, %v281
        %v302 = vsel %vm290, 0.0, %v280
        %v303 = vsel %vm290, %v279, 0.0
        %v304 = vsel %vm290, %v278, %v279
        %v305 = vsel %vm290, 0.0, %v278
        %v306 = vsel %vm290, %v277, 0.0
        %v307 = vsel %vm290, %v276, %v277
        %v308 = vsel %vm290, 0.0, %v276
        %v309 = vsel %vm290, %v275, 0.0
        %v310 = vsel %vm290, %v274, %v275
        %v311 = vsel %vm290, 0.0, %v274
        %v312 = vsel %vm290, %v273, 0.0
        %v313 = vsel %vm290, %v272, %v273
        %v314 = vsel %vm290, 0.0, %v272
        %v315 = vsel %vm290, %v271, 0.0
        %v316 = vsel %vm290, %v270, %v271
        %v317 = vsel %vm290, 0.0, %v270
        %v318 = vsel %vm290, %v269, 0.0
        %v319 = vsel %vm290, %v268, %v269
        %v320 = vsel %vm290, 0.0, %v268
        %v321 = vsel %vm290, %v267, 0.0
        %v322 = vsel %vm290, %v266, %v267
        %v323 = vsel %vm290, 0.0, %v266
        %v324 = vsel %vm290, %v265, 0.0
        %v325 = vsel %vm290, %v264, %v265
        %v326 = vsel %vm290, 0.0, %v264
        %v327 = vsel %vm290, %v263, 0.0
        %v328 = vsel %vm290, %v262, %v263
        %v329 = vsel %vm290, 0.0, %v262
        %v330 = vsel %vm290, %v261, 0.0
        %v331 = vsel %vm290, %v260, %v261
        %v332 = vsel %vm290, 0.0, %v260
        %v333 = vsel %vm290, %v259, 0.0
        %v334 = vsel %vm290, %v258, %v259
        %v335 = vsel %vm290, 0.0, %v258
        %v336 = vsel %vm290, %v257, 0.0
        %v337 = vsel %vm290, %v256, %v257
        %v338 = vsel %vm290, 0.0, %v256
        %v339 = vpack.c.bf16 0.0, 0.0
        %v340 = vpack.c.bf16 %v337, %v338
        %v341 = vpack.c.bf16 %v335, %v336
        %v342 = vpack.c.bf16 %v333, %v334
        %v343 = vpack.c.bf16 %v331, %v332
        %v344 = vpack.c.bf16 %v329, %v330
        %v345 = vpack.c.bf16 %v327, %v328
        %v346 = vpack.c.bf16 %v325, %v326
        %v347 = vpack.c.bf16 %v323, %v324
        %v348 = vpack.c.bf16 %v321, %v322
        %v349 = vpack.c.bf16 %v319, %v320
        %v350 = vpack.c.bf16 %v317, %v318
        %v351 = vpack.c.bf16 %v315, %v316
        %v352 = vpack.c.bf16 %v313, %v314
        %v353 = vpack.c.bf16 %v311, %v312
        %v354 = vpack.c.bf16 %v309, %v310
        %v355 = vpack.c.bf16 %v307, %v308
        %v356 = vpack.c.bf16 %v305, %v306
        %v357 = vpack.c.bf16 %v303, %v304
        %v358 = vpack.c.bf16 %v301, %v302
        %v359 = vpack.c.bf16 %v299, %v300
        %v360 = vpack.c.bf16 %v297, %v298
        %v361 = vpack.c.bf16 %v295, %v296
        %v362 = vpack.c.bf16 %v293, %v294
        %v363 = vpack.c.bf16 %v291, %v292
        %v364 = vpack.c.bf16 0.0, 0.0
        %v365 = vpack.c.bf16 %v225, %v224
        %v366 = vpack.c.bf16 %v226, 0.0
        %v367 = vpack.c.bf16 0.0, %v227
        %v368 = vpack.c.bf16 %v229, %v228
        %v369 = vpack.c.bf16 %v230, 0.0
        %v370 = vpack.c.bf16 0.0, %v231
        %v371 = vpack.c.bf16 %v233, %v232
        %v372 = vpack.c.bf16 %v234, 0.0
        %v373 = vpack.c.bf16 0.0, %v235
        %v374 = vpack.c.bf16 %v237, %v236
        %v375 = vpack.c.bf16 %v238, 0.0
        %v376 = vpack.c.bf16 0.0, %v239
        %v377 = vpack.c.bf16 %v241, %v240
        %v378 = vpack.c.bf16 %v242, 0.0
        %v379 = vpack.c.bf16 0.0, %v243
        %v380 = vpack.c.bf16 %v245, %v244
        %v381 = vpack.c.bf16 %v246, 0.0
        %v382 = vpack.c.bf16 0.0, %v247
        %v383 = vpack.c.bf16 %v249, %v248
        %v384 = vpack.c.bf16 %v250, 0.0
        %v385 = vpack.c.bf16 0.0, %v251
        %v386 = vpack.c.bf16 %v253, %v252
        %v387 = vpack.c.bf16 %v254, 0.0
        %v388 = vpack.c.bf16 0.0, %v255
        %v389 = vrot.slane %v224, 1
        %v390 = vrot.slane %v225, 1
        %v391 = vrot.slane %v226, 1
        %v392 = vrot.slane %v227, 1
        %v393 = vrot.slane %v228, 1
        %v394 = vrot.slane %v229, 1
        %v395 = vrot.slane %v230, 1
        %v396 = vrot.slane %v231, 1
        %v397 = vrot.slane %v232, 1
        %v398 = vrot.slane %v233, 1
        %v399 = vrot.slane %v234, 1
        %v400 = vrot.slane %v235, 1
        %v401 = vrot.slane %v236, 1
        %v402 = vrot.slane %v237, 1
        %v403 = vrot.slane %v238, 1
        %v404 = vrot.slane %v239, 1
        %v405 = vrot.slane %v240, 1
        %v406 = vrot.slane %v241, 1
        %v407 = vrot.slane %v242, 1
        %v408 = vrot.slane %v243, 1
        %v409 = vrot.slane %v244, 1
        %v410 = vrot.slane %v245, 1
        %v411 = vrot.slane %v246, 1
        %v412 = vrot.slane %v247, 1
        %v413 = vrot.slane %v248, 1
        %v414 = vrot.slane %v249, 1
        %v415 = vrot.slane %v250, 1
        %v416 = vrot.slane %v251, 1
        %v417 = vrot.slane %v252, 1
        %v418 = vrot.slane %v253, 1
        %v419 = vrot.slane %v254, 1
        %v420 = vrot.slane %v255, 1
        %vm421 = vcmp.lt.s32.totalorder %v289, 7
        %v422 = vsel %vm421, %v420, 0.0
        %v423 = vsel %vm421, %v419, %v420
        %v424 = vsel %vm421, 0.0, %v419
        %v425 = vsel %vm421, %v418, 0.0
        %v426 = vsel %vm421, %v417, %v418
        %v427 = vsel %vm421, 0.0, %v417
        %v428 = vsel %vm421, %v416, 0.0
        %v429 = vsel %vm421, %v415, %v416
        %v430 = vsel %vm421, 0.0, %v415
        %v431 = vsel %vm421, %v414, 0.0
        %v432 = vsel %vm421, %v413, %v414
        %v433 = vsel %vm421, 0.0, %v413
        %v434 = vsel %vm421, %v412, 0.0
        %v435 = vsel %vm421, %v411, %v412
        %v436 = vsel %vm421, 0.0, %v411
        %v437 = vsel %vm421, %v410, 0.0
        %v438 = vsel %vm421, %v409, %v410
        %v439 = vsel %vm421, 0.0, %v409
        %v440 = vsel %vm421, %v408, 0.0
        %v441 = vsel %vm421, %v407, %v408
        %v442 = vsel %vm421, 0.0, %v407
        %v443 = vsel %vm421, %v406, 0.0
        %v444 = vsel %vm421, %v405, %v406
        %v445 = vsel %vm421, 0.0, %v405
        %v446 = vsel %vm421, %v404, 0.0
        %v447 = vsel %vm421, %v403, %v404
        %v448 = vsel %vm421, 0.0, %v403
        %v449 = vsel %vm421, %v402, 0.0
        %v450 = vsel %vm421, %v401, %v402
        %v451 = vsel %vm421, 0.0, %v401
        %v452 = vsel %vm421, %v400, 0.0
        %v453 = vsel %vm421, %v399, %v400
        %v454 = vsel %vm421, 0.0, %v399
        %v455 = vsel %vm421, %v398, 0.0
        %v456 = vsel %vm421, %v397, %v398
        %v457 = vsel %vm421, 0.0, %v397
        %v458 = vsel %vm421, %v396, 0.0
        %v459 = vsel %vm421, %v395, %v396
        %v460 = vsel %vm421, 0.0, %v395
        %v461 = vsel %vm421, %v394, 0.0
        %v462 = vsel %vm421, %v393, %v394
        %v463 = vsel %vm421, 0.0, %v393
        %v464 = vsel %vm421, %v392, 0.0
        %v465 = vsel %vm421, %v391, %v392
        %v466 = vsel %vm421, 0.0, %v391
        %v467 = vsel %vm421, %v390, 0.0
        %v468 = vsel %vm421, %v389, %v390
        %v469 = vsel %vm421, 0.0, %v389
        %v470 = vpack.c.bf16 0.0, 0.0
        %v471 = vpack.c.bf16 %v469, 0.0
        %v472 = vpack.c.bf16 %v467, %v468
        %v473 = vpack.c.bf16 %v465, %v466
        %v474 = vpack.c.bf16 %v463, %v464
        %v475 = vpack.c.bf16 %v461, %v462
        %v476 = vpack.c.bf16 %v459, %v460
        %v477 = vpack.c.bf16 %v457, %v458
        %v478 = vpack.c.bf16 %v455, %v456
        %v479 = vpack.c.bf16 %v453, %v454
        %v480 = vpack.c.bf16 %v451, %v452
        %v481 = vpack.c.bf16 %v449, %v450
        %v482 = vpack.c.bf16 %v447, %v448
        %v483 = vpack.c.bf16 %v445, %v446
        %v484 = vpack.c.bf16 %v443, %v444
        %v485 = vpack.c.bf16 %v441, %v442
        %v486 = vpack.c.bf16 %v439, %v440
        %v487 = vpack.c.bf16 %v437, %v438
        %v488 = vpack.c.bf16 %v435, %v436
        %v489 = vpack.c.bf16 %v433, %v434
        %v490 = vpack.c.bf16 %v431, %v432
        %v491 = vpack.c.bf16 %v429, %v430
        %v492 = vpack.c.bf16 %v427, %v428
        %v493 = vpack.c.bf16 %v425, %v426
        %v494 = vpack.c.bf16 %v423, %v424
        %v495 = vpack.c.bf16 0.0, %v422
        %v496 = vpack.c.bf16 %v338, 0.0
        %v497 = vpack.c.bf16 %v336, %v337
        %v498 = vpack.c.bf16 %v334, %v335
        %v499 = vpack.c.bf16 %v332, %v333
        %v500 = vpack.c.bf16 %v330, %v331
        %v501 = vpack.c.bf16 %v328, %v329
        %v502 = vpack.c.bf16 %v326, %v327
        %v503 = vpack.c.bf16 %v324, %v325
        %v504 = vpack.c.bf16 %v322, %v323
        %v505 = vpack.c.bf16 %v320, %v321
        %v506 = vpack.c.bf16 %v318, %v319
        %v507 = vpack.c.bf16 %v316, %v317
        %v508 = vpack.c.bf16 %v314, %v315
        %v509 = vpack.c.bf16 %v312, %v313
        %v510 = vpack.c.bf16 %v310, %v311
        %v511 = vpack.c.bf16 %v308, %v309
        %v512 = vpack.c.bf16 %v306, %v307
        %v513 = vpack.c.bf16 %v304, %v305
        %v514 = vpack.c.bf16 %v302, %v303
        %v515 = vpack.c.bf16 %v300, %v301
        %v516 = vpack.c.bf16 %v298, %v299
        %v517 = vpack.c.bf16 %v296, %v297
        %v518 = vpack.c.bf16 %v294, %v295
        %v519 = vpack.c.bf16 %v292, %v293
        %v520 = vpack.c.bf16 0.0, %v291
        %v521 = vpack.c.bf16 %v224, 0.0
        %v522 = vpack.c.bf16 0.0, %v225
        %v523 = vpack.c.bf16 %v227, %v226
        %v524 = vpack.c.bf16 %v228, 0.0
        %v525 = vpack.c.bf16 0.0, %v229
        %v526 = vpack.c.bf16 %v231, %v230
        %v527 = vpack.c.bf16 %v232, 0.0
        %v528 = vpack.c.bf16 0.0, %v233
        %v529 = vpack.c.bf16 %v235, %v234
        %v530 = vpack.c.bf16 %v236, 0.0
        %v531 = vpack.c.bf16 0.0, %v237
        %v532 = vpack.c.bf16 %v239, %v238
        %v533 = vpack.c.bf16 %v240, 0.0
        %v534 = vpack.c.bf16 0.0, %v241
        %v535 = vpack.c.bf16 %v243, %v242
        %v536 = vpack.c.bf16 %v244, 0.0
        %v537 = vpack.c.bf16 0.0, %v245
        %v538 = vpack.c.bf16 %v247, %v246
        %v539 = vpack.c.bf16 %v248, 0.0
        %v540 = vpack.c.bf16 0.0, %v249
        %v541 = vpack.c.bf16 %v251, %v250
        %v542 = vpack.c.bf16 %v252, 0.0
        %v543 = vpack.c.bf16 0.0, %v253
        %v544 = vpack.c.bf16 %v255, %v254
        %v545 = vpack.c.bf16 %v468, %v469
        %v546 = vpack.c.bf16 %v466, %v467
        %v547 = vpack.c.bf16 %v464, %v465
        %v548 = vpack.c.bf16 %v462, %v463
        %v549 = vpack.c.bf16 %v460, %v461
        %v550 = vpack.c.bf16 %v458, %v459
        %v551 = vpack.c.bf16 %v456, %v457
        %v552 = vpack.c.bf16 %v454, %v455
        %v553 = vpack.c.bf16 %v452, %v453
        %v554 = vpack.c.bf16 %v450, %v451
        %v555 = vpack.c.bf16 %v448, %v449
        %v556 = vpack.c.bf16 %v446, %v447
        %v557 = vpack.c.bf16 %v444, %v445
        %v558 = vpack.c.bf16 %v442, %v443
        %v559 = vpack.c.bf16 %v440, %v441
        %v560 = vpack.c.bf16 %v438, %v439
        %v561 = vpack.c.bf16 %v436, %v437
        %v562 = vpack.c.bf16 %v434, %v435
        %v563 = vpack.c.bf16 %v432, %v433
        %v564 = vpack.c.bf16 %v430, %v431
        %v565 = vpack.c.bf16 %v428, %v429
        %v566 = vpack.c.bf16 %v426, %v427
        %v567 = vpack.c.bf16 %v424, %v425
        %v568 = vpack.c.bf16 %v422, %v423
        %594 = vrot.lane.b32.xlu0 %v364, 64
        %v595 = vpop.permute.xlu0 %594
        %596 = vrot.lane.b32.xlu0 %v365, 64
        %v597 = vpop.permute.xlu0 %596
        %598 = vrot.lane.b32.xlu0 %v366, 64
        %v599 = vpop.permute.xlu0 %598
        %600 = vrot.lane.b32.xlu0 %v367, 64
        %v601 = vpop.permute.xlu0 %600
        %602 = vrot.lane.b32.xlu0 %v368, 64
        %v603 = vpop.permute.xlu0 %602
        %604 = vrot.lane.b32.xlu0 %v369, 64
        %v605 = vpop.permute.xlu0 %604
        %606 = vrot.lane.b32.xlu0 %v370, 64
        %v607 = vpop.permute.xlu0 %606
        %608 = vrot.lane.b32.xlu0 %v371, 64
        %v609 = vpop.permute.xlu0 %608
        %610 = vrot.lane.b32.xlu0 %v372, 64
        %v611 = vpop.permute.xlu0 %610
        %612 = vrot.lane.b32.xlu0 %v373, 64
        %v613 = vpop.permute.xlu0 %612
        %614 = vrot.lane.b32.xlu0 %v374, 64
        %v615 = vpop.permute.xlu0 %614
        %616 = vrot.lane.b32.xlu0 %v375, 64
        %v617 = vpop.permute.xlu0 %616
        %618 = vrot.lane.b32.xlu0 %v376, 64
        %v619 = vpop.permute.xlu0 %618
        %620 = vrot.lane.b32.xlu0 %v377, 64
        %v621 = vpop.permute.xlu0 %620
        %622 = vrot.lane.b32.xlu0 %v378, 64
        %v623 = vpop.permute.xlu0 %622
        %624 = vrot.lane.b32.xlu0 %v379, 64
        %v625 = vpop.permute.xlu0 %624
        %626 = vrot.lane.b32.xlu0 %v380, 64
        %v627 = vpop.permute.xlu0 %626
        %628 = vrot.lane.b32.xlu0 %v381, 64
        %v629 = vpop.permute.xlu0 %628
        %630 = vrot.lane.b32.xlu0 %v382, 64
        %v631 = vpop.permute.xlu0 %630
        %632 = vrot.lane.b32.xlu0 %v383, 64
        %v633 = vpop.permute.xlu0 %632
        %634 = vrot.lane.b32.xlu0 %v384, 64
        %v635 = vpop.permute.xlu0 %634
        %636 = vrot.lane.b32.xlu0 %v385, 64
        %v637 = vpop.permute.xlu0 %636
        %638 = vrot.lane.b32.xlu0 %v386, 64
        %v639 = vpop.permute.xlu0 %638
        %640 = vrot.lane.b32.xlu0 %v387, 64
        %v641 = vpop.permute.xlu0 %640
        %642 = vrot.lane.b32.xlu0 %v388, 64
        %v643 = vpop.permute.xlu0 %642
        %670 = vrot.lane.b32.xlu0 %v339, 64
        %v671 = vpop.permute.xlu0 %670
        %672 = vrot.lane.b32.xlu0 %v496, 64
        %v673 = vpop.permute.xlu0 %672
        %674 = vrot.lane.b32.xlu0 %v497, 64
        %v675 = vpop.permute.xlu0 %674
        %676 = vrot.lane.b32.xlu0 %v498, 64
        %v677 = vpop.permute.xlu0 %676
        %678 = vrot.lane.b32.xlu0 %v499, 64
        %v679 = vpop.permute.xlu0 %678
        %680 = vrot.lane.b32.xlu0 %v500, 64
        %v681 = vpop.permute.xlu0 %680
        %682 = vrot.lane.b32.xlu0 %v501, 64
        %v683 = vpop.permute.xlu0 %682
        %684 = vrot.lane.b32.xlu0 %v502, 64
        %v685 = vpop.permute.xlu0 %684
        %686 = vrot.lane.b32.xlu0 %v503, 64
        %v687 = vpop.permute.xlu0 %686
        %688 = vrot.lane.b32.xlu0 %v504, 64
        %v689 = vpop.permute.xlu0 %688
        %690 = vrot.lane.b32.xlu0 %v505, 64
        %v691 = vpop.permute.xlu0 %690
        %692 = vrot.lane.b32.xlu0 %v506, 64
        %v693 = vpop.permute.xlu0 %692
        %694 = vrot.lane.b32.xlu0 %v507, 64
        %v695 = vpop.permute.xlu0 %694
        %696 = vrot.lane.b32.xlu0 %v508, 64
        %v697 = vpop.permute.xlu0 %696
        %698 = vrot.lane.b32.xlu0 %v509, 64
        %v699 = vpop.permute.xlu0 %698
        %700 = vrot.lane.b32.xlu0 %v510, 64
        %v701 = vpop.permute.xlu0 %700
        %702 = vrot.lane.b32.xlu0 %v511, 64
        %v703 = vpop.permute.xlu0 %702
        %704 = vrot.lane.b32.xlu0 %v512, 64
        %v705 = vpop.permute.xlu0 %704
        %706 = vrot.lane.b32.xlu0 %v513, 64
        %v707 = vpop.permute.xlu0 %706
        %708 = vrot.lane.b32.xlu0 %v514, 64
        %v709 = vpop.permute.xlu0 %708
        %710 = vrot.lane.b32.xlu0 %v515, 64
        %v711 = vpop.permute.xlu0 %710
        %712 = vrot.lane.b32.xlu0 %v516, 64
        %v713 = vpop.permute.xlu0 %712
        %714 = vrot.lane.b32.xlu0 %v517, 64
        %v715 = vpop.permute.xlu0 %714
        %716 = vrot.lane.b32.xlu0 %v518, 64
        %v717 = vpop.permute.xlu0 %716
        %718 = vrot.lane.b32.xlu0 %v519, 64
        %v719 = vpop.permute.xlu0 %718
        %720 = vrot.lane.b32.xlu0 %v520, 64
        %v721 = vpop.permute.xlu0 %720
        %747 = vrot.lane.b32.xlu0 %v470, 64
        %v748 = vpop.permute.xlu0 %747
        %749 = vrot.lane.b32.xlu0 %v545, 64
        %v750 = vpop.permute.xlu0 %749
        %751 = vrot.lane.b32.xlu0 %v546, 64
        %v752 = vpop.permute.xlu0 %751
        %753 = vrot.lane.b32.xlu0 %v547, 64
        %v754 = vpop.permute.xlu0 %753
        %755 = vrot.lane.b32.xlu0 %v548, 64
        %v756 = vpop.permute.xlu0 %755
        %757 = vrot.lane.b32.xlu0 %v549, 64
        %v758 = vpop.permute.xlu0 %757
        %759 = vrot.lane.b32.xlu0 %v550, 64
        %v760 = vpop.permute.xlu0 %759
        %761 = vrot.lane.b32.xlu0 %v551, 64
        %v762 = vpop.permute.xlu0 %761
        %763 = vrot.lane.b32.xlu0 %v552, 64
        %v764 = vpop.permute.xlu0 %763
        %765 = vrot.lane.b32.xlu0 %v553, 64
        %v766 = vpop.permute.xlu0 %765
        %767 = vrot.lane.b32.xlu0 %v554, 64
        %v768 = vpop.permute.xlu0 %767
        %769 = vrot.lane.b32.xlu0 %v555, 64
        %v770 = vpop.permute.xlu0 %769
        %771 = vrot.lane.b32.xlu0 %v556, 64
        %v772 = vpop.permute.xlu0 %771
        %773 = vrot.lane.b32.xlu0 %v557, 64
        %v774 = vpop.permute.xlu0 %773
        %775 = vrot.lane.b32.xlu0 %v558, 64
        %v776 = vpop.permute.xlu0 %775
        %777 = vrot.lane.b32.xlu0 %v559, 64
        %v778 = vpop.permute.xlu0 %777
        %779 = vrot.lane.b32.xlu0 %v560, 64
        %v780 = vpop.permute.xlu0 %779
        %781 = vrot.lane.b32.xlu0 %v561, 64
        %v782 = vpop.permute.xlu0 %781
        %783 = vrot.lane.b32.xlu0 %v562, 64
        %v784 = vpop.permute.xlu0 %783
        %785 = vrot.lane.b32.xlu0 %v563, 64
        %v786 = vpop.permute.xlu0 %785
        %787 = vrot.lane.b32.xlu0 %v564, 64
        %v788 = vpop.permute.xlu0 %787
        %789 = vrot.lane.b32.xlu0 %v565, 64
        %v790 = vpop.permute.xlu0 %789
        %791 = vrot.lane.b32.xlu0 %v566, 64
        %v792 = vpop.permute.xlu0 %791
        %793 = vrot.lane.b32.xlu0 %v567, 64
        %v794 = vpop.permute.xlu0 %793
        %795 = vrot.lane.b32.xlu0 %v568, 64
        %v796 = vpop.permute.xlu0 %795
        %vm797 = vcmask 523264
        %v800 = vsel %vm797, %v339, %v595
        %v804 = vsel %vm797, %v340, %v597
        %v808 = vsel %vm797, %v341, %v599
        %v812 = vsel %vm797, %v342, %v601
        %v816 = vsel %vm797, %v343, %v603
        %v820 = vsel %vm797, %v344, %v605
        %v824 = vsel %vm797, %v345, %v607
        %v828 = vsel %vm797, %v346, %v609
        %v832 = vsel %vm797, %v347, %v611
        %v836 = vsel %vm797, %v348, %v613
        %v840 = vsel %vm797, %v349, %v615
        %v844 = vsel %vm797, %v350, %v617
        %v848 = vsel %vm797, %v351, %v619
        %v852 = vsel %vm797, %v352, %v621
        %v856 = vsel %vm797, %v353, %v623
        %v860 = vsel %vm797, %v354, %v625
        %v864 = vsel %vm797, %v355, %v627
        %v868 = vsel %vm797, %v356, %v629
        %v872 = vsel %vm797, %v357, %v631
        %v876 = vsel %vm797, %v358, %v633
        %v880 = vsel %vm797, %v359, %v635
        %v884 = vsel %vm797, %v360, %v637
        %v888 = vsel %vm797, %v361, %v639
        %v892 = vsel %vm797, %v362, %v641
        %v896 = vsel %vm797, %v363, %v643
        %v900 = vsel %vm797, %v470, %v671
        %v903 = vsel %vm797, %v470, %v673
        %v907 = vsel %vm797, %v471, %v675
        %v911 = vsel %vm797, %v472, %v677
        %v915 = vsel %vm797, %v473, %v679
        %v919 = vsel %vm797, %v474, %v681
        %v923 = vsel %vm797, %v475, %v683
        %v927 = vsel %vm797, %v476, %v685
        %v931 = vsel %vm797, %v477, %v687
        %v935 = vsel %vm797, %v478, %v689
        %v939 = vsel %vm797, %v479, %v691
        %v943 = vsel %vm797, %v480, %v693
        %v947 = vsel %vm797, %v481, %v695
        %v951 = vsel %vm797, %v482, %v697
        %v955 = vsel %vm797, %v483, %v699
        %v959 = vsel %vm797, %v484, %v701
        %v963 = vsel %vm797, %v485, %v703
        %v967 = vsel %vm797, %v486, %v705
        %v971 = vsel %vm797, %v487, %v707
        %v975 = vsel %vm797, %v488, %v709
        %v979 = vsel %vm797, %v489, %v711
        %v983 = vsel %vm797, %v490, %v713
        %v987 = vsel %vm797, %v491, %v715
        %v991 = vsel %vm797, %v492, %v717
        %v995 = vsel %vm797, %v493, %v719
        %v999 = vsel %vm797, %v494, %v721
        %v1002 = vsel %vm797, %v495, %v671
        %v1006 = vsel %vm797, %v364, %v748
        %v1010 = vsel %vm797, %v521, %v750
        %v1014 = vsel %vm797, %v522, %v752
        %v1018 = vsel %vm797, %v523, %v754
        %v1022 = vsel %vm797, %v524, %v756
        %v1026 = vsel %vm797, %v525, %v758
        %v1030 = vsel %vm797, %v526, %v760
        %v1034 = vsel %vm797, %v527, %v762
        %v1038 = vsel %vm797, %v528, %v764
        %v1042 = vsel %vm797, %v529, %v766
        %v1046 = vsel %vm797, %v530, %v768
        %v1050 = vsel %vm797, %v531, %v770
        %v1054 = vsel %vm797, %v532, %v772
        %v1058 = vsel %vm797, %v533, %v774
        %v1062 = vsel %vm797, %v534, %v776
        %v1066 = vsel %vm797, %v535, %v778
        %v1070 = vsel %vm797, %v536, %v780
        %v1074 = vsel %vm797, %v537, %v782
        %v1078 = vsel %vm797, %v538, %v784
        %v1082 = vsel %vm797, %v539, %v786
        %v1086 = vsel %vm797, %v540, %v788
        %v1090 = vsel %vm797, %v541, %v790
        %v1094 = vsel %vm797, %v542, %v792
        %v1098 = vsel %vm797, %v543, %v794
        %v1102 = vsel %vm797, %v544, %v796
        %v1104 = vld [vmem:[%s1] sm:$0xf]
        %v1105 = vld [vmem:[%s1 + $0x4] sm:$0xf]
        %v1106 = vld [vmem:[%s1 + $0x8] sm:$0xf]
        %v1107 = vld [vmem:[%s1 + $0xc] sm:$0xf]
        %v1108 = vld [vmem:[%s1 + $0x10] sm:$0xf]
        %v1109 = vld [vmem:[%s1 + $0x14] sm:$0xf]
        %v1110 = vld [vmem:[%s1 + $0x18] sm:$0xf]
        %v1111 = vld [vmem:[%s1 + $0x1c] sm:$0xf]
        %v1112 = vld [vmem:[%s1 + $0x20] sm:$0xf]
        %v1113 = vld [vmem:[%s1 + $0x24] sm:$0xf]
        %v1114 = vld [vmem:[%s1 + $0x28] sm:$0xf]
        %v1115 = vld [vmem:[%s1 + $0x2c] sm:$0xf]
        %v1116 = vld [vmem:[%s1 + $0x30] sm:$0xf]
        %v1117 = vld [vmem:[%s1 + $0x34] sm:$0xf]
        %v1118 = vld [vmem:[%s1 + $0x38] sm:$0xf]
        %v1119 = vld [vmem:[%s1 + $0x3c] sm:$0xf]
        %v1120 = vld [vmem:[%s1 + $0x40] sm:$0xf]
        %v1121 = vld [vmem:[%s1 + $0x44] sm:$0xf]
        %v1122 = vld [vmem:[%s1 + $0x48] sm:$0xf]
        %v1123 = vld [vmem:[%s1 + $0x4c] sm:$0xf]
        %v1124 = vld [vmem:[%s1 + $0x50] sm:$0xf]
        %v1125 = vld [vmem:[%s1 + $0x54] sm:$0xf]
        %v1126 = vld [vmem:[%s1 + $0x58] sm:$0xf]
        %v1127 = vld [vmem:[%s1 + $0x5c] sm:$0xf]
        %v1128 = vld [vmem:[%s1 + $0x60] sm:$0xf]
        %v1129 = vld [vmem:[%s1 + $0x64] sm:$0xf]
        %v1130 = vld [vmem:[%s1 + $0x68] sm:$0xf]
        %v1131 = vld [vmem:[%s1 + $0x6c] sm:$0xf]
        %v1132 = vld [vmem:[%s1 + $0x70] sm:$0xf]
        %v1133 = vld [vmem:[%s1 + $0x74] sm:$0xf]
        %v1134 = vld [vmem:[%s1 + $0x78] sm:$0xf]
        %v1135 = vld [vmem:[%s1 + $0x7c] sm:$0xf]
        %v1136 = vld [vmem:[%s1 + $0x80] sm:$0xf]
        %v1137 = vld [vmem:[%s1 + $0x84] sm:$0xf]
        %v1138 = vld [vmem:[%s1 + $0x88] sm:$0xf]
        %v1139 = vld [vmem:[%s1 + $0x8c] sm:$0xf]
        %v1140 = vld [vmem:[%s1 + $0x90] sm:$0xf]
        %v1141 = vld [vmem:[%s1 + $0x94] sm:$0xf]
        %v1142 = vld [vmem:[%s1 + $0x98] sm:$0xf]
        %v1143 = vld [vmem:[%s1 + $0x9c] sm:$0xf]
        %v1144 = vld [vmem:[%s1 + $0xa0] sm:$0xf]
        %v1145 = vld [vmem:[%s1 + $0xa4] sm:$0xf]
        %v1146 = vld [vmem:[%s1 + $0xa8] sm:$0xf]
        %v1147 = vld [vmem:[%s1 + $0xac] sm:$0xf]
        %v1148 = vld [vmem:[%s1 + $0xb0] sm:$0xf]
        %v1149 = vld [vmem:[%s1 + $0xb4] sm:$0xf]
        %v1150 = vld [vmem:[%s1 + $0xb8] sm:$0xf]
        %v1151 = vld [vmem:[%s1 + $0xbc] sm:$0xf]
        %v1152 = vld [vmem:[%s1 + $0xc0] sm:$0xf]
        %v1153 = vld [vmem:[%s1 + $0xc4] sm:$0xf]
        %v1154 = vld [vmem:[%s1 + $0xc8] sm:$0xf]
        %v1155 = vld [vmem:[%s1 + $0xcc] sm:$0xf]
        %v1156 = vld [vmem:[%s1 + $0xd0] sm:$0xf]
        %v1157 = vld [vmem:[%s1 + $0xd4] sm:$0xf]
        %v1158 = vld [vmem:[%s1 + $0xd8] sm:$0xf]
        %v1159 = vld [vmem:[%s1 + $0xdc] sm:$0xf]
        %v1160 = vld [vmem:[%s1 + $0xe0] sm:$0xf]
        %v1161 = vld [vmem:[%s1 + $0xe4] sm:$0xf]
        %v1162 = vld [vmem:[%s1 + $0xe8] sm:$0xf]
        %v1163 = vld [vmem:[%s1 + $0xec] sm:$0xf]
        %v1164 = vld [vmem:[%s1 + $0xf0] sm:$0xf]
        %v1165 = vld [vmem:[%s1 + $0xf4] sm:$0xf]
        %v1166 = vld [vmem:[%s1 + $0xf8] sm:$0xf]
        %v1167 = vld [vmem:[%s1 + $0xfc] sm:$0xf]
        %v1168 = vld [vmem:[%s1 + $0x100] sm:$0xf]
        %v1169 = vld [vmem:[%s1 + $0x104] sm:$0xf]
        %v1170 = vld [vmem:[%s1 + $0x108] sm:$0xf]
        %v1171 = vld [vmem:[%s1 + $0x10c] sm:$0xf]
        %v1172 = vld [vmem:[%s1 + $0x110] sm:$0xf]
        %v1173 = vld [vmem:[%s1 + $0x114] sm:$0xf]
        %v1174 = vld [vmem:[%s1 + $0x118] sm:$0xf]
        %v1175 = vld [vmem:[%s1 + $0x11c] sm:$0xf]
        %v1176 = vld [vmem:[%s3] sm:$0x1]
        %v1178 = vlaneseq
        %v1179 = vshrl.u32 %v1178, 7
        %v1180 = vsub.s32 0, %v1179
        %v1181 = vrot.slane %v1176, %v1180
        %v1255 = vunpack.c.l.b16 %v1104
        %v1256 = vunpack.c.l.b16 %v1105
        %v1257 = vunpack.c.l.b16 %v1106
        %v1258 = vunpack.c.l.b16 %v1107
        %v1259 = vunpack.c.l.b16 %v1108
        %v1260 = vunpack.c.l.b16 %v1109
        %v1261 = vunpack.c.l.b16 %v1110
        %v1262 = vunpack.c.l.b16 %v1111
        %v1263 = vunpack.c.l.b16 %v1112
        %v1264 = vunpack.c.l.b16 %v1113
        %v1265 = vunpack.c.l.b16 %v1114
        %v1266 = vunpack.c.l.b16 %v1115
        %v1267 = vunpack.c.l.b16 %v1116
        %v1268 = vunpack.c.l.b16 %v1117
        %v1269 = vunpack.c.l.b16 %v1118
        %v1270 = vunpack.c.l.b16 %v1119
        %v1271 = vunpack.c.l.b16 %v1120
        %v1272 = vunpack.c.l.b16 %v1121
        %v1273 = vunpack.c.l.b16 %v1122
        %v1274 = vunpack.c.l.b16 %v1123
        %v1275 = vunpack.c.l.b16 %v1124
        %v1276 = vunpack.c.l.b16 %v1125
        %v1277 = vunpack.c.l.b16 %v1126
        %v1278 = vunpack.c.l.b16 %v1127
        %v1279 = vunpack.c.l.b16 %v1128
        %v1280 = vunpack.c.l.b16 %v1129
        %v1281 = vunpack.c.l.b16 %v1130
        %v1282 = vunpack.c.l.b16 %v1131
        %v1283 = vunpack.c.l.b16 %v1132
        %v1284 = vunpack.c.l.b16 %v1133
        %v1285 = vunpack.c.l.b16 %v1134
        %v1286 = vunpack.c.l.b16 %v1135
        %v1287 = vunpack.c.l.b16 %v1136
        %v1288 = vunpack.c.l.b16 %v1137
        %v1289 = vunpack.c.l.b16 %v1138
        %v1290 = vunpack.c.l.b16 %v1139
        %v1291 = vunpack.c.l.b16 %v1140
        %v1292 = vunpack.c.l.b16 %v1141
        %v1293 = vunpack.c.l.b16 %v1142
        %v1294 = vunpack.c.l.b16 %v1143
        %v1295 = vunpack.c.l.b16 %v1144
        %v1296 = vunpack.c.l.b16 %v1145
        %v1297 = vunpack.c.l.b16 %v1146
        %v1298 = vunpack.c.l.b16 %v1147
        %v1299 = vunpack.c.l.b16 %v1148
        %v1300 = vunpack.c.l.b16 %v1149
        %v1301 = vunpack.c.l.b16 %v1150
        %v1302 = vunpack.c.l.b16 %v1151
        %v1303 = vunpack.c.l.b16 %v1152
        %v1304 = vunpack.c.l.b16 %v1153
        %v1305 = vunpack.c.l.b16 %v1154
        %v1306 = vunpack.c.l.b16 %v1155
        %v1307 = vunpack.c.l.b16 %v1156
        %v1308 = vunpack.c.l.b16 %v1157
        %v1309 = vunpack.c.l.b16 %v1158
        %v1310 = vunpack.c.l.b16 %v1159
        %v1311 = vunpack.c.l.b16 %v1160
        %v1312 = vunpack.c.l.b16 %v1161
        %v1313 = vunpack.c.l.b16 %v1162
        %v1314 = vunpack.c.l.b16 %v1163
        %v1315 = vunpack.c.l.b16 %v1164
        %v1316 = vunpack.c.l.b16 %v1165
        %v1317 = vunpack.c.l.b16 %v1166
        %v1318 = vunpack.c.l.b16 %v1167
        %v1319 = vunpack.c.l.b16 %v1168
        %v1320 = vunpack.c.l.b16 %v1169
        %v1321 = vunpack.c.l.b16 %v1170
        %v1322 = vunpack.c.l.b16 %v1171
        %v1323 = vunpack.c.l.b16 %v1172
        %v1324 = vunpack.c.l.b16 %v1173
        %v1325 = vunpack.c.l.b16 %v1174
        %v1326 = vunpack.c.l.b16 %v1175
        %v1327 = vpack.c.b16 %v1256, %v1255
        %v1328 = vpack.c.b16 %v1258, %v1257
        %v1329 = vpack.c.b16 %v1260, %v1259
        %v1330 = vpack.c.b16 %v1262, %v1261
        %v1331 = vpack.c.b16 %v1264, %v1263
        %v1332 = vpack.c.b16 %v1266, %v1265
        %v1333 = vpack.c.b16 %v1268, %v1267
        %v1334 = vpack.c.b16 %v1270, %v1269
        %v1335 = vpack.c.b16 %v1272, %v1271
        %v1336 = vpack.c.b16 %v1274, %v1273
        %v1337 = vpack.c.b16 %v1276, %v1275
        %v1338 = vpack.c.b16 %v1278, %v1277
        %v1339 = vpack.c.b16 %v1280, %v1279
        %v1340 = vpack.c.b16 %v1282, %v1281
        %v1341 = vpack.c.b16 %v1284, %v1283
        %v1342 = vpack.c.b16 %v1286, %v1285
        %v1343 = vpack.c.b16 %v1288, %v1287
        %v1344 = vpack.c.b16 %v1290, %v1289
        %v1345 = vpack.c.b16 %v1292, %v1291
        %v1346 = vpack.c.b16 %v1294, %v1293
        %v1347 = vpack.c.b16 %v1296, %v1295
        %v1348 = vpack.c.b16 %v1298, %v1297
        %v1349 = vpack.c.b16 %v1300, %v1299
        %v1350 = vpack.c.b16 %v1302, %v1301
        %v1351 = vpack.c.b16 %v1304, %v1303
        %v1352 = vpack.c.b16 %v1306, %v1305
        %v1353 = vpack.c.b16 %v1308, %v1307
        %v1354 = vpack.c.b16 %v1310, %v1309
        %v1355 = vpack.c.b16 %v1312, %v1311
        %v1356 = vpack.c.b16 %v1314, %v1313
        %v1357 = vpack.c.b16 %v1316, %v1315
        %v1358 = vpack.c.b16 %v1318, %v1317
        %v1359 = vpack.c.b16 %v1320, %v1319
        %v1360 = vpack.c.b16 %v1322, %v1321
        %v1361 = vpack.c.b16 %v1324, %v1323
        %v1362 = vpack.c.b16 %v1326, %v1325
        %v1399 = vsel %vm797, %v472, 0
        %v1401 = vsel %vm797, %v473, 0
        %v1403 = vsel %vm797, %v474, 0
        %v1405 = vsel %vm797, %v475, 0
        %v1407 = vsel %vm797, %v476, 0
        %v1409 = vsel %vm797, %v477, 0
        %v1411 = vsel %vm797, %v478, 0
        %v1413 = vsel %vm797, %v479, 0
        %v1415 = vsel %vm797, %v480, 0
        %v1417 = vsel %vm797, %v481, 0
        %v1419 = vsel %vm797, %v482, 0
        %v1421 = vsel %vm797, %v483, 0
        %v1423 = vsel %vm797, %v484, 0
        %v1425 = vsel %vm797, %v485, 0
        %v1427 = vsel %vm797, %v486, 0
        %v1429 = vsel %vm797, %v487, 0
        %v1431 = vsel %vm797, %v488, 0
        %v1433 = vsel %vm797, %v489, 0
        %v1435 = vsel %vm797, %v490, 0
        %v1437 = vsel %vm797, %v491, 0
        %v1439 = vsel %vm797, %v492, 0
        %v1441 = vsel %vm797, %v493, 0
        %v1443 = vsel %vm797, %v494, 0
        %v1445 = vsel %vm797, %v495, 0
        %v1447 = vsel %vm797, %v470, 0
        %v1449 = vsel %vm797, %v471, 0
        %1451 = vmatprep.subr.bf16.mxu0 0
        %1452 = vmatpush1.bf16.msra.mxu0 %v1334
        %1453 = vmatprep.subr.bf16.mxu0 0
        %1454 = vmatpush1.bf16.msra.mxu0 %v1333
        %1455 = vmatprep.subr.bf16.mxu0 0
        %1456 = vmatpush1.bf16.msra.mxu0 %v1332
        %1457 = vmatprep.subr.bf16.mxu0 0
        %1458 = vmatpush1.bf16.msra.mxu0 %v1331
        %1459 = vmatprep.subr.bf16.mxu0 0
        %1460 = vmatpush1.bf16.msra.mxu0 %v1330
        %1461 = vmatprep.subr.bf16.mxu0 0
        %1462 = vmatpush1.bf16.msra.mxu0 %v1329
        %1463 = vmatprep.subr.bf16.mxu0 0
        %1464 = vmatpush1.bf16.msra.mxu0 %v1328
        %1465 = vmatprep.subr.bf16.mxu0 0
        %1466 = vmatpush1.bf16.msra.mxu0 %v1327
        %1467 = vmatprep.subr.bf16.mxu0 0
        %1468 = vmatpush2.bf16.msra.mxu0 %v1342
        %1469 = vmatprep.subr.bf16.mxu0 0
        %1470 = vmatpush2.bf16.msra.mxu0 %v1341
        %1471 = vmatprep.subr.bf16.mxu0 0
        %1472 = vmatpush2.bf16.msra.mxu0 %v1340
        %1473 = vmatprep.subr.bf16.mxu0 0
        %1474 = vmatpush2.bf16.msra.mxu0 %v1339
        %1475 = vmatprep.subr.bf16.mxu0 0
        %1476 = vmatpush2.bf16.msra.mxu0 %v1338
        %1477 = vmatprep.subr.bf16.mxu0 0
        %1478 = vmatpush2.bf16.msra.mxu0 %v1337
        %1479 = vmatprep.subr.bf16.mxu0 0
        %1480 = vmatpush2.bf16.msra.mxu0 %v1336
        %1481 = vmatprep.subr.bf16.mxu0 0
        %1482 = vmatpush2.bf16.msra.mxu0 %v1335
        %1483 = vmatprep.mubr.bf16.mxu0 %v900
        %1484 = vmatmul.mubr.bf16.gmra.mxu0 %v800
        %v1485 = vpop.f32.mrf.mxu0
        %v1486 = vpop.f32.mrf.mxu0
        %v1487 = vpop.f32.mrf.mxu0
        %v1488 = vpop.f32.mrf.mxu0
        %1489 = vmatprep.mubr.bf16.mxu0 %v903
        %1490 = vmatmul.mubr.bf16.gmra.mxu0 %v800
        %v1491 = vpop.f32.mrf.mxu0
        %v1492 = vpop.f32.mrf.mxu0
        %v1493 = vpop.f32.mrf.mxu0
        %v1494 = vadd.f32 %v1181, %v1493
        %v1495 = vpop.f32.mrf.mxu0
        %1496 = vmatprep.mubr.bf16.mxu0 %v907
        %1497 = vmatmul.mubr.bf16.gmra.mxu0 %v800
        %v1498 = vpop.f32.mrf.mxu0
        %v1499 = vadd.f32 %v1181, %v1498
        %v1500 = vpop.f32.mrf.mxu0
        %v1501 = vpop.f32.mrf.mxu0
        %v1502 = vpop.f32.mrf.mxu0
        %1503 = vmatprep.mubr.bf16.mxu0 %v911
        %1504 = vmatmul.mubr.bf16.gmra.mxu0 %v804
        %v1505 = vpop.f32.mrf.mxu0
        %v1506 = vadd.f32 %v1181, %v1505
        %v1507 = vpop.f32.mrf.mxu0
        %v1508 = vpop.f32.mrf.mxu0
        %v1509 = vadd.f32 %v1181, %v1508
        %v1510 = vpop.f32.mrf.mxu0
        %1511 = vmatprep.mubr.bf16.mxu0 %v915
        %1512 = vmatmul.mubr.bf16.gmra.mxu0 %v808
        %v1513 = vpop.f32.mrf.mxu0
        %v1514 = vpop.f32.mrf.mxu0
        %v1515 = vpop.f32.mrf.mxu0
        %v1516 = vadd.f32 %v1181, %v1515
        %v1517 = vpop.f32.mrf.mxu0
        %1518 = vmatprep.mubr.bf16.mxu0 %v919
        %1519 = vmatmul.mubr.bf16.gmra.mxu0 %v812
        %v1520 = vpop.f32.mrf.mxu0
        %v1521 = vadd.f32 %v1181, %v1520
        %v1522 = vpop.f32.mrf.mxu0
        %v1523 = vpop.f32.mrf.mxu0
        %v1524 = vpop.f32.mrf.mxu0
        %1525 = vmatprep.mubr.bf16.mxu0 %v923
        %1526 = vmatmul.mubr.bf16.gmra.mxu0 %v816
        %v1527 = vpop.f32.mrf.mxu0
        %v1528 = vadd.f32 %v1181, %v1527
        %v1529 = vpop.f32.mrf.mxu0
        %v1530 = vpop.f32.mrf.mxu0
        %v1531 = vadd.f32 %v1181, %v1530
        %v1532 = vpop.f32.mrf.mxu0
        %1533 = vmatprep.mubr.bf16.mxu0 %v927
        %1534 = vmatmul.mubr.bf16.gmra.mxu0 %v820
        %v1535 = vpop.f32.mrf.mxu0
        %v1536 = vpop.f32.mrf.mxu0
        %v1537 = vpop.f32.mrf.mxu0
        %v1538 = vadd.f32 %v1181, %v1537
        %v1539 = vpop.f32.mrf.mxu0
        %1540 = vmatprep.mubr.bf16.mxu0 %v931
        %1541 = vmatmul.mubr.bf16.gmra.mxu0 %v824
        %v1542 = vpop.f32.mrf.mxu0
        %v1543 = vadd.f32 %v1181, %v1542
        %v1544 = vpop.f32.mrf.mxu0
        %v1545 = vpop.f32.mrf.mxu0
        %v1546 = vpop.f32.mrf.mxu0
        %1547 = vmatprep.mubr.bf16.mxu0 %v935
        %1548 = vmatmul.mubr.bf16.gmra.mxu0 %v828
        %v1549 = vpop.f32.mrf.mxu0
        %v1550 = vadd.f32 %v1181, %v1549
        %v1551 = vpop.f32.mrf.mxu0
        %v1552 = vpop.f32.mrf.mxu0
        %v1553 = vadd.f32 %v1181, %v1552
        %v1554 = vpop.f32.mrf.mxu0
        %1555 = vmatprep.mubr.bf16.mxu0 %v939
        %1556 = vmatmul.mubr.bf16.gmra.mxu0 %v832
        %v1557 = vpop.f32.mrf.mxu0
        %v1558 = vpop.f32.mrf.mxu0
        %v1559 = vpop.f32.mrf.mxu0
        %v1560 = vadd.f32 %v1181, %v1559
        %v1561 = vpop.f32.mrf.mxu0
        %1562 = vmatprep.mubr.bf16.mxu0 %v943
        %1563 = vmatmul.mubr.bf16.gmra.mxu0 %v836
        %v1564 = vpop.f32.mrf.mxu0
        %v1565 = vadd.f32 %v1181, %v1564
        %v1566 = vpop.f32.mrf.mxu0
        %v1567 = vpop.f32.mrf.mxu0
        %v1568 = vpop.f32.mrf.mxu0
        %1569 = vmatprep.mubr.bf16.mxu0 %v947
        %1570 = vmatmul.mubr.bf16.gmra.mxu0 %v840
        %v1571 = vpop.f32.mrf.mxu0
        %v1572 = vadd.f32 %v1181, %v1571
        %v1573 = vpop.f32.mrf.mxu0
        %v1574 = vpop.f32.mrf.mxu0
        %v1575 = vadd.f32 %v1181, %v1574
        %v1576 = vpop.f32.mrf.mxu0
        %1577 = vmatprep.mubr.bf16.mxu0 %v951
        %1578 = vmatmul.mubr.bf16.gmra.mxu0 %v844
        %v1579 = vpop.f32.mrf.mxu0
        %v1580 = vpop.f32.mrf.mxu0
        %v1581 = vpop.f32.mrf.mxu0
        %v1582 = vadd.f32 %v1181, %v1581
        %v1583 = vpop.f32.mrf.mxu0
        %1584 = vmatprep.mubr.bf16.mxu0 %v955
        %1585 = vmatmul.mubr.bf16.gmra.mxu0 %v848
        %v1586 = vpop.f32.mrf.mxu0
        %v1587 = vadd.f32 %v1181, %v1586
        %v1588 = vpop.f32.mrf.mxu0
        %v1589 = vpop.f32.mrf.mxu0
        %v1590 = vpop.f32.mrf.mxu0
        %1591 = vmatprep.mubr.bf16.mxu0 %v959
        %1592 = vmatmul.mubr.bf16.gmra.mxu0 %v852
        %v1593 = vpop.f32.mrf.mxu0
        %v1594 = vadd.f32 %v1181, %v1593
        %v1595 = vpop.f32.mrf.mxu0
        %v1596 = vpop.f32.mrf.mxu0
        %v1597 = vadd.f32 %v1181, %v1596
        %v1598 = vpop.f32.mrf.mxu0
        %1599 = vmatprep.mubr.bf16.mxu0 %v963
        %1600 = vmatmul.mubr.bf16.gmra.mxu0 %v856
        %v1601 = vpop.f32.mrf.mxu0
        %v1602 = vpop.f32.mrf.mxu0
        %v1603 = vpop.f32.mrf.mxu0
        %v1604 = vadd.f32 %v1181, %v1603
        %v1605 = vpop.f32.mrf.mxu0
        %1606 = vmatprep.mubr.bf16.mxu0 %v967
        %1607 = vmatmul.mubr.bf16.gmra.mxu0 %v860
        %v1608 = vpop.f32.mrf.mxu0
        %v1609 = vadd.f32 %v1181, %v1608
        %v1610 = vpop.f32.mrf.mxu0
        %v1611 = vpop.f32.mrf.mxu0
        %v1612 = vpop.f32.mrf.mxu0
        %1613 = vmatprep.mubr.bf16.mxu0 %v971
        %1614 = vmatmul.mubr.bf16.gmra.mxu0 %v864
        %v1615 = vpop.f32.mrf.mxu0
        %v1616 = vadd.f32 %v1181, %v1615
        %v1617 = vpop.f32.mrf.mxu0
        %v1618 = vpop.f32.mrf.mxu0
        %v1619 = vadd.f32 %v1181, %v1618
        %v1620 = vpop.f32.mrf.mxu0
        %1621 = vmatprep.mubr.bf16.mxu0 %v975
        %1622 = vmatmul.mubr.bf16.gmra.mxu0 %v868
        %v1623 = vpop.f32.mrf.mxu0
        %v1624 = vpop.f32.mrf.mxu0
        %v1625 = vpop.f32.mrf.mxu0
        %v1626 = vadd.f32 %v1181, %v1625
        %v1627 = vpop.f32.mrf.mxu0
        %1628 = vmatprep.mubr.bf16.mxu0 %v979
        %1629 = vmatmul.mubr.bf16.gmra.mxu0 %v872
        %v1630 = vpop.f32.mrf.mxu0
        %v1631 = vadd.f32 %v1181, %v1630
        %v1632 = vpop.f32.mrf.mxu0
        %v1633 = vpop.f32.mrf.mxu0
        %v1634 = vpop.f32.mrf.mxu0
        %1635 = vmatprep.mubr.bf16.mxu0 %v983
        %1636 = vmatmul.mubr.bf16.gmra.mxu0 %v876
        %v1637 = vpop.f32.mrf.mxu0
        %v1638 = vadd.f32 %v1181, %v1637
        %v1639 = vpop.f32.mrf.mxu0
        %v1640 = vpop.f32.mrf.mxu0
        %v1641 = vadd.f32 %v1181, %v1640
        %v1642 = vpop.f32.mrf.mxu0
        %1643 = vmatprep.mubr.bf16.mxu0 %v987
        %1644 = vmatmul.mubr.bf16.gmra.mxu0 %v880
        %v1645 = vpop.f32.mrf.mxu0
        %v1646 = vpop.f32.mrf.mxu0
        %v1647 = vpop.f32.mrf.mxu0
        %v1648 = vadd.f32 %v1181, %v1647
        %v1649 = vpop.f32.mrf.mxu0
        %1650 = vmatprep.mubr.bf16.mxu0 %v991
        %1651 = vmatmul.mubr.bf16.gmra.mxu0 %v884
        %v1652 = vpop.f32.mrf.mxu0
        %v1653 = vadd.f32 %v1181, %v1652
        %v1654 = vpop.f32.mrf.mxu0
        %v1655 = vpop.f32.mrf.mxu0
        %v1656 = vpop.f32.mrf.mxu0
        %1657 = vmatprep.mubr.bf16.mxu0 %v995
        %1658 = vmatmul.mubr.bf16.gmra.mxu0 %v888
        %v1659 = vpop.f32.mrf.mxu0
        %v1660 = vadd.f32 %v1181, %v1659
        %v1661 = vpop.f32.mrf.mxu0
        %v1662 = vpop.f32.mrf.mxu0
        %v1663 = vadd.f32 %v1181, %v1662
        %v1664 = vpop.f32.mrf.mxu0
        %1665 = vmatprep.mubr.bf16.mxu0 %v999
        %1666 = vmatmul.mubr.bf16.gmra.mxu0 %v892
        %v1667 = vpop.f32.mrf.mxu0
        %v1668 = vpop.f32.mrf.mxu0
        %v1669 = vpop.f32.mrf.mxu0
        %v1670 = vpop.f32.mrf.mxu0
        %1671 = vmatprep.mubr.bf16.mxu0 %v1002
        %1672 = vmatmul.mubr.bf16.gmra.mxu0 %v896
        %v1673 = vpop.f32.mrf.mxu0
        %v1674 = vpop.f32.mrf.mxu0
        %v1675 = vpop.f32.mrf.mxu0
        %v1676 = vpop.f32.mrf.mxu0
        %1677 = vdwg.mxu0
        %1678 = vmatprep.subr.bf16.mxu0 0
        %1679 = vmatpush1.bf16.msra.mxu0 %v1350
        %1680 = vmatprep.subr.bf16.mxu0 0
        %1681 = vmatpush1.bf16.msra.mxu0 %v1349
        %1682 = vmatprep.subr.bf16.mxu0 0
        %1683 = vmatpush1.bf16.msra.mxu0 %v1348
        %1684 = vmatprep.subr.bf16.mxu0 0
        %1685 = vmatpush1.bf16.msra.mxu0 %v1347
        %1686 = vmatprep.subr.bf16.mxu0 0
        %1687 = vmatpush1.bf16.msra.mxu0 %v1346
        %1688 = vmatprep.subr.bf16.mxu0 0
        %1689 = vmatpush1.bf16.msra.mxu0 %v1345
        %1690 = vmatprep.subr.bf16.mxu0 0
        %1691 = vmatpush1.bf16.msra.mxu0 %v1344
        %1692 = vmatprep.subr.bf16.mxu0 0
        %1693 = vmatpush1.bf16.msra.mxu0 %v1343
        %1694 = vmatprep.subr.bf16.mxu0 0
        %1695 = vmatpush2.bf16.msra.mxu0 %v1358
        %1696 = vmatprep.subr.bf16.mxu0 0
        %1697 = vmatpush2.bf16.msra.mxu0 %v1357
        %1698 = vmatprep.subr.bf16.mxu0 0
        %1699 = vmatpush2.bf16.msra.mxu0 %v1356
        %1700 = vmatprep.subr.bf16.mxu0 0
        %1701 = vmatpush2.bf16.msra.mxu0 %v1355
        %1702 = vmatprep.subr.bf16.mxu0 0
        %1703 = vmatpush2.bf16.msra.mxu0 %v1354
        %1704 = vmatprep.subr.bf16.mxu0 0
        %1705 = vmatpush2.bf16.msra.mxu0 %v1353
        %1706 = vmatprep.subr.bf16.mxu0 0
        %1707 = vmatpush2.bf16.msra.mxu0 %v1352
        %1708 = vmatprep.subr.bf16.mxu0 0
        %1709 = vmatpush2.bf16.msra.mxu0 %v1351
        %1710 = vmatprep.mubr.bf16.mxu0 %v804
        %1711 = vmatmul.mubr.bf16.gmra.mxu0 %v1006
        %v1712 = vpop.f32.mrf.mxu0
        %v1713 = vpop.f32.mrf.mxu0
        %v1714 = vpop.f32.mrf.mxu0
        %v1715 = vpop.f32.mrf.mxu0
        %1716 = vmatprep.mubr.bf16.mxu0 %v808
        %1717 = vmatmul.mubr.bf16.gmra.mxu0 %v1010
        %v1718 = vpop.f32.mrf.mxu0
        %v1719 = vpop.f32.mrf.mxu0
        %v1720 = vpop.f32.mrf.mxu0
        %v1721 = vadd.f32 %v1494, %v1720
        %v1722 = vpop.f32.mrf.mxu0
        %1723 = vmatprep.mubr.bf16.mxu0 %v812
        %1724 = vmatmul.mubr.bf16.gmra.mxu0 %v1014
        %v1725 = vpop.f32.mrf.mxu0
        %v1726 = vadd.f32 %v1499, %v1725
        %v1727 = vpop.f32.mrf.mxu0
        %v1728 = vpop.f32.mrf.mxu0
        %v1729 = vpop.f32.mrf.mxu0
        %1730 = vmatprep.mubr.bf16.mxu0 %v816
        %1731 = vmatmul.mubr.bf16.gmra.mxu0 %v1018
        %v1732 = vpop.f32.mrf.mxu0
        %v1733 = vadd.f32 %v1506, %v1732
        %v1734 = vpop.f32.mrf.mxu0
        %v1735 = vpop.f32.mrf.mxu0
        %v1736 = vadd.f32 %v1509, %v1735
        %v1737 = vpop.f32.mrf.mxu0
        %1738 = vmatprep.mubr.bf16.mxu0 %v820
        %1739 = vmatmul.mubr.bf16.gmra.mxu0 %v1022
        %v1740 = vpop.f32.mrf.mxu0
        %v1741 = vpop.f32.mrf.mxu0
        %v1742 = vpop.f32.mrf.mxu0
        %v1743 = vadd.f32 %v1516, %v1742
        %v1744 = vpop.f32.mrf.mxu0
        %1745 = vmatprep.mubr.bf16.mxu0 %v824
        %1746 = vmatmul.mubr.bf16.gmra.mxu0 %v1026
        %v1747 = vpop.f32.mrf.mxu0
        %v1748 = vadd.f32 %v1521, %v1747
        %v1749 = vpop.f32.mrf.mxu0
        %v1750 = vpop.f32.mrf.mxu0
        %v1751 = vpop.f32.mrf.mxu0
        %1752 = vmatprep.mubr.bf16.mxu0 %v828
        %1753 = vmatmul.mubr.bf16.gmra.mxu0 %v1030
        %v1754 = vpop.f32.mrf.mxu0
        %v1755 = vadd.f32 %v1528, %v1754
        %v1756 = vpop.f32.mrf.mxu0
        %v1757 = vpop.f32.mrf.mxu0
        %v1758 = vadd.f32 %v1531, %v1757
        %v1759 = vpop.f32.mrf.mxu0
        %1760 = vmatprep.mubr.bf16.mxu0 %v832
        %1761 = vmatmul.mubr.bf16.gmra.mxu0 %v1034
        %v1762 = vpop.f32.mrf.mxu0
        %v1763 = vpop.f32.mrf.mxu0
        %v1764 = vpop.f32.mrf.mxu0
        %v1765 = vadd.f32 %v1538, %v1764
        %v1766 = vpop.f32.mrf.mxu0
        %1767 = vmatprep.mubr.bf16.mxu0 %v836
        %1768 = vmatmul.mubr.bf16.gmra.mxu0 %v1038
        %v1769 = vpop.f32.mrf.mxu0
        %v1770 = vadd.f32 %v1543, %v1769
        %v1771 = vpop.f32.mrf.mxu0
        %v1772 = vpop.f32.mrf.mxu0
        %v1773 = vpop.f32.mrf.mxu0
        %1774 = vmatprep.mubr.bf16.mxu0 %v840
        %1775 = vmatmul.mubr.bf16.gmra.mxu0 %v1042
        %v1776 = vpop.f32.mrf.mxu0
        %v1777 = vadd.f32 %v1550, %v1776
        %v1778 = vpop.f32.mrf.mxu0
        %v1779 = vpop.f32.mrf.mxu0
        %v1780 = vadd.f32 %v1553, %v1779
        %v1781 = vpop.f32.mrf.mxu0
        %1782 = vmatprep.mubr.bf16.mxu0 %v844
        %1783 = vmatmul.mubr.bf16.gmra.mxu0 %v1046
        %v1784 = vpop.f32.mrf.mxu0
        %v1785 = vpop.f32.mrf.mxu0
        %v1786 = vpop.f32.mrf.mxu0
        %v1787 = vadd.f32 %v1560, %v1786
        %v1788 = vpop.f32.mrf.mxu0
        %1789 = vmatprep.mubr.bf16.mxu0 %v848
        %1790 = vmatmul.mubr.bf16.gmra.mxu0 %v1050
        %v1791 = vpop.f32.mrf.mxu0
        %v1792 = vadd.f32 %v1565, %v1791
        %v1793 = vpop.f32.mrf.mxu0
        %v1794 = vpop.f32.mrf.mxu0
        %v1795 = vpop.f32.mrf.mxu0
        %1796 = vmatprep.mubr.bf16.mxu0 %v852
        %1797 = vmatmul.mubr.bf16.gmra.mxu0 %v1054
        %v1798 = vpop.f32.mrf.mxu0
        %v1799 = vadd.f32 %v1572, %v1798
        %v1800 = vpop.f32.mrf.mxu0
        %v1801 = vpop.f32.mrf.mxu0
        %v1802 = vadd.f32 %v1575, %v1801
        %v1803 = vpop.f32.mrf.mxu0
        %1804 = vmatprep.mubr.bf16.mxu0 %v856
        %1805 = vmatmul.mubr.bf16.gmra.mxu0 %v1058
        %v1806 = vpop.f32.mrf.mxu0
        %v1807 = vpop.f32.mrf.mxu0
        %v1808 = vpop.f32.mrf.mxu0
        %v1809 = vadd.f32 %v1582, %v1808
        %v1810 = vpop.f32.mrf.mxu0
        %1811 = vmatprep.mubr.bf16.mxu0 %v860
        %1812 = vmatmul.mubr.bf16.gmra.mxu0 %v1062
        %v1813 = vpop.f32.mrf.mxu0
        %v1814 = vadd.f32 %v1587, %v1813
        %v1815 = vpop.f32.mrf.mxu0
        %v1816 = vpop.f32.mrf.mxu0
        %v1817 = vpop.f32.mrf.mxu0
        %1818 = vmatprep.mubr.bf16.mxu0 %v864
        %1819 = vmatmul.mubr.bf16.gmra.mxu0 %v1066
        %v1820 = vpop.f32.mrf.mxu0
        %v1821 = vadd.f32 %v1594, %v1820
        %v1822 = vpop.f32.mrf.mxu0
        %v1823 = vpop.f32.mrf.mxu0
        %v1824 = vadd.f32 %v1597, %v1823
        %v1825 = vpop.f32.mrf.mxu0
        %1826 = vmatprep.mubr.bf16.mxu0 %v868
        %1827 = vmatmul.mubr.bf16.gmra.mxu0 %v1070
        %v1828 = vpop.f32.mrf.mxu0
        %v1829 = vpop.f32.mrf.mxu0
        %v1830 = vpop.f32.mrf.mxu0
        %v1831 = vadd.f32 %v1604, %v1830
        %v1832 = vpop.f32.mrf.mxu0
        %1833 = vmatprep.mubr.bf16.mxu0 %v872
        %1834 = vmatmul.mubr.bf16.gmra.mxu0 %v1074
        %v1835 = vpop.f32.mrf.mxu0
        %v1836 = vadd.f32 %v1609, %v1835
        %v1837 = vpop.f32.mrf.mxu0
        %v1838 = vpop.f32.mrf.mxu0
        %v1839 = vpop.f32.mrf.mxu0
        %1840 = vmatprep.mubr.bf16.mxu0 %v876
        %1841 = vmatmul.mubr.bf16.gmra.mxu0 %v1078
        %v1842 = vpop.f32.mrf.mxu0
        %v1843 = vadd.f32 %v1616, %v1842
        %v1844 = vpop.f32.mrf.mxu0
        %v1845 = vpop.f32.mrf.mxu0
        %v1846 = vadd.f32 %v1619, %v1845
        %v1847 = vpop.f32.mrf.mxu0
        %1848 = vmatprep.mubr.bf16.mxu0 %v880
        %1849 = vmatmul.mubr.bf16.gmra.mxu0 %v1082
        %v1850 = vpop.f32.mrf.mxu0
        %v1851 = vpop.f32.mrf.mxu0
        %v1852 = vpop.f32.mrf.mxu0
        %v1853 = vadd.f32 %v1626, %v1852
        %v1854 = vpop.f32.mrf.mxu0
        %1855 = vmatprep.mubr.bf16.mxu0 %v884
        %1856 = vmatmul.mubr.bf16.gmra.mxu0 %v1086
        %v1857 = vpop.f32.mrf.mxu0
        %v1858 = vadd.f32 %v1631, %v1857
        %v1859 = vpop.f32.mrf.mxu0
        %v1860 = vpop.f32.mrf.mxu0
        %v1861 = vpop.f32.mrf.mxu0
        %1862 = vmatprep.mubr.bf16.mxu0 %v888
        %1863 = vmatmul.mubr.bf16.gmra.mxu0 %v1090
        %v1864 = vpop.f32.mrf.mxu0
        %v1865 = vadd.f32 %v1638, %v1864
        %v1866 = vpop.f32.mrf.mxu0
        %v1867 = vpop.f32.mrf.mxu0
        %v1868 = vadd.f32 %v1641, %v1867
        %v1869 = vpop.f32.mrf.mxu0
        %1870 = vmatprep.mubr.bf16.mxu0 %v892
        %1871 = vmatmul.mubr.bf16.gmra.mxu0 %v1094
        %v1872 = vpop.f32.mrf.mxu0
        %v1873 = vpop.f32.mrf.mxu0
        %v1874 = vpop.f32.mrf.mxu0
        %v1875 = vadd.f32 %v1648, %v1874
        %v1876 = vpop.f32.mrf.mxu0
        %1877 = vmatprep.mubr.bf16.mxu0 %v896
        %1878 = vmatmul.mubr.bf16.gmra.mxu0 %v1098
        %v1879 = vpop.f32.mrf.mxu0
        %v1880 = vadd.f32 %v1653, %v1879
        %v1881 = vpop.f32.mrf.mxu0
        %v1882 = vpop.f32.mrf.mxu0
        %v1883 = vpop.f32.mrf.mxu0
        %1884 = vmatprep.mubr.bf16.mxu0 %v800
        %1885 = vmatmul.mubr.bf16.gmra.mxu0 %v1102
        %v1886 = vpop.f32.mrf.mxu0
        %v1887 = vadd.f32 %v1660, %v1886
        %v1888 = vpop.f32.mrf.mxu0
        %v1889 = vpop.f32.mrf.mxu0
        %v1890 = vadd.f32 %v1663, %v1889
        %v1891 = vpop.f32.mrf.mxu0
        %1892 = vmatprep.mubr.bf16.mxu0 %v800
        %1893 = vmatmul.mubr.bf16.gmra.mxu0 %v1006
        %v1894 = vpop.f32.mrf.mxu0
        %v1895 = vpop.f32.mrf.mxu0
        %v1896 = vpop.f32.mrf.mxu0
        %v1897 = vpop.f32.mrf.mxu0
        %1898 = vmatprep.mubr.bf16.mxu0 %v800
        %1899 = vmatmul.mubr.bf16.gmra.mxu0 %v1006
        %v1900 = vpop.f32.mrf.mxu0
        %v1901 = vpop.f32.mrf.mxu0
        %v1902 = vpop.f32.mrf.mxu0
        %v1903 = vpop.f32.mrf.mxu0
        %1904 = vdwg.mxu0
        %1905 = vmatprep.subr.bf16.mxu0 0
        %1906 = vmatpush1.bf16.msra.mxu0 0
        %1907 = vmatprep.subr.bf16.mxu0 0
        %1908 = vmatpush1.bf16.msra.mxu0 0
        %1909 = vmatprep.subr.bf16.mxu0 0
        %1910 = vmatpush1.bf16.msra.mxu0 0
        %1911 = vmatprep.subr.bf16.mxu0 0
        %1912 = vmatpush1.bf16.msra.mxu0 0
        %1913 = vmatprep.subr.bf16.mxu0 0
        %1914 = vmatpush1.bf16.msra.mxu0 %v1362
        %1915 = vmatprep.subr.bf16.mxu0 0
        %1916 = vmatpush1.bf16.msra.mxu0 %v1361
        %1917 = vmatprep.subr.bf16.mxu0 0
        %1918 = vmatpush1.bf16.msra.mxu0 %v1360
        %1919 = vmatprep.subr.bf16.mxu0 0
        %1920 = vmatpush1.bf16.msra.mxu0 %v1359
        %1921 = vmatprep.subr.bf16.mxu0 0
        %1922 = vmatpush2.bf16.msra.mxu0 0
        %1923 = vmatprep.subr.bf16.mxu0 0
        %1924 = vmatpush2.bf16.msra.mxu0 0
        %1925 = vmatprep.subr.bf16.mxu0 0
        %1926 = vmatpush2.bf16.msra.mxu0 0
        %1927 = vmatprep.subr.bf16.mxu0 0
        %1928 = vmatpush2.bf16.msra.mxu0 0
        %1929 = vmatprep.subr.bf16.mxu0 0
        %1930 = vmatpush2.bf16.msra.mxu0 0
        %1931 = vmatprep.subr.bf16.mxu0 0
        %1932 = vmatpush2.bf16.msra.mxu0 0
        %1933 = vmatprep.subr.bf16.mxu0 0
        %1934 = vmatpush2.bf16.msra.mxu0 0
        %1935 = vmatprep.subr.bf16.mxu0 0
        %1936 = vmatpush2.bf16.msra.mxu0 0
        %1937 = vmatprep.mubr.bf16.mxu0 0
        %1938 = vmatmul.mubr.bf16.gmra.mxu0 %v1399
        %v1939 = vpop.f32.mrf.mxu0
        %v1940 = vpop.f32.mrf.mxu0
        %v1941 = vpop.f32.mrf.mxu0
        %v1942 = vpop.f32.mrf.mxu0
        %1943 = vmatprep.mubr.bf16.mxu0 0
        %1944 = vmatmul.mubr.bf16.gmra.mxu0 %v1401
        %v1945 = vpop.f32.mrf.mxu0
        %v1946 = vpop.f32.mrf.mxu0
        %v1947 = vpop.f32.mrf.mxu0
        %v1948 = vadd.f32 %v1721, %v1947
        %v1949 = vpop.f32.mrf.mxu0
        %1950 = vmatprep.mubr.bf16.mxu0 0
        %1951 = vmatmul.mubr.bf16.gmra.mxu0 %v1403
        %v1952 = vpop.f32.mrf.mxu0
        %v1953 = vadd.f32 %v1726, %v1952
        %v1954 = vpop.f32.mrf.mxu0
        %v1955 = vpop.f32.mrf.mxu0
        %v1956 = vpop.f32.mrf.mxu0
        %1957 = vmatprep.mubr.bf16.mxu0 0
        %1958 = vmatmul.mubr.bf16.gmra.mxu0 %v1405
        %v1959 = vpop.f32.mrf.mxu0
        %v1960 = vadd.f32 %v1733, %v1959
        %v1961 = vpop.f32.mrf.mxu0
        %v1962 = vpop.f32.mrf.mxu0
        %v1963 = vadd.f32 %v1736, %v1962
        %v1964 = vpop.f32.mrf.mxu0
        %1965 = vmatprep.mubr.bf16.mxu0 0
        %1966 = vmatmul.mubr.bf16.gmra.mxu0 %v1407
        %v1967 = vpop.f32.mrf.mxu0
        %v1968 = vpop.f32.mrf.mxu0
        %v1969 = vpop.f32.mrf.mxu0
        %v1970 = vadd.f32 %v1743, %v1969
        %v1971 = vpop.f32.mrf.mxu0
        %1972 = vmatprep.mubr.bf16.mxu0 0
        %1973 = vmatmul.mubr.bf16.gmra.mxu0 %v1409
        %v1974 = vpop.f32.mrf.mxu0
        %v1975 = vadd.f32 %v1748, %v1974
        %v1976 = vpop.f32.mrf.mxu0
        %v1977 = vpop.f32.mrf.mxu0
        %v1978 = vpop.f32.mrf.mxu0
        %1979 = vmatprep.mubr.bf16.mxu0 0
        %1980 = vmatmul.mubr.bf16.gmra.mxu0 %v1411
        %v1981 = vpop.f32.mrf.mxu0
        %v1982 = vadd.f32 %v1755, %v1981
        %v1983 = vpop.f32.mrf.mxu0
        %v1984 = vpop.f32.mrf.mxu0
        %v1985 = vadd.f32 %v1758, %v1984
        %v1986 = vpop.f32.mrf.mxu0
        %1987 = vmatprep.mubr.bf16.mxu0 0
        %1988 = vmatmul.mubr.bf16.gmra.mxu0 %v1413
        %v1989 = vpop.f32.mrf.mxu0
        %v1990 = vpop.f32.mrf.mxu0
        %v1991 = vpop.f32.mrf.mxu0
        %v1992 = vadd.f32 %v1765, %v1991
        %v1993 = vpop.f32.mrf.mxu0
        %1994 = vmatprep.mubr.bf16.mxu0 0
        %1995 = vmatmul.mubr.bf16.gmra.mxu0 %v1415
        %v1996 = vpop.f32.mrf.mxu0
        %v1997 = vadd.f32 %v1770, %v1996
        %v1998 = vpop.f32.mrf.mxu0
        %v1999 = vpop.f32.mrf.mxu0
        %v2000 = vpop.f32.mrf.mxu0
        %2001 = vmatprep.mubr.bf16.mxu0 0
        %2002 = vmatmul.mubr.bf16.gmra.mxu0 %v1417
        %v2003 = vpop.f32.mrf.mxu0
        %v2004 = vadd.f32 %v1777, %v2003
        %v2005 = vpop.f32.mrf.mxu0
        %v2006 = vpop.f32.mrf.mxu0
        %v2007 = vadd.f32 %v1780, %v2006
        %v2008 = vpop.f32.mrf.mxu0
        %2009 = vmatprep.mubr.bf16.mxu0 0
        %2010 = vmatmul.mubr.bf16.gmra.mxu0 %v1419
        %v2011 = vpop.f32.mrf.mxu0
        %v2012 = vpop.f32.mrf.mxu0
        %v2013 = vpop.f32.mrf.mxu0
        %v2014 = vadd.f32 %v1787, %v2013
        %v2015 = vpop.f32.mrf.mxu0
        %2016 = vmatprep.mubr.bf16.mxu0 0
        %2017 = vmatmul.mubr.bf16.gmra.mxu0 %v1421
        %v2018 = vpop.f32.mrf.mxu0
        %v2019 = vadd.f32 %v1792, %v2018
        %v2020 = vpop.f32.mrf.mxu0
        %v2021 = vpop.f32.mrf.mxu0
        %v2022 = vpop.f32.mrf.mxu0
        %2023 = vmatprep.mubr.bf16.mxu0 0
        %2024 = vmatmul.mubr.bf16.gmra.mxu0 %v1423
        %v2025 = vpop.f32.mrf.mxu0
        %v2026 = vadd.f32 %v1799, %v2025
        %v2027 = vpop.f32.mrf.mxu0
        %v2028 = vpop.f32.mrf.mxu0
        %v2029 = vadd.f32 %v1802, %v2028
        %v2030 = vpop.f32.mrf.mxu0
        %2031 = vmatprep.mubr.bf16.mxu0 0
        %2032 = vmatmul.mubr.bf16.gmra.mxu0 %v1425
        %v2033 = vpop.f32.mrf.mxu0
        %v2034 = vpop.f32.mrf.mxu0
        %v2035 = vpop.f32.mrf.mxu0
        %v2036 = vadd.f32 %v1809, %v2035
        %v2037 = vpop.f32.mrf.mxu0
        %2038 = vmatprep.mubr.bf16.mxu0 0
        %2039 = vmatmul.mubr.bf16.gmra.mxu0 %v1427
        %v2040 = vpop.f32.mrf.mxu0
        %v2041 = vadd.f32 %v1814, %v2040
        %v2042 = vpop.f32.mrf.mxu0
        %v2043 = vpop.f32.mrf.mxu0
        %v2044 = vpop.f32.mrf.mxu0
        %2045 = vmatprep.mubr.bf16.mxu0 0
        %2046 = vmatmul.mubr.bf16.gmra.mxu0 %v1429
        %v2047 = vpop.f32.mrf.mxu0
        %v2048 = vadd.f32 %v1821, %v2047
        %v2049 = vpop.f32.mrf.mxu0
        %v2050 = vpop.f32.mrf.mxu0
        %v2051 = vadd.f32 %v1824, %v2050
        %v2052 = vpop.f32.mrf.mxu0
        %2053 = vmatprep.mubr.bf16.mxu0 0
        %2054 = vmatmul.mubr.bf16.gmra.mxu0 %v1431
        %v2055 = vpop.f32.mrf.mxu0
        %v2056 = vpop.f32.mrf.mxu0
        %v2057 = vpop.f32.mrf.mxu0
        %v2058 = vadd.f32 %v1831, %v2057
        %v2059 = vpop.f32.mrf.mxu0
        %2060 = vmatprep.mubr.bf16.mxu0 0
        %2061 = vmatmul.mubr.bf16.gmra.mxu0 %v1433
        %v2062 = vpop.f32.mrf.mxu0
        %v2063 = vadd.f32 %v1836, %v2062
        %v2064 = vpop.f32.mrf.mxu0
        %v2065 = vpop.f32.mrf.mxu0
        %v2066 = vpop.f32.mrf.mxu0
        %2067 = vmatprep.mubr.bf16.mxu0 0
        %2068 = vmatmul.mubr.bf16.gmra.mxu0 %v1435
        %v2069 = vpop.f32.mrf.mxu0
        %v2070 = vadd.f32 %v1843, %v2069
        %v2071 = vpop.f32.mrf.mxu0
        %v2072 = vpop.f32.mrf.mxu0
        %v2073 = vadd.f32 %v1846, %v2072
        %v2074 = vpop.f32.mrf.mxu0
        %2075 = vmatprep.mubr.bf16.mxu0 0
        %2076 = vmatmul.mubr.bf16.gmra.mxu0 %v1437
        %v2077 = vpop.f32.mrf.mxu0
        %v2078 = vpop.f32.mrf.mxu0
        %v2079 = vpop.f32.mrf.mxu0
        %v2080 = vadd.f32 %v1853, %v2079
        %v2081 = vpop.f32.mrf.mxu0
        %2082 = vmatprep.mubr.bf16.mxu0 0
        %2083 = vmatmul.mubr.bf16.gmra.mxu0 %v1439
        %v2084 = vpop.f32.mrf.mxu0
        %v2085 = vadd.f32 %v1858, %v2084
        %v2086 = vpop.f32.mrf.mxu0
        %v2087 = vpop.f32.mrf.mxu0
        %v2088 = vpop.f32.mrf.mxu0
        %2089 = vmatprep.mubr.bf16.mxu0 0
        %2090 = vmatmul.mubr.bf16.gmra.mxu0 %v1441
        %v2091 = vpop.f32.mrf.mxu0
        %v2092 = vadd.f32 %v1865, %v2091
        %v2093 = vpop.f32.mrf.mxu0
        %v2094 = vpop.f32.mrf.mxu0
        %v2095 = vadd.f32 %v1868, %v2094
        %v2096 = vpop.f32.mrf.mxu0
        %2097 = vmatprep.mubr.bf16.mxu0 0
        %2098 = vmatmul.mubr.bf16.gmra.mxu0 %v1443
        %v2099 = vpop.f32.mrf.mxu0
        %v2100 = vpop.f32.mrf.mxu0
        %v2101 = vpop.f32.mrf.mxu0
        %v2102 = vadd.f32 %v1875, %v2101
        %v2103 = vpop.f32.mrf.mxu0
        %2104 = vmatprep.mubr.bf16.mxu0 0
        %2105 = vmatmul.mubr.bf16.gmra.mxu0 %v1445
        %v2106 = vpop.f32.mrf.mxu0
        %v2107 = vadd.f32 %v1880, %v2106
        %v2108 = vpop.f32.mrf.mxu0
        %v2109 = vpop.f32.mrf.mxu0
        %v2110 = vpop.f32.mrf.mxu0
        %2111 = vmatprep.mubr.bf16.mxu0 0
        %2112 = vmatmul.mubr.bf16.gmra.mxu0 %v1447
        %v2113 = vpop.f32.mrf.mxu0
        %v2114 = vadd.f32 %v1887, %v2113
        %v2115 = vpop.f32.mrf.mxu0
        %v2116 = vpop.f32.mrf.mxu0
        %v2117 = vadd.f32 %v1890, %v2116
        %v2118 = vpop.f32.mrf.mxu0
        %2119 = vmatprep.mubr.bf16.mxu0 0
        %2120 = vmatmul.mubr.bf16.gmra.mxu0 %v1447
        %v2121 = vpop.f32.mrf.mxu0
        %v2122 = vpop.f32.mrf.mxu0
        %v2123 = vpop.f32.mrf.mxu0
        %v2124 = vpop.f32.mrf.mxu0
        %2125 = vmatprep.mubr.bf16.mxu0 0
        %2126 = vmatmul.mubr.bf16.gmra.mxu0 %v1449
        %v2127 = vpop.f32.mrf.mxu0
        %v2128 = vpop.f32.mrf.mxu0
        %v2129 = vpop.f32.mrf.mxu0
        %v2130 = vpop.f32.mrf.mxu0
        %2131 = vdwg.mxu0
        %vm2132 = vcmp.ge.f32.partialorder %v1948, 0.0
        %vm2133 = vcmp.ge.f32.partialorder %v1953, 0.0
        %vm2134 = vcmp.ge.f32.partialorder %v1960, 0.0
        %vm2135 = vcmp.ge.f32.partialorder %v1963, 0.0
        %vm2136 = vcmp.ge.f32.partialorder %v1970, 0.0
        %vm2137 = vcmp.ge.f32.partialorder %v1975, 0.0
        %vm2138 = vcmp.ge.f32.partialorder %v1982, 0.0
        %vm2139 = vcmp.ge.f32.partialorder %v1985, 0.0
        %vm2140 = vcmp.ge.f32.partialorder %v1992, 0.0
        %vm2141 = vcmp.ge.f32.partialorder %v1997, 0.0
        %vm2142 = vcmp.ge.f32.partialorder %v2004, 0.0
        %vm2143 = vcmp.ge.f32.partialorder %v2007, 0.0
        %vm2144 = vcmp.ge.f32.partialorder %v2014, 0.0
        %vm2145 = vcmp.ge.f32.partialorder %v2019, 0.0
        %vm2146 = vcmp.ge.f32.partialorder %v2026, 0.0
        %vm2147 = vcmp.ge.f32.partialorder %v2029, 0.0
        %vm2148 = vcmp.ge.f32.partialorder %v2036, 0.0
        %vm2149 = vcmp.ge.f32.partialorder %v2041, 0.0
        %vm2150 = vcmp.ge.f32.partialorder %v2048, 0.0
        %vm2151 = vcmp.ge.f32.partialorder %v2051, 0.0
        %vm2152 = vcmp.ge.f32.partialorder %v2058, 0.0
        %vm2153 = vcmp.ge.f32.partialorder %v2063, 0.0
        %vm2154 = vcmp.ge.f32.partialorder %v2070, 0.0
        %vm2155 = vcmp.ge.f32.partialorder %v2073, 0.0
        %vm2156 = vcmp.ge.f32.partialorder %v2080, 0.0
        %vm2157 = vcmp.ge.f32.partialorder %v2085, 0.0
        %vm2158 = vcmp.ge.f32.partialorder %v2092, 0.0
        %vm2159 = vcmp.ge.f32.partialorder %v2095, 0.0
        %vm2160 = vcmp.ge.f32.partialorder %v2102, 0.0
        %vm2161 = vcmp.ge.f32.partialorder %v2107, 0.0
        %vm2162 = vcmp.ge.f32.partialorder %v2114, 0.0
        %vm2163 = vcmp.ge.f32.partialorder %v2117, 0.0
        %v2164 = vmul.f32 %v1948, 0.2
        %v2165 = vmul.f32 %v1953, 0.2
        %v2166 = vmul.f32 %v1960, 0.2
        %v2167 = vmul.f32 %v1963, 0.2
        %v2168 = vmul.f32 %v1970, 0.2
        %v2169 = vmul.f32 %v1975, 0.2
        %v2170 = vmul.f32 %v1982, 0.2
        %v2171 = vmul.f32 %v1985, 0.2
        %v2172 = vmul.f32 %v1992, 0.2
        %v2173 = vmul.f32 %v1997, 0.2
        %v2174 = vmul.f32 %v2004, 0.2
        %v2175 = vmul.f32 %v2007, 0.2
        %v2176 = vmul.f32 %v2014, 0.2
        %v2177 = vmul.f32 %v2019, 0.2
        %v2178 = vmul.f32 %v2026, 0.2
        %v2179 = vmul.f32 %v2029, 0.2
        %v2180 = vmul.f32 %v2036, 0.2
        %v2181 = vmul.f32 %v2041, 0.2
        %v2182 = vmul.f32 %v2048, 0.2
        %v2183 = vmul.f32 %v2051, 0.2
        %v2184 = vmul.f32 %v2058, 0.2
        %v2185 = vmul.f32 %v2063, 0.2
        %v2186 = vmul.f32 %v2070, 0.2
        %v2187 = vmul.f32 %v2073, 0.2
        %v2188 = vmul.f32 %v2080, 0.2
        %v2189 = vmul.f32 %v2085, 0.2
        %v2190 = vmul.f32 %v2092, 0.2
        %v2191 = vmul.f32 %v2095, 0.2
        %v2192 = vmul.f32 %v2102, 0.2
        %v2193 = vmul.f32 %v2107, 0.2
        %v2194 = vmul.f32 %v2114, 0.2
        %v2195 = vmul.f32 %v2117, 0.2
        %v2196 = vsel %vm2132, %v1948, %v2164
        %v2197 = vsel %vm2133, %v1953, %v2165
        %v2198 = vsel %vm2134, %v1960, %v2166
        %v2199 = vsel %vm2135, %v1963, %v2167
        %v2200 = vsel %vm2136, %v1970, %v2168
        %v2201 = vsel %vm2137, %v1975, %v2169
        %v2202 = vsel %vm2138, %v1982, %v2170
        %v2203 = vsel %vm2139, %v1985, %v2171
        %v2204 = vsel %vm2140, %v1992, %v2172
        %v2205 = vsel %vm2141, %v1997, %v2173
        %v2206 = vsel %vm2142, %v2004, %v2174
        %v2207 = vsel %vm2143, %v2007, %v2175
        %v2208 = vsel %vm2144, %v2014, %v2176
        %v2209 = vsel %vm2145, %v2019, %v2177
        %v2210 = vsel %vm2146, %v2026, %v2178
        %v2211 = vsel %vm2147, %v2029, %v2179
        %v2212 = vsel %vm2148, %v2036, %v2180
        %v2213 = vsel %vm2149, %v2041, %v2181
        %v2214 = vsel %vm2150, %v2048, %v2182
        %v2215 = vsel %vm2151, %v2051, %v2183
        %v2216 = vsel %vm2152, %v2058, %v2184
        %v2217 = vsel %vm2153, %v2063, %v2185
        %v2218 = vsel %vm2154, %v2070, %v2186
        %v2219 = vsel %vm2155, %v2073, %v2187
        %v2220 = vsel %vm2156, %v2080, %v2188
        %v2221 = vsel %vm2157, %v2085, %v2189
        %v2222 = vsel %vm2158, %v2092, %v2190
        %v2223 = vsel %vm2159, %v2095, %v2191
        %v2224 = vsel %vm2160, %v2102, %v2192
        %v2225 = vsel %vm2161, %v2107, %v2193
        %v2226 = vsel %vm2162, %v2114, %v2194
        %v2227 = vsel %vm2163, %v2117, %v2195
        %v2228 = vrot.slane %v2196, 7
        %v2229 = vrot.slane %v2197, 7
        %v2230 = vrot.slane %v2198, 7
        %v2231 = vrot.slane %v2199, 7
        %v2232 = vrot.slane %v2200, 7
        %v2233 = vrot.slane %v2201, 7
        %v2234 = vrot.slane %v2202, 7
        %v2235 = vrot.slane %v2203, 7
        %v2236 = vrot.slane %v2204, 7
        %v2237 = vrot.slane %v2205, 7
        %v2238 = vrot.slane %v2206, 7
        %v2239 = vrot.slane %v2207, 7
        %v2240 = vrot.slane %v2208, 7
        %v2241 = vrot.slane %v2209, 7
        %v2242 = vrot.slane %v2210, 7
        %v2243 = vrot.slane %v2211, 7
        %v2244 = vrot.slane %v2212, 7
        %v2245 = vrot.slane %v2213, 7
        %v2246 = vrot.slane %v2214, 7
        %v2247 = vrot.slane %v2215, 7
        %v2248 = vrot.slane %v2216, 7
        %v2249 = vrot.slane %v2217, 7
        %v2250 = vrot.slane %v2218, 7
        %v2251 = vrot.slane %v2219, 7
        %v2252 = vrot.slane %v2220, 7
        %v2253 = vrot.slane %v2221, 7
        %v2254 = vrot.slane %v2222, 7
        %v2255 = vrot.slane %v2223, 7
        %v2256 = vrot.slane %v2224, 7
        %v2257 = vrot.slane %v2225, 7
        %v2258 = vrot.slane %v2226, 7
        %v2259 = vrot.slane %v2227, 7
        %v2260 = vsel %vm290, %v2259, 0.0
        %v2261 = vsel %vm290, %v2258, %v2259
        %v2262 = vsel %vm290, 0.0, %v2258
        %v2263 = vsel %vm290, %v2257, 0.0
        %v2264 = vsel %vm290, %v2256, %v2257
        %v2265 = vsel %vm290, 0.0, %v2256
        %v2266 = vsel %vm290, %v2255, 0.0
        %v2267 = vsel %vm290, %v2254, %v2255
        %v2268 = vsel %vm290, 0.0, %v2254
        %v2269 = vsel %vm290, %v2253, 0.0
        %v2270 = vsel %vm290, %v2252, %v2253
        %v2271 = vsel %vm290, 0.0, %v2252
        %v2272 = vsel %vm290, %v2251, 0.0
        %v2273 = vsel %vm290, %v2250, %v2251
        %v2274 = vsel %vm290, 0.0, %v2250
        %v2275 = vsel %vm290, %v2249, 0.0
        %v2276 = vsel %vm290, %v2248, %v2249
        %v2277 = vsel %vm290, 0.0, %v2248
        %v2278 = vsel %vm290, %v2247, 0.0
        %v2279 = vsel %vm290, %v2246, %v2247
        %v2280 = vsel %vm290, 0.0, %v2246
        %v2281 = vsel %vm290, %v2245, 0.0
        %v2282 = vsel %vm290, %v2244, %v2245
        %v2283 = vsel %vm290, 0.0, %v2244
        %v2284 = vsel %vm290, %v2243, 0.0
        %v2285 = vsel %vm290, %v2242, %v2243
        %v2286 = vsel %vm290, 0.0, %v2242
        %v2287 = vsel %vm290, %v2241, 0.0
        %v2288 = vsel %vm290, %v2240, %v2241
        %v2289 = vsel %vm290, 0.0, %v2240
        %v2290 = vsel %vm290, %v2239, 0.0
        %v2291 = vsel %vm290, %v2238, %v2239
        %v2292 = vsel %vm290, 0.0, %v2238
        %v2293 = vsel %vm290, %v2237, 0.0
        %v2294 = vsel %vm290, %v2236, %v2237
        %v2295 = vsel %vm290, 0.0, %v2236
        %v2296 = vsel %vm290, %v2235, 0.0
        %v2297 = vsel %vm290, %v2234, %v2235
        %v2298 = vsel %vm290, 0.0, %v2234
        %v2299 = vsel %vm290, %v2233, 0.0
        %v2300 = vsel %vm290, %v2232, %v2233
        %v2301 = vsel %vm290, 0.0, %v2232
        %v2302 = vsel %vm290, %v2231, 0.0
        %v2303 = vsel %vm290, %v2230, %v2231
        %v2304 = vsel %vm290, 0.0, %v2230
        %v2305 = vsel %vm290, %v2229, 0.0
        %v2306 = vsel %vm290, %v2228, %v2229
        %v2307 = vsel %vm290, 0.0, %v2228
        %v2308 = vpack.c.bf16 %v2306, %v2307
        %v2309 = vpack.c.bf16 %v2304, %v2305
        %v2310 = vpack.c.bf16 %v2302, %v2303
        %v2311 = vpack.c.bf16 %v2300, %v2301
        %v2312 = vpack.c.bf16 %v2298, %v2299
        %v2313 = vpack.c.bf16 %v2296, %v2297
        %v2314 = vpack.c.bf16 %v2294, %v2295
        %v2315 = vpack.c.bf16 %v2292, %v2293
        %v2316 = vpack.c.bf16 %v2290, %v2291
        %v2317 = vpack.c.bf16 %v2288, %v2289
        %v2318 = vpack.c.bf16 %v2286, %v2287
        %v2319 = vpack.c.bf16 %v2284, %v2285
        %v2320 = vpack.c.bf16 %v2282, %v2283
        %v2321 = vpack.c.bf16 %v2280, %v2281
        %v2322 = vpack.c.bf16 %v2278, %v2279
        %v2323 = vpack.c.bf16 %v2276, %v2277
        %v2324 = vpack.c.bf16 %v2274, %v2275
        %v2325 = vpack.c.bf16 %v2272, %v2273
        %v2326 = vpack.c.bf16 %v2270, %v2271
        %v2327 = vpack.c.bf16 %v2268, %v2269
        %v2328 = vpack.c.bf16 %v2266, %v2267
        %v2329 = vpack.c.bf16 %v2264, %v2265
        %v2330 = vpack.c.bf16 %v2262, %v2263
        %v2331 = vpack.c.bf16 %v2260, %v2261
        %v2332 = vpack.c.bf16 %v2197, %v2196
        %v2333 = vpack.c.bf16 %v2198, 0.0
        %v2334 = vpack.c.bf16 0.0, %v2199
        %v2335 = vpack.c.bf16 %v2201, %v2200
        %v2336 = vpack.c.bf16 %v2202, 0.0
        %v2337 = vpack.c.bf16 0.0, %v2203
        %v2338 = vpack.c.bf16 %v2205, %v2204
        %v2339 = vpack.c.bf16 %v2206, 0.0
        %v2340 = vpack.c.bf16 0.0, %v2207
        %v2341 = vpack.c.bf16 %v2209, %v2208
        %v2342 = vpack.c.bf16 %v2210, 0.0
        %v2343 = vpack.c.bf16 0.0, %v2211
        %v2344 = vpack.c.bf16 %v2213, %v2212
        %v2345 = vpack.c.bf16 %v2214, 0.0
        %v2346 = vpack.c.bf16 0.0, %v2215
        %v2347 = vpack.c.bf16 %v2217, %v2216
        %v2348 = vpack.c.bf16 %v2218, 0.0
        %v2349 = vpack.c.bf16 0.0, %v2219
        %v2350 = vpack.c.bf16 %v2221, %v2220
        %v2351 = vpack.c.bf16 %v2222, 0.0
        %v2352 = vpack.c.bf16 0.0, %v2223
        %v2353 = vpack.c.bf16 %v2225, %v2224
        %v2354 = vpack.c.bf16 %v2226, 0.0
        %v2355 = vpack.c.bf16 0.0, %v2227
        %v2356 = vrot.slane %v2196, 1
        %v2357 = vrot.slane %v2197, 1
        %v2358 = vrot.slane %v2198, 1
        %v2359 = vrot.slane %v2199, 1
        %v2360 = vrot.slane %v2200, 1
        %v2361 = vrot.slane %v2201, 1
        %v2362 = vrot.slane %v2202, 1
        %v2363 = vrot.slane %v2203, 1
        %v2364 = vrot.slane %v2204, 1
        %v2365 = vrot.slane %v2205, 1
        %v2366 = vrot.slane %v2206, 1
        %v2367 = vrot.slane %v2207, 1
        %v2368 = vrot.slane %v2208, 1
        %v2369 = vrot.slane %v2209, 1
        %v2370 = vrot.slane %v2210, 1
        %v2371 = vrot.slane %v2211, 1
        %v2372 = vrot.slane %v2212, 1
        %v2373 = vrot.slane %v2213, 1
        %v2374 = vrot.slane %v2214, 1
        %v2375 = vrot.slane %v2215, 1
        %v2376 = vrot.slane %v2216, 1
        %v2377 = vrot.slane %v2217, 1
        %v2378 = vrot.slane %v2218, 1
        %v2379 = vrot.slane %v2219, 1
        %v2380 = vrot.slane %v2220, 1
        %v2381 = vrot.slane %v2221, 1
        %v2382 = vrot.slane %v2222, 1
        %v2383 = vrot.slane %v2223, 1
        %v2384 = vrot.slane %v2224, 1
        %v2385 = vrot.slane %v2225, 1
        %v2386 = vrot.slane %v2226, 1
        %v2387 = vrot.slane %v2227, 1
        %v2388 = vsel %vm421, %v2387, 0.0
        %v2389 = vsel %vm421, %v2386, %v2387
        %v2390 = vsel %vm421, 0.0, %v2386
        %v2391 = vsel %vm421, %v2385, 0.0
        %v2392 = vsel %vm421, %v2384, %v2385
        %v2393 = vsel %vm421, 0.0, %v2384
        %v2394 = vsel %vm421, %v2383, 0.0
        %v2395 = vsel %vm421, %v2382, %v2383
        %v2396 = vsel %vm421, 0.0, %v2382
        %v2397 = vsel %vm421, %v2381, 0.0
        %v2398 = vsel %vm421, %v2380, %v2381
        %v2399 = vsel %vm421, 0.0, %v2380
        %v2400 = vsel %vm421, %v2379, 0.0
        %v2401 = vsel %vm421, %v2378, %v2379
        %v2402 = vsel %vm421, 0.0, %v2378
        %v2403 = vsel %vm421, %v2377, 0.0
        %v2404 = vsel %vm421, %v2376, %v2377
        %v2405 = vsel %vm421, 0.0, %v2376
        %v2406 = vsel %vm421, %v2375, 0.0
        %v2407 = vsel %vm421, %v2374, %v2375
        %v2408 = vsel %vm421, 0.0, %v2374
        %v2409 = vsel %vm421, %v2373, 0.0
        %v2410 = vsel %vm421, %v2372, %v2373
        %v2411 = vsel %vm421, 0.0, %v2372
        %v2412 = vsel %vm421, %v2371, 0.0
        %v2413 = vsel %vm421, %v2370, %v2371
        %v2414 = vsel %vm421, 0.0, %v2370
        %v2415 = vsel %vm421, %v2369, 0.0
        %v2416 = vsel %vm421, %v2368, %v2369
        %v2417 = vsel %vm421, 0.0, %v2368
        %v2418 = vsel %vm421, %v2367, 0.0
        %v2419 = vsel %vm421, %v2366, %v2367
        %v2420 = vsel %vm421, 0.0, %v2366
        %v2421 = vsel %vm421, %v2365, 0.0
        %v2422 = vsel %vm421, %v2364, %v2365
        %v2423 = vsel %vm421, 0.0, %v2364
        %v2424 = vsel %vm421, %v2363, 0.0
        %v2425 = vsel %vm421, %v2362, %v2363
        %v2426 = vsel %vm421, 0.0, %v2362
        %v2427 = vsel %vm421, %v2361, 0.0
        %v2428 = vsel %vm421, %v2360, %v2361
        %v2429 = vsel %vm421, 0.0, %v2360
        %v2430 = vsel %vm421, %v2359, 0.0
        %v2431 = vsel %vm421, %v2358, %v2359
        %v2432 = vsel %vm421, 0.0, %v2358
        %v2433 = vsel %vm421, %v2357, 0.0
        %v2434 = vsel %vm421, %v2356, %v2357
        %v2435 = vsel %vm421, 0.0, %v2356
        %v2436 = vpack.c.bf16 %v2435, 0.0
        %v2437 = vpack.c.bf16 %v2433, %v2434
        %v2438 = vpack.c.bf16 %v2431, %v2432
        %v2439 = vpack.c.bf16 %v2429, %v2430
        %v2440 = vpack.c.bf16 %v2427, %v2428
        %v2441 = vpack.c.bf16 %v2425, %v2426
        %v2442 = vpack.c.bf16 %v2423, %v2424
        %v2443 = vpack.c.bf16 %v2421, %v2422
        %v2444 = vpack.c.bf16 %v2419, %v2420
        %v2445 = vpack.c.bf16 %v2417, %v2418
        %v2446 = vpack.c.bf16 %v2415, %v2416
        %v2447 = vpack.c.bf16 %v2413, %v2414
        %v2448 = vpack.c.bf16 %v2411, %v2412
        %v2449 = vpack.c.bf16 %v2409, %v2410
        %v2450 = vpack.c.bf16 %v2407, %v2408
        %v2451 = vpack.c.bf16 %v2405, %v2406
        %v2452 = vpack.c.bf16 %v2403, %v2404
        %v2453 = vpack.c.bf16 %v2401, %v2402
        %v2454 = vpack.c.bf16 %v2399, %v2400
        %v2455 = vpack.c.bf16 %v2397, %v2398
        %v2456 = vpack.c.bf16 %v2395, %v2396
        %v2457 = vpack.c.bf16 %v2393, %v2394
        %v2458 = vpack.c.bf16 %v2391, %v2392
        %v2459 = vpack.c.bf16 %v2389, %v2390
        %v2460 = vpack.c.bf16 0.0, %v2388
        %v2461 = vpack.c.bf16 %v2307, 0.0
        %v2462 = vpack.c.bf16 %v2305, %v2306
        %v2463 = vpack.c.bf16 %v2303, %v2304
        %v2464 = vpack.c.bf16 %v2301, %v2302
        %v2465 = vpack.c.bf16 %v2299, %v2300
        %v2466 = vpack.c.bf16 %v2297, %v2298
        %v2467 = vpack.c.bf16 %v2295, %v2296
        %v2468 = vpack.c.bf16 %v2293, %v2294
        %v2469 = vpack.c.bf16 %v2291, %v2292
        %v2470 = vpack.c.bf16 %v2289, %v2290
        %v2471 = vpack.c.bf16 %v2287, %v2288
        %v2472 = vpack.c.bf16 %v2285, %v2286
        %v2473 = vpack.c.bf16 %v2283, %v2284
        %v2474 = vpack.c.bf16 %v2281, %v2282
        %v2475 = vpack.c.bf16 %v2279, %v2280
        %v2476 = vpack.c.bf16 %v2277, %v2278
        %v2477 = vpack.c.bf16 %v2275, %v2276
        %v2478 = vpack.c.bf16 %v2273, %v2274
        %v2479 = vpack.c.bf16 %v2271, %v2272
        %v2480 = vpack.c.bf16 %v2269, %v2270
        %v2481 = vpack.c.bf16 %v2267, %v2268
        %v2482 = vpack.c.bf16 %v2265, %v2266
        %v2483 = vpack.c.bf16 %v2263, %v2264
        %v2484 = vpack.c.bf16 %v2261, %v2262
        %v2485 = vpack.c.bf16 0.0, %v2260
        %v2486 = vpack.c.bf16 %v2196, 0.0
        %v2487 = vpack.c.bf16 0.0, %v2197
        %v2488 = vpack.c.bf16 %v2199, %v2198
        %v2489 = vpack.c.bf16 %v2200, 0.0
        %v2490 = vpack.c.bf16 0.0, %v2201
        %v2491 = vpack.c.bf16 %v2203, %v2202
        %v2492 = vpack.c.bf16 %v2204, 0.0
        %v2493 = vpack.c.bf16 0.0, %v2205
        %v2494 = vpack.c.bf16 %v2207, %v2206
        %v2495 = vpack.c.bf16 %v2208, 0.0
        %v2496 = vpack.c.bf16 0.0, %v2209
        %v2497 = vpack.c.bf16 %v2211, %v2210
        %v2498 = vpack.c.bf16 %v2212, 0.0
        %v2499 = vpack.c.bf16 0.0, %v2213
        %v2500 = vpack.c.bf16 %v2215, %v2214
        %v2501 = vpack.c.bf16 %v2216, 0.0
        %v2502 = vpack.c.bf16 0.0, %v2217
        %v2503 = vpack.c.bf16 %v2219, %v2218
        %v2504 = vpack.c.bf16 %v2220, 0.0
        %v2505 = vpack.c.bf16 0.0, %v2221
        %v2506 = vpack.c.bf16 %v2223, %v2222
        %v2507 = vpack.c.bf16 %v2224, 0.0
        %v2508 = vpack.c.bf16 0.0, %v2225
        %v2509 = vpack.c.bf16 %v2227, %v2226
        %v2510 = vpack.c.bf16 %v2434, %v2435
        %v2511 = vpack.c.bf16 %v2432, %v2433
        %v2512 = vpack.c.bf16 %v2430, %v2431
        %v2513 = vpack.c.bf16 %v2428, %v2429
        %v2514 = vpack.c.bf16 %v2426, %v2427
        %v2515 = vpack.c.bf16 %v2424, %v2425
        %v2516 = vpack.c.bf16 %v2422, %v2423
        %v2517 = vpack.c.bf16 %v2420, %v2421
        %v2518 = vpack.c.bf16 %v2418, %v2419
        %v2519 = vpack.c.bf16 %v2416, %v2417
        %v2520 = vpack.c.bf16 %v2414, %v2415
        %v2521 = vpack.c.bf16 %v2412, %v2413
        %v2522 = vpack.c.bf16 %v2410, %v2411
        %v2523 = vpack.c.bf16 %v2408, %v2409
        %v2524 = vpack.c.bf16 %v2406, %v2407
        %v2525 = vpack.c.bf16 %v2404, %v2405
        %v2526 = vpack.c.bf16 %v2402, %v2403
        %v2527 = vpack.c.bf16 %v2400, %v2401
        %v2528 = vpack.c.bf16 %v2398, %v2399
        %v2529 = vpack.c.bf16 %v2396, %v2397
        %v2530 = vpack.c.bf16 %v2394, %v2395
        %v2531 = vpack.c.bf16 %v2392, %v2393
        %v2532 = vpack.c.bf16 %v2390, %v2391
        %v2533 = vpack.c.bf16 %v2388, %v2389
        %2558 = vrot.lane.b32.xlu0 %v2332, 64
        %v2559 = vpop.permute.xlu0 %2558
        %2560 = vrot.lane.b32.xlu0 %v2333, 64
        %v2561 = vpop.permute.xlu0 %2560
        %2562 = vrot.lane.b32.xlu0 %v2334, 64
        %v2563 = vpop.permute.xlu0 %2562
        %2564 = vrot.lane.b32.xlu0 %v2335, 64
        %v2565 = vpop.permute.xlu0 %2564
        %2566 = vrot.lane.b32.xlu0 %v2336, 64
        %v2567 = vpop.permute.xlu0 %2566
        %2568 = vrot.lane.b32.xlu0 %v2337, 64
        %v2569 = vpop.permute.xlu0 %2568
        %2570 = vrot.lane.b32.xlu0 %v2338, 64
        %v2571 = vpop.permute.xlu0 %2570
        %2572 = vrot.lane.b32.xlu0 %v2339, 64
        %v2573 = vpop.permute.xlu0 %2572
        %2574 = vrot.lane.b32.xlu0 %v2340, 64
        %v2575 = vpop.permute.xlu0 %2574
        %2576 = vrot.lane.b32.xlu0 %v2341, 64
        %v2577 = vpop.permute.xlu0 %2576
        %2578 = vrot.lane.b32.xlu0 %v2342, 64
        %v2579 = vpop.permute.xlu0 %2578
        %2580 = vrot.lane.b32.xlu0 %v2343, 64
        %v2581 = vpop.permute.xlu0 %2580
        %2582 = vrot.lane.b32.xlu0 %v2344, 64
        %v2583 = vpop.permute.xlu0 %2582
        %2584 = vrot.lane.b32.xlu0 %v2345, 64
        %v2585 = vpop.permute.xlu0 %2584
        %2586 = vrot.lane.b32.xlu0 %v2346, 64
        %v2587 = vpop.permute.xlu0 %2586
        %2588 = vrot.lane.b32.xlu0 %v2347, 64
        %v2589 = vpop.permute.xlu0 %2588
        %2590 = vrot.lane.b32.xlu0 %v2348, 64
        %v2591 = vpop.permute.xlu0 %2590
        %2592 = vrot.lane.b32.xlu0 %v2349, 64
        %v2593 = vpop.permute.xlu0 %2592
        %2594 = vrot.lane.b32.xlu0 %v2350, 64
        %v2595 = vpop.permute.xlu0 %2594
        %2596 = vrot.lane.b32.xlu0 %v2351, 64
        %v2597 = vpop.permute.xlu0 %2596
        %2598 = vrot.lane.b32.xlu0 %v2352, 64
        %v2599 = vpop.permute.xlu0 %2598
        %2600 = vrot.lane.b32.xlu0 %v2353, 64
        %v2601 = vpop.permute.xlu0 %2600
        %2602 = vrot.lane.b32.xlu0 %v2354, 64
        %v2603 = vpop.permute.xlu0 %2602
        %2604 = vrot.lane.b32.xlu0 %v2355, 64
        %v2605 = vpop.permute.xlu0 %2604
        %2631 = vrot.lane.b32.xlu0 %v2461, 64
        %v2632 = vpop.permute.xlu0 %2631
        %2633 = vrot.lane.b32.xlu0 %v2462, 64
        %v2634 = vpop.permute.xlu0 %2633
        %2635 = vrot.lane.b32.xlu0 %v2463, 64
        %v2636 = vpop.permute.xlu0 %2635
        %2637 = vrot.lane.b32.xlu0 %v2464, 64
        %v2638 = vpop.permute.xlu0 %2637
        %2639 = vrot.lane.b32.xlu0 %v2465, 64
        %v2640 = vpop.permute.xlu0 %2639
        %2641 = vrot.lane.b32.xlu0 %v2466, 64
        %v2642 = vpop.permute.xlu0 %2641
        %2643 = vrot.lane.b32.xlu0 %v2467, 64
        %v2644 = vpop.permute.xlu0 %2643
        %2645 = vrot.lane.b32.xlu0 %v2468, 64
        %v2646 = vpop.permute.xlu0 %2645
        %2647 = vrot.lane.b32.xlu0 %v2469, 64
        %v2648 = vpop.permute.xlu0 %2647
        %2649 = vrot.lane.b32.xlu0 %v2470, 64
        %v2650 = vpop.permute.xlu0 %2649
        %2651 = vrot.lane.b32.xlu0 %v2471, 64
        %v2652 = vpop.permute.xlu0 %2651
        %2653 = vrot.lane.b32.xlu0 %v2472, 64
        %v2654 = vpop.permute.xlu0 %2653
        %2655 = vrot.lane.b32.xlu0 %v2473, 64
        %v2656 = vpop.permute.xlu0 %2655
        %2657 = vrot.lane.b32.xlu0 %v2474, 64
        %v2658 = vpop.permute.xlu0 %2657
        %2659 = vrot.lane.b32.xlu0 %v2475, 64
        %v2660 = vpop.permute.xlu0 %2659
        %2661 = vrot.lane.b32.xlu0 %v2476, 64
        %v2662 = vpop.permute.xlu0 %2661
        %2663 = vrot.lane.b32.xlu0 %v2477, 64
        %v2664 = vpop.permute.xlu0 %2663
        %2665 = vrot.lane.b32.xlu0 %v2478, 64
        %v2666 = vpop.permute.xlu0 %2665
        %2667 = vrot.lane.b32.xlu0 %v2479, 64
        %v2668 = vpop.permute.xlu0 %2667
        %2669 = vrot.lane.b32.xlu0 %v2480, 64
        %v2670 = vpop.permute.xlu0 %2669
        %2671 = vrot.lane.b32.xlu0 %v2481, 64
        %v2672 = vpop.permute.xlu0 %2671
        %2673 = vrot.lane.b32.xlu0 %v2482, 64
        %v2674 = vpop.permute.xlu0 %2673
        %2675 = vrot.lane.b32.xlu0 %v2483, 64
        %v2676 = vpop.permute.xlu0 %2675
        %2677 = vrot.lane.b32.xlu0 %v2484, 64
        %v2678 = vpop.permute.xlu0 %2677
        %2679 = vrot.lane.b32.xlu0 %v2485, 64
        %v2680 = vpop.permute.xlu0 %2679
        %2705 = vrot.lane.b32.xlu0 %v2510, 64
        %v2706 = vpop.permute.xlu0 %2705
        %2707 = vrot.lane.b32.xlu0 %v2511, 64
        %v2708 = vpop.permute.xlu0 %2707
        %2709 = vrot.lane.b32.xlu0 %v2512, 64
        %v2710 = vpop.permute.xlu0 %2709
        %2711 = vrot.lane.b32.xlu0 %v2513, 64
        %v2712 = vpop.permute.xlu0 %2711
        %2713 = vrot.lane.b32.xlu0 %v2514, 64
        %v2714 = vpop.permute.xlu0 %2713
        %2715 = vrot.lane.b32.xlu0 %v2515, 64
        %v2716 = vpop.permute.xlu0 %2715
        %2717 = vrot.lane.b32.xlu0 %v2516, 64
        %v2718 = vpop.permute.xlu0 %2717
        %2719 = vrot.lane.b32.xlu0 %v2517, 64
        %v2720 = vpop.permute.xlu0 %2719
        %2721 = vrot.lane.b32.xlu0 %v2518, 64
        %v2722 = vpop.permute.xlu0 %2721
        %2723 = vrot.lane.b32.xlu0 %v2519, 64
        %v2724 = vpop.permute.xlu0 %2723
        %2725 = vrot.lane.b32.xlu0 %v2520, 64
        %v2726 = vpop.permute.xlu0 %2725
        %2727 = vrot.lane.b32.xlu0 %v2521, 64
        %v2728 = vpop.permute.xlu0 %2727
        %2729 = vrot.lane.b32.xlu0 %v2522, 64
        %v2730 = vpop.permute.xlu0 %2729
        %2731 = vrot.lane.b32.xlu0 %v2523, 64
        %v2732 = vpop.permute.xlu0 %2731
        %2733 = vrot.lane.b32.xlu0 %v2524, 64
        %v2734 = vpop.permute.xlu0 %2733
        %2735 = vrot.lane.b32.xlu0 %v2525, 64
        %v2736 = vpop.permute.xlu0 %2735
        %2737 = vrot.lane.b32.xlu0 %v2526, 64
        %v2738 = vpop.permute.xlu0 %2737
        %2739 = vrot.lane.b32.xlu0 %v2527, 64
        %v2740 = vpop.permute.xlu0 %2739
        %2741 = vrot.lane.b32.xlu0 %v2528, 64
        %v2742 = vpop.permute.xlu0 %2741
        %2743 = vrot.lane.b32.xlu0 %v2529, 64
        %v2744 = vpop.permute.xlu0 %2743
        %2745 = vrot.lane.b32.xlu0 %v2530, 64
        %v2746 = vpop.permute.xlu0 %2745
        %2747 = vrot.lane.b32.xlu0 %v2531, 64
        %v2748 = vpop.permute.xlu0 %2747
        %2749 = vrot.lane.b32.xlu0 %v2532, 64
        %v2750 = vpop.permute.xlu0 %2749
        %2751 = vrot.lane.b32.xlu0 %v2533, 64
        %v2752 = vpop.permute.xlu0 %2751
        %v2755 = vsel %vm797, %v2308, %v2559
        %v2759 = vsel %vm797, %v2309, %v2561
        %v2763 = vsel %vm797, %v2310, %v2563
        %v2767 = vsel %vm797, %v2311, %v2565
        %v2771 = vsel %vm797, %v2312, %v2567
        %v2775 = vsel %vm797, %v2313, %v2569
        %v2779 = vsel %vm797, %v2314, %v2571
        %v2783 = vsel %vm797, %v2315, %v2573
        %v2787 = vsel %vm797, %v2316, %v2575
        %v2791 = vsel %vm797, %v2317, %v2577
        %v2795 = vsel %vm797, %v2318, %v2579
        %v2799 = vsel %vm797, %v2319, %v2581
        %v2803 = vsel %vm797, %v2320, %v2583
        %v2807 = vsel %vm797, %v2321, %v2585
        %v2811 = vsel %vm797, %v2322, %v2587
        %v2815 = vsel %vm797, %v2323, %v2589
        %v2819 = vsel %vm797, %v2324, %v2591
        %v2823 = vsel %vm797, %v2325, %v2593
        %v2827 = vsel %vm797, %v2326, %v2595
        %v2831 = vsel %vm797, %v2327, %v2597
        %v2835 = vsel %vm797, %v2328, %v2599
        %v2839 = vsel %vm797, %v2329, %v2601
        %v2843 = vsel %vm797, %v2330, %v2603
        %v2847 = vsel %vm797, %v2331, %v2605
        %v2850 = vsel %vm797, %v470, %v2632
        %v2854 = vsel %vm797, %v2436, %v2634
        %v2858 = vsel %vm797, %v2437, %v2636
        %v2862 = vsel %vm797, %v2438, %v2638
        %v2866 = vsel %vm797, %v2439, %v2640
        %v2870 = vsel %vm797, %v2440, %v2642
        %v2874 = vsel %vm797, %v2441, %v2644
        %v2878 = vsel %vm797, %v2442, %v2646
        %v2882 = vsel %vm797, %v2443, %v2648
        %v2886 = vsel %vm797, %v2444, %v2650
        %v2890 = vsel %vm797, %v2445, %v2652
        %v2894 = vsel %vm797, %v2446, %v2654
        %v2898 = vsel %vm797, %v2447, %v2656
        %v2902 = vsel %vm797, %v2448, %v2658
        %v2906 = vsel %vm797, %v2449, %v2660
        %v2910 = vsel %vm797, %v2450, %v2662
        %v2914 = vsel %vm797, %v2451, %v2664
        %v2918 = vsel %vm797, %v2452, %v2666
        %v2922 = vsel %vm797, %v2453, %v2668
        %v2926 = vsel %vm797, %v2454, %v2670
        %v2930 = vsel %vm797, %v2455, %v2672
        %v2934 = vsel %vm797, %v2456, %v2674
        %v2938 = vsel %vm797, %v2457, %v2676
        %v2942 = vsel %vm797, %v2458, %v2678
        %v2946 = vsel %vm797, %v2459, %v2680
        %v2949 = vsel %vm797, %v2460, %v671
        %v2953 = vsel %vm797, %v2486, %v2706
        %v2957 = vsel %vm797, %v2487, %v2708
        %v2961 = vsel %vm797, %v2488, %v2710
        %v2965 = vsel %vm797, %v2489, %v2712
        %v2969 = vsel %vm797, %v2490, %v2714
        %v2973 = vsel %vm797, %v2491, %v2716
        %v2977 = vsel %vm797, %v2492, %v2718
        %v2981 = vsel %vm797, %v2493, %v2720
        %v2985 = vsel %vm797, %v2494, %v2722
        %v2989 = vsel %vm797, %v2495, %v2724
        %v2993 = vsel %vm797, %v2496, %v2726
        %v2997 = vsel %vm797, %v2497, %v2728
        %v3001 = vsel %vm797, %v2498, %v2730
        %v3005 = vsel %vm797, %v2499, %v2732
        %v3009 = vsel %vm797, %v2500, %v2734
        %v3013 = vsel %vm797, %v2501, %v2736
        %v3017 = vsel %vm797, %v2502, %v2738
        %v3021 = vsel %vm797, %v2503, %v2740
        %v3025 = vsel %vm797, %v2504, %v2742
        %v3029 = vsel %vm797, %v2505, %v2744
        %v3033 = vsel %vm797, %v2506, %v2746
        %v3037 = vsel %vm797, %v2507, %v2748
        %v3041 = vsel %vm797, %v2508, %v2750
        %v3045 = vsel %vm797, %v2509, %v2752
        %v3047 = vld [vmem:[%s2] sm:$0xf]
        %v3048 = vld [vmem:[%s2 + $0x4] sm:$0xf]
        %v3049 = vld [vmem:[%s2 + $0x8] sm:$0xf]
        %v3050 = vld [vmem:[%s2 + $0xc] sm:$0xf]
        %v3051 = vld [vmem:[%s2 + $0x10] sm:$0xf]
        %v3052 = vld [vmem:[%s2 + $0x14] sm:$0xf]
        %v3053 = vld [vmem:[%s2 + $0x18] sm:$0xf]
        %v3054 = vld [vmem:[%s2 + $0x1c] sm:$0xf]
        %v3055 = vld [vmem:[%s2 + $0x20] sm:$0xf]
        %v3056 = vld [vmem:[%s2 + $0x24] sm:$0xf]
        %v3057 = vld [vmem:[%s2 + $0x28] sm:$0xf]
        %v3058 = vld [vmem:[%s2 + $0x2c] sm:$0xf]
        %v3059 = vld [vmem:[%s2 + $0x30] sm:$0xf]
        %v3060 = vld [vmem:[%s2 + $0x34] sm:$0xf]
        %v3061 = vld [vmem:[%s2 + $0x38] sm:$0xf]
        %v3062 = vld [vmem:[%s2 + $0x3c] sm:$0xf]
        %v3063 = vld [vmem:[%s2 + $0x40] sm:$0xf]
        %v3064 = vld [vmem:[%s2 + $0x44] sm:$0xf]
        %v3065 = vld [vmem:[%s2 + $0x48] sm:$0xf]
        %v3066 = vld [vmem:[%s2 + $0x4c] sm:$0xf]
        %v3067 = vld [vmem:[%s2 + $0x50] sm:$0xf]
        %v3068 = vld [vmem:[%s2 + $0x54] sm:$0xf]
        %v3069 = vld [vmem:[%s2 + $0x58] sm:$0xf]
        %v3070 = vld [vmem:[%s2 + $0x5c] sm:$0xf]
        %v3071 = vld [vmem:[%s2 + $0x60] sm:$0xf]
        %v3072 = vld [vmem:[%s2 + $0x64] sm:$0xf]
        %v3073 = vld [vmem:[%s2 + $0x68] sm:$0xf]
        %v3074 = vld [vmem:[%s2 + $0x6c] sm:$0xf]
        %v3075 = vld [vmem:[%s2 + $0x70] sm:$0xf]
        %v3076 = vld [vmem:[%s2 + $0x74] sm:$0xf]
        %v3077 = vld [vmem:[%s2 + $0x78] sm:$0xf]
        %v3078 = vld [vmem:[%s2 + $0x7c] sm:$0xf]
        %v3079 = vld [vmem:[%s2 + $0x80] sm:$0xf]
        %v3080 = vld [vmem:[%s2 + $0x84] sm:$0xf]
        %v3081 = vld [vmem:[%s2 + $0x88] sm:$0xf]
        %v3082 = vld [vmem:[%s2 + $0x8c] sm:$0xf]
        %v3083 = vld [vmem:[%s2 + $0x90] sm:$0xf]
        %v3084 = vld [vmem:[%s2 + $0x94] sm:$0xf]
        %v3085 = vld [vmem:[%s2 + $0x98] sm:$0xf]
        %v3086 = vld [vmem:[%s2 + $0x9c] sm:$0xf]
        %v3087 = vld [vmem:[%s2 + $0xa0] sm:$0xf]
        %v3088 = vld [vmem:[%s2 + $0xa4] sm:$0xf]
        %v3089 = vld [vmem:[%s2 + $0xa8] sm:$0xf]
        %v3090 = vld [vmem:[%s2 + $0xac] sm:$0xf]
        %v3091 = vld [vmem:[%s2 + $0xb0] sm:$0xf]
        %v3092 = vld [vmem:[%s2 + $0xb4] sm:$0xf]
        %v3093 = vld [vmem:[%s2 + $0xb8] sm:$0xf]
        %v3094 = vld [vmem:[%s2 + $0xbc] sm:$0xf]
        %v3095 = vld [vmem:[%s2 + $0xc0] sm:$0xf]
        %v3096 = vld [vmem:[%s2 + $0xc4] sm:$0xf]
        %v3097 = vld [vmem:[%s2 + $0xc8] sm:$0xf]
        %v3098 = vld [vmem:[%s2 + $0xcc] sm:$0xf]
        %v3099 = vld [vmem:[%s2 + $0xd0] sm:$0xf]
        %v3100 = vld [vmem:[%s2 + $0xd4] sm:$0xf]
        %v3101 = vld [vmem:[%s2 + $0xd8] sm:$0xf]
        %v3102 = vld [vmem:[%s2 + $0xdc] sm:$0xf]
        %v3103 = vld [vmem:[%s2 + $0xe0] sm:$0xf]
        %v3104 = vld [vmem:[%s2 + $0xe4] sm:$0xf]
        %v3105 = vld [vmem:[%s2 + $0xe8] sm:$0xf]
        %v3106 = vld [vmem:[%s2 + $0xec] sm:$0xf]
        %v3107 = vld [vmem:[%s2 + $0xf0] sm:$0xf]
        %v3108 = vld [vmem:[%s2 + $0xf4] sm:$0xf]
        %v3109 = vld [vmem:[%s2 + $0xf8] sm:$0xf]
        %v3110 = vld [vmem:[%s2 + $0xfc] sm:$0xf]
        %v3111 = vld [vmem:[%s2 + $0x100] sm:$0xf]
        %v3112 = vld [vmem:[%s2 + $0x104] sm:$0xf]
        %v3113 = vld [vmem:[%s2 + $0x108] sm:$0xf]
        %v3114 = vld [vmem:[%s2 + $0x10c] sm:$0xf]
        %v3115 = vld [vmem:[%s2 + $0x110] sm:$0xf]
        %v3116 = vld [vmem:[%s2 + $0x114] sm:$0xf]
        %v3117 = vld [vmem:[%s2 + $0x118] sm:$0xf]
        %v3118 = vld [vmem:[%s2 + $0x11c] sm:$0xf]
        %v3119 = vld [vmem:[%s4] sm:$0x1]
        %v3121 = vlaneseq
        %v3122 = vshrl.u32 %v3121, 7
        %v3123 = vsub.s32 0, %v3122
        %v3124 = vrot.slane %v3119, %v3123
        %v3198 = vunpack.c.l.b16 %v3047
        %v3199 = vunpack.c.l.b16 %v3048
        %v3200 = vunpack.c.l.b16 %v3049
        %v3201 = vunpack.c.l.b16 %v3050
        %v3202 = vunpack.c.l.b16 %v3051
        %v3203 = vunpack.c.l.b16 %v3052
        %v3204 = vunpack.c.l.b16 %v3053
        %v3205 = vunpack.c.l.b16 %v3054
        %v3206 = vunpack.c.l.b16 %v3055
        %v3207 = vunpack.c.l.b16 %v3056
        %v3208 = vunpack.c.l.b16 %v3057
        %v3209 = vunpack.c.l.b16 %v3058
        %v3210 = vunpack.c.l.b16 %v3059
        %v3211 = vunpack.c.l.b16 %v3060
        %v3212 = vunpack.c.l.b16 %v3061
        %v3213 = vunpack.c.l.b16 %v3062
        %v3214 = vunpack.c.l.b16 %v3063
        %v3215 = vunpack.c.l.b16 %v3064
        %v3216 = vunpack.c.l.b16 %v3065
        %v3217 = vunpack.c.l.b16 %v3066
        %v3218 = vunpack.c.l.b16 %v3067
        %v3219 = vunpack.c.l.b16 %v3068
        %v3220 = vunpack.c.l.b16 %v3069
        %v3221 = vunpack.c.l.b16 %v3070
        %v3222 = vunpack.c.l.b16 %v3071
        %v3223 = vunpack.c.l.b16 %v3072
        %v3224 = vunpack.c.l.b16 %v3073
        %v3225 = vunpack.c.l.b16 %v3074
        %v3226 = vunpack.c.l.b16 %v3075
        %v3227 = vunpack.c.l.b16 %v3076
        %v3228 = vunpack.c.l.b16 %v3077
        %v3229 = vunpack.c.l.b16 %v3078
        %v3230 = vunpack.c.l.b16 %v3079
        %v3231 = vunpack.c.l.b16 %v3080
        %v3232 = vunpack.c.l.b16 %v3081
        %v3233 = vunpack.c.l.b16 %v3082
        %v3234 = vunpack.c.l.b16 %v3083
        %v3235 = vunpack.c.l.b16 %v3084
        %v3236 = vunpack.c.l.b16 %v3085
        %v3237 = vunpack.c.l.b16 %v3086
        %v3238 = vunpack.c.l.b16 %v3087
        %v3239 = vunpack.c.l.b16 %v3088
        %v3240 = vunpack.c.l.b16 %v3089
        %v3241 = vunpack.c.l.b16 %v3090
        %v3242 = vunpack.c.l.b16 %v3091
        %v3243 = vunpack.c.l.b16 %v3092
        %v3244 = vunpack.c.l.b16 %v3093
        %v3245 = vunpack.c.l.b16 %v3094
        %v3246 = vunpack.c.l.b16 %v3095
        %v3247 = vunpack.c.l.b16 %v3096
        %v3248 = vunpack.c.l.b16 %v3097
        %v3249 = vunpack.c.l.b16 %v3098
        %v3250 = vunpack.c.l.b16 %v3099
        %v3251 = vunpack.c.l.b16 %v3100
        %v3252 = vunpack.c.l.b16 %v3101
        %v3253 = vunpack.c.l.b16 %v3102
        %v3254 = vunpack.c.l.b16 %v3103
        %v3255 = vunpack.c.l.b16 %v3104
        %v3256 = vunpack.c.l.b16 %v3105
        %v3257 = vunpack.c.l.b16 %v3106
        %v3258 = vunpack.c.l.b16 %v3107
        %v3259 = vunpack.c.l.b16 %v3108
        %v3260 = vunpack.c.l.b16 %v3109
        %v3261 = vunpack.c.l.b16 %v3110
        %v3262 = vunpack.c.l.b16 %v3111
        %v3263 = vunpack.c.l.b16 %v3112
        %v3264 = vunpack.c.l.b16 %v3113
        %v3265 = vunpack.c.l.b16 %v3114
        %v3266 = vunpack.c.l.b16 %v3115
        %v3267 = vunpack.c.l.b16 %v3116
        %v3268 = vunpack.c.l.b16 %v3117
        %v3269 = vunpack.c.l.b16 %v3118
        %v3270 = vpack.c.b16 %v3199, %v3198
        %v3271 = vpack.c.b16 %v3201, %v3200
        %v3272 = vpack.c.b16 %v3203, %v3202
        %v3273 = vpack.c.b16 %v3205, %v3204
        %v3274 = vpack.c.b16 %v3207, %v3206
        %v3275 = vpack.c.b16 %v3209, %v3208
        %v3276 = vpack.c.b16 %v3211, %v3210
        %v3277 = vpack.c.b16 %v3213, %v3212
        %v3278 = vpack.c.b16 %v3215, %v3214
        %v3279 = vpack.c.b16 %v3217, %v3216
        %v3280 = vpack.c.b16 %v3219, %v3218
        %v3281 = vpack.c.b16 %v3221, %v3220
        %v3282 = vpack.c.b16 %v3223, %v3222
        %v3283 = vpack.c.b16 %v3225, %v3224
        %v3284 = vpack.c.b16 %v3227, %v3226
        %v3285 = vpack.c.b16 %v3229, %v3228
        %v3286 = vpack.c.b16 %v3231, %v3230
        %v3287 = vpack.c.b16 %v3233, %v3232
        %v3288 = vpack.c.b16 %v3235, %v3234
        %v3289 = vpack.c.b16 %v3237, %v3236
        %v3290 = vpack.c.b16 %v3239, %v3238
        %v3291 = vpack.c.b16 %v3241, %v3240
        %v3292 = vpack.c.b16 %v3243, %v3242
        %v3293 = vpack.c.b16 %v3245, %v3244
        %v3294 = vpack.c.b16 %v3247, %v3246
        %v3295 = vpack.c.b16 %v3249, %v3248
        %v3296 = vpack.c.b16 %v3251, %v3250
        %v3297 = vpack.c.b16 %v3253, %v3252
        %v3298 = vpack.c.b16 %v3255, %v3254
        %v3299 = vpack.c.b16 %v3257, %v3256
        %v3300 = vpack.c.b16 %v3259, %v3258
        %v3301 = vpack.c.b16 %v3261, %v3260
        %v3302 = vpack.c.b16 %v3263, %v3262
        %v3303 = vpack.c.b16 %v3265, %v3264
        %v3304 = vpack.c.b16 %v3267, %v3266
        %v3305 = vpack.c.b16 %v3269, %v3268
        %v3342 = vsel %vm797, %v2437, 0
        %v3344 = vsel %vm797, %v2438, 0
        %v3346 = vsel %vm797, %v2439, 0
        %v3348 = vsel %vm797, %v2440, 0
        %v3350 = vsel %vm797, %v2441, 0
        %v3352 = vsel %vm797, %v2442, 0
        %v3354 = vsel %vm797, %v2443, 0
        %v3356 = vsel %vm797, %v2444, 0
        %v3358 = vsel %vm797, %v2445, 0
        %v3360 = vsel %vm797, %v2446, 0
        %v3362 = vsel %vm797, %v2447, 0
        %v3364 = vsel %vm797, %v2448, 0
        %v3366 = vsel %vm797, %v2449, 0
        %v3368 = vsel %vm797, %v2450, 0
        %v3370 = vsel %vm797, %v2451, 0
        %v3372 = vsel %vm797, %v2452, 0
        %v3374 = vsel %vm797, %v2453, 0
        %v3376 = vsel %vm797, %v2454, 0
        %v3378 = vsel %vm797, %v2455, 0
        %v3380 = vsel %vm797, %v2456, 0
        %v3382 = vsel %vm797, %v2457, 0
        %v3384 = vsel %vm797, %v2458, 0
        %v3386 = vsel %vm797, %v2459, 0
        %v3388 = vsel %vm797, %v2460, 0
        %v3390 = vsel %vm797, %v2436, 0
        %3392 = vmatprep.subr.bf16.mxu0 0
        %3393 = vmatpush1.bf16.msra.mxu0 %v3277
        %3394 = vmatprep.subr.bf16.mxu0 0
        %3395 = vmatpush1.bf16.msra.mxu0 %v3276
        %3396 = vmatprep.subr.bf16.mxu0 0
        %3397 = vmatpush1.bf16.msra.mxu0 %v3275
        %3398 = vmatprep.subr.bf16.mxu0 0
        %3399 = vmatpush1.bf16.msra.mxu0 %v3274
        %3400 = vmatprep.subr.bf16.mxu0 0
        %3401 = vmatpush1.bf16.msra.mxu0 %v3273
        %3402 = vmatprep.subr.bf16.mxu0 0
        %3403 = vmatpush1.bf16.msra.mxu0 %v3272
        %3404 = vmatprep.subr.bf16.mxu0 0
        %3405 = vmatpush1.bf16.msra.mxu0 %v3271
        %3406 = vmatprep.subr.bf16.mxu0 0
        %3407 = vmatpush1.bf16.msra.mxu0 %v3270
        %3408 = vmatprep.subr.bf16.mxu0 0
        %3409 = vmatpush2.bf16.msra.mxu0 %v3285
        %3410 = vmatprep.subr.bf16.mxu0 0
        %3411 = vmatpush2.bf16.msra.mxu0 %v3284
        %3412 = vmatprep.subr.bf16.mxu0 0
        %3413 = vmatpush2.bf16.msra.mxu0 %v3283
        %3414 = vmatprep.subr.bf16.mxu0 0
        %3415 = vmatpush2.bf16.msra.mxu0 %v3282
        %3416 = vmatprep.subr.bf16.mxu0 0
        %3417 = vmatpush2.bf16.msra.mxu0 %v3281
        %3418 = vmatprep.subr.bf16.mxu0 0
        %3419 = vmatpush2.bf16.msra.mxu0 %v3280
        %3420 = vmatprep.subr.bf16.mxu0 0
        %3421 = vmatpush2.bf16.msra.mxu0 %v3279
        %3422 = vmatprep.subr.bf16.mxu0 0
        %3423 = vmatpush2.bf16.msra.mxu0 %v3278
        %3424 = vmatprep.mubr.bf16.mxu0 %v900
        %3425 = vmatmul.mubr.bf16.gmra.mxu0 %v800
        %v3426 = vpop.f32.mrf.mxu0
        %v3427 = vpop.f32.mrf.mxu0
        %v3428 = vpop.f32.mrf.mxu0
        %v3429 = vpop.f32.mrf.mxu0
        %3430 = vmatprep.mubr.bf16.mxu0 %v2850
        %3431 = vmatmul.mubr.bf16.gmra.mxu0 %v800
        %v3432 = vpop.f32.mrf.mxu0
        %v3433 = vpop.f32.mrf.mxu0
        %v3434 = vpop.f32.mrf.mxu0
        %v3435 = vadd.f32 %v3124, %v3434
        %v3436 = vpop.f32.mrf.mxu0
        %3437 = vmatprep.mubr.bf16.mxu0 %v2854
        %3438 = vmatmul.mubr.bf16.gmra.mxu0 %v800
        %v3439 = vpop.f32.mrf.mxu0
        %v3440 = vadd.f32 %v3124, %v3439
        %v3441 = vpop.f32.mrf.mxu0
        %v3442 = vpop.f32.mrf.mxu0
        %v3443 = vpop.f32.mrf.mxu0
        %3444 = vmatprep.mubr.bf16.mxu0 %v2858
        %3445 = vmatmul.mubr.bf16.gmra.mxu0 %v2755
        %v3446 = vpop.f32.mrf.mxu0
        %v3447 = vadd.f32 %v3124, %v3446
        %v3448 = vpop.f32.mrf.mxu0
        %v3449 = vpop.f32.mrf.mxu0
        %v3450 = vadd.f32 %v3124, %v3449
        %v3451 = vpop.f32.mrf.mxu0
        %3452 = vmatprep.mubr.bf16.mxu0 %v2862
        %3453 = vmatmul.mubr.bf16.gmra.mxu0 %v2759
        %v3454 = vpop.f32.mrf.mxu0
        %v3455 = vpop.f32.mrf.mxu0
        %v3456 = vpop.f32.mrf.mxu0
        %v3457 = vadd.f32 %v3124, %v3456
        %v3458 = vpop.f32.mrf.mxu0
        %3459 = vmatprep.mubr.bf16.mxu0 %v2866
        %3460 = vmatmul.mubr.bf16.gmra.mxu0 %v2763
        %v3461 = vpop.f32.mrf.mxu0
        %v3462 = vadd.f32 %v3124, %v3461
        %v3463 = vpop.f32.mrf.mxu0
        %v3464 = vpop.f32.mrf.mxu0
        %v3465 = vpop.f32.mrf.mxu0
        %3466 = vmatprep.mubr.bf16.mxu0 %v2870
        %3467 = vmatmul.mubr.bf16.gmra.mxu0 %v2767
        %v3468 = vpop.f32.mrf.mxu0
        %v3469 = vadd.f32 %v3124, %v3468
        %v3470 = vpop.f32.mrf.mxu0
        %v3471 = vpop.f32.mrf.mxu0
        %v3472 = vadd.f32 %v3124, %v3471
        %v3473 = vpop.f32.mrf.mxu0
        %3474 = vmatprep.mubr.bf16.mxu0 %v2874
        %3475 = vmatmul.mubr.bf16.gmra.mxu0 %v2771
        %v3476 = vpop.f32.mrf.mxu0
        %v3477 = vpop.f32.mrf.mxu0
        %v3478 = vpop.f32.mrf.mxu0
        %v3479 = vadd.f32 %v3124, %v3478
        %v3480 = vpop.f32.mrf.mxu0
        %3481 = vmatprep.mubr.bf16.mxu0 %v2878
        %3482 = vmatmul.mubr.bf16.gmra.mxu0 %v2775
        %v3483 = vpop.f32.mrf.mxu0
        %v3484 = vadd.f32 %v3124, %v3483
        %v3485 = vpop.f32.mrf.mxu0
        %v3486 = vpop.f32.mrf.mxu0
        %v3487 = vpop.f32.mrf.mxu0
        %3488 = vmatprep.mubr.bf16.mxu0 %v2882
        %3489 = vmatmul.mubr.bf16.gmra.mxu0 %v2779
        %v3490 = vpop.f32.mrf.mxu0
        %v3491 = vadd.f32 %v3124, %v3490
        %v3492 = vpop.f32.mrf.mxu0
        %v3493 = vpop.f32.mrf.mxu0
        %v3494 = vadd.f32 %v3124, %v3493
        %v3495 = vpop.f32.mrf.mxu0
        %3496 = vmatprep.mubr.bf16.mxu0 %v2886
        %3497 = vmatmul.mubr.bf16.gmra.mxu0 %v2783
        %v3498 = vpop.f32.mrf.mxu0
        %v3499 = vpop.f32.mrf.mxu0
        %v3500 = vpop.f32.mrf.mxu0
        %v3501 = vadd.f32 %v3124, %v3500
        %v3502 = vpop.f32.mrf.mxu0
        %3503 = vmatprep.mubr.bf16.mxu0 %v2890
        %3504 = vmatmul.mubr.bf16.gmra.mxu0 %v2787
        %v3505 = vpop.f32.mrf.mxu0
        %v3506 = vadd.f32 %v3124, %v3505
        %v3507 = vpop.f32.mrf.mxu0
        %v3508 = vpop.f32.mrf.mxu0
        %v3509 = vpop.f32.mrf.mxu0
        %3510 = vmatprep.mubr.bf16.mxu0 %v2894
        %3511 = vmatmul.mubr.bf16.gmra.mxu0 %v2791
        %v3512 = vpop.f32.mrf.mxu0
        %v3513 = vadd.f32 %v3124, %v3512
        %v3514 = vpop.f32.mrf.mxu0
        %v3515 = vpop.f32.mrf.mxu0
        %v3516 = vadd.f32 %v3124, %v3515
        %v3517 = vpop.f32.mrf.mxu0
        %3518 = vmatprep.mubr.bf16.mxu0 %v2898
        %3519 = vmatmul.mubr.bf16.gmra.mxu0 %v2795
        %v3520 = vpop.f32.mrf.mxu0
        %v3521 = vpop.f32.mrf.mxu0
        %v3522 = vpop.f32.mrf.mxu0
        %v3523 = vadd.f32 %v3124, %v3522
        %v3524 = vpop.f32.mrf.mxu0
        %3525 = vmatprep.mubr.bf16.mxu0 %v2902
        %3526 = vmatmul.mubr.bf16.gmra.mxu0 %v2799
        %v3527 = vpop.f32.mrf.mxu0
        %v3528 = vadd.f32 %v3124, %v3527
        %v3529 = vpop.f32.mrf.mxu0
        %v3530 = vpop.f32.mrf.mxu0
        %v3531 = vpop.f32.mrf.mxu0
        %3532 = vmatprep.mubr.bf16.mxu0 %v2906
        %3533 = vmatmul.mubr.bf16.gmra.mxu0 %v2803
        %v3534 = vpop.f32.mrf.mxu0
        %v3535 = vadd.f32 %v3124, %v3534
        %v3536 = vpop.f32.mrf.mxu0
        %v3537 = vpop.f32.mrf.mxu0
        %v3538 = vadd.f32 %v3124, %v3537
        %v3539 = vpop.f32.mrf.mxu0
        %3540 = vmatprep.mubr.bf16.mxu0 %v2910
        %3541 = vmatmul.mubr.bf16.gmra.mxu0 %v2807
        %v3542 = vpop.f32.mrf.mxu0
        %v3543 = vpop.f32.mrf.mxu0
        %v3544 = vpop.f32.mrf.mxu0
        %v3545 = vadd.f32 %v3124, %v3544
        %v3546 = vpop.f32.mrf.mxu0
        %3547 = vmatprep.mubr.bf16.mxu0 %v2914
        %3548 = vmatmul.mubr.bf16.gmra.mxu0 %v2811
        %v3549 = vpop.f32.mrf.mxu0
        %v3550 = vadd.f32 %v3124, %v3549
        %v3551 = vpop.f32.mrf.mxu0
        %v3552 = vpop.f32.mrf.mxu0
        %v3553 = vpop.f32.mrf.mxu0
        %3554 = vmatprep.mubr.bf16.mxu0 %v2918
        %3555 = vmatmul.mubr.bf16.gmra.mxu0 %v2815
        %v3556 = vpop.f32.mrf.mxu0
        %v3557 = vadd.f32 %v3124, %v3556
        %v3558 = vpop.f32.mrf.mxu0
        %v3559 = vpop.f32.mrf.mxu0
        %v3560 = vadd.f32 %v3124, %v3559
        %v3561 = vpop.f32.mrf.mxu0
        %3562 = vmatprep.mubr.bf16.mxu0 %v2922
        %3563 = vmatmul.mubr.bf16.gmra.mxu0 %v2819
        %v3564 = vpop.f32.mrf.mxu0
        %v3565 = vpop.f32.mrf.mxu0
        %v3566 = vpop.f32.mrf.mxu0
        %v3567 = vadd.f32 %v3124, %v3566
        %v3568 = vpop.f32.mrf.mxu0
        %3569 = vmatprep.mubr.bf16.mxu0 %v2926
        %3570 = vmatmul.mubr.bf16.gmra.mxu0 %v2823
        %v3571 = vpop.f32.mrf.mxu0
        %v3572 = vadd.f32 %v3124, %v3571
        %v3573 = vpop.f32.mrf.mxu0
        %v3574 = vpop.f32.mrf.mxu0
        %v3575 = vpop.f32.mrf.mxu0
        %3576 = vmatprep.mubr.bf16.mxu0 %v2930
        %3577 = vmatmul.mubr.bf16.gmra.mxu0 %v2827
        %v3578 = vpop.f32.mrf.mxu0
        %v3579 = vadd.f32 %v3124, %v3578
        %v3580 = vpop.f32.mrf.mxu0
        %v3581 = vpop.f32.mrf.mxu0
        %v3582 = vadd.f32 %v3124, %v3581
        %v3583 = vpop.f32.mrf.mxu0
        %3584 = vmatprep.mubr.bf16.mxu0 %v2934
        %3585 = vmatmul.mubr.bf16.gmra.mxu0 %v2831
        %v3586 = vpop.f32.mrf.mxu0
        %v3587 = vpop.f32.mrf.mxu0
        %v3588 = vpop.f32.mrf.mxu0
        %v3589 = vadd.f32 %v3124, %v3588
        %v3590 = vpop.f32.mrf.mxu0
        %3591 = vmatprep.mubr.bf16.mxu0 %v2938
        %3592 = vmatmul.mubr.bf16.gmra.mxu0 %v2835
        %v3593 = vpop.f32.mrf.mxu0
        %v3594 = vadd.f32 %v3124, %v3593
        %v3595 = vpop.f32.mrf.mxu0
        %v3596 = vpop.f32.mrf.mxu0
        %v3597 = vpop.f32.mrf.mxu0
        %3598 = vmatprep.mubr.bf16.mxu0 %v2942
        %3599 = vmatmul.mubr.bf16.gmra.mxu0 %v2839
        %v3600 = vpop.f32.mrf.mxu0
        %v3601 = vadd.f32 %v3124, %v3600
        %v3602 = vpop.f32.mrf.mxu0
        %v3603 = vpop.f32.mrf.mxu0
        %v3604 = vadd.f32 %v3124, %v3603
        %v3605 = vpop.f32.mrf.mxu0
        %3606 = vmatprep.mubr.bf16.mxu0 %v2946
        %3607 = vmatmul.mubr.bf16.gmra.mxu0 %v2843
        %v3608 = vpop.f32.mrf.mxu0
        %v3609 = vpop.f32.mrf.mxu0
        %v3610 = vpop.f32.mrf.mxu0
        %v3611 = vpop.f32.mrf.mxu0
        %3612 = vmatprep.mubr.bf16.mxu0 %v2949
        %3613 = vmatmul.mubr.bf16.gmra.mxu0 %v2847
        %v3614 = vpop.f32.mrf.mxu0
        %v3615 = vpop.f32.mrf.mxu0
        %v3616 = vpop.f32.mrf.mxu0
        %v3617 = vpop.f32.mrf.mxu0
        %3618 = vdwg.mxu0
        %3619 = vmatprep.subr.bf16.mxu0 0
        %3620 = vmatpush1.bf16.msra.mxu0 %v3293
        %3621 = vmatprep.subr.bf16.mxu0 0
        %3622 = vmatpush1.bf16.msra.mxu0 %v3292
        %3623 = vmatprep.subr.bf16.mxu0 0
        %3624 = vmatpush1.bf16.msra.mxu0 %v3291
        %3625 = vmatprep.subr.bf16.mxu0 0
        %3626 = vmatpush1.bf16.msra.mxu0 %v3290
        %3627 = vmatprep.subr.bf16.mxu0 0
        %3628 = vmatpush1.bf16.msra.mxu0 %v3289
        %3629 = vmatprep.subr.bf16.mxu0 0
        %3630 = vmatpush1.bf16.msra.mxu0 %v3288
        %3631 = vmatprep.subr.bf16.mxu0 0
        %3632 = vmatpush1.bf16.msra.mxu0 %v3287
        %3633 = vmatprep.subr.bf16.mxu0 0
        %3634 = vmatpush1.bf16.msra.mxu0 %v3286
        %3635 = vmatprep.subr.bf16.mxu0 0
        %3636 = vmatpush2.bf16.msra.mxu0 %v3301
        %3637 = vmatprep.subr.bf16.mxu0 0
        %3638 = vmatpush2.bf16.msra.mxu0 %v3300
        %3639 = vmatprep.subr.bf16.mxu0 0
        %3640 = vmatpush2.bf16.msra.mxu0 %v3299
        %3641 = vmatprep.subr.bf16.mxu0 0
        %3642 = vmatpush2.bf16.msra.mxu0 %v3298
        %3643 = vmatprep.subr.bf16.mxu0 0
        %3644 = vmatpush2.bf16.msra.mxu0 %v3297
        %3645 = vmatprep.subr.bf16.mxu0 0
        %3646 = vmatpush2.bf16.msra.mxu0 %v3296
        %3647 = vmatprep.subr.bf16.mxu0 0
        %3648 = vmatpush2.bf16.msra.mxu0 %v3295
        %3649 = vmatprep.subr.bf16.mxu0 0
        %3650 = vmatpush2.bf16.msra.mxu0 %v3294
        %3651 = vmatprep.mubr.bf16.mxu0 %v2755
        %3652 = vmatmul.mubr.bf16.gmra.mxu0 %v1006
        %v3653 = vpop.f32.mrf.mxu0
        %v3654 = vpop.f32.mrf.mxu0
        %v3655 = vpop.f32.mrf.mxu0
        %v3656 = vpop.f32.mrf.mxu0
        %3657 = vmatprep.mubr.bf16.mxu0 %v2759
        %3658 = vmatmul.mubr.bf16.gmra.mxu0 %v2953
        %v3659 = vpop.f32.mrf.mxu0
        %v3660 = vpop.f32.mrf.mxu0
        %v3661 = vpop.f32.mrf.mxu0
        %v3662 = vadd.f32 %v3435, %v3661
        %v3663 = vpop.f32.mrf.mxu0
        %3664 = vmatprep.mubr.bf16.mxu0 %v2763
        %3665 = vmatmul.mubr.bf16.gmra.mxu0 %v2957
        %v3666 = vpop.f32.mrf.mxu0
        %v3667 = vadd.f32 %v3440, %v3666
        %v3668 = vpop.f32.mrf.mxu0
        %v3669 = vpop.f32.mrf.mxu0
        %v3670 = vpop.f32.mrf.mxu0
        %3671 = vmatprep.mubr.bf16.mxu0 %v2767
        %3672 = vmatmul.mubr.bf16.gmra.mxu0 %v2961
        %v3673 = vpop.f32.mrf.mxu0
        %v3674 = vadd.f32 %v3447, %v3673
        %v3675 = vpop.f32.mrf.mxu0
        %v3676 = vpop.f32.mrf.mxu0
        %v3677 = vadd.f32 %v3450, %v3676
        %v3678 = vpop.f32.mrf.mxu0
        %3679 = vmatprep.mubr.bf16.mxu0 %v2771
        %3680 = vmatmul.mubr.bf16.gmra.mxu0 %v2965
        %v3681 = vpop.f32.mrf.mxu0
        %v3682 = vpop.f32.mrf.mxu0
        %v3683 = vpop.f32.mrf.mxu0
        %v3684 = vadd.f32 %v3457, %v3683
        %v3685 = vpop.f32.mrf.mxu0
        %3686 = vmatprep.mubr.bf16.mxu0 %v2775
        %3687 = vmatmul.mubr.bf16.gmra.mxu0 %v2969
        %v3688 = vpop.f32.mrf.mxu0
        %v3689 = vadd.f32 %v3462, %v3688
        %v3690 = vpop.f32.mrf.mxu0
        %v3691 = vpop.f32.mrf.mxu0
        %v3692 = vpop.f32.mrf.mxu0
        %3693 = vmatprep.mubr.bf16.mxu0 %v2779
        %3694 = vmatmul.mubr.bf16.gmra.mxu0 %v2973
        %v3695 = vpop.f32.mrf.mxu0
        %v3696 = vadd.f32 %v3469, %v3695
        %v3697 = vpop.f32.mrf.mxu0
        %v3698 = vpop.f32.mrf.mxu0
        %v3699 = vadd.f32 %v3472, %v3698
        %v3700 = vpop.f32.mrf.mxu0
        %3701 = vmatprep.mubr.bf16.mxu0 %v2783
        %3702 = vmatmul.mubr.bf16.gmra.mxu0 %v2977
        %v3703 = vpop.f32.mrf.mxu0
        %v3704 = vpop.f32.mrf.mxu0
        %v3705 = vpop.f32.mrf.mxu0
        %v3706 = vadd.f32 %v3479, %v3705
        %v3707 = vpop.f32.mrf.mxu0
        %3708 = vmatprep.mubr.bf16.mxu0 %v2787
        %3709 = vmatmul.mubr.bf16.gmra.mxu0 %v2981
        %v3710 = vpop.f32.mrf.mxu0
        %v3711 = vadd.f32 %v3484, %v3710
        %v3712 = vpop.f32.mrf.mxu0
        %v3713 = vpop.f32.mrf.mxu0
        %v3714 = vpop.f32.mrf.mxu0
        %3715 = vmatprep.mubr.bf16.mxu0 %v2791
        %3716 = vmatmul.mubr.bf16.gmra.mxu0 %v2985
        %v3717 = vpop.f32.mrf.mxu0
        %v3718 = vadd.f32 %v3491, %v3717
        %v3719 = vpop.f32.mrf.mxu0
        %v3720 = vpop.f32.mrf.mxu0
        %v3721 = vadd.f32 %v3494, %v3720
        %v3722 = vpop.f32.mrf.mxu0
        %3723 = vmatprep.mubr.bf16.mxu0 %v2795
        %3724 = vmatmul.mubr.bf16.gmra.mxu0 %v2989
        %v3725 = vpop.f32.mrf.mxu0
        %v3726 = vpop.f32.mrf.mxu0
        %v3727 = vpop.f32.mrf.mxu0
        %v3728 = vadd.f32 %v3501, %v3727
        %v3729 = vpop.f32.mrf.mxu0
        %3730 = vmatprep.mubr.bf16.mxu0 %v2799
        %3731 = vmatmul.mubr.bf16.gmra.mxu0 %v2993
        %v3732 = vpop.f32.mrf.mxu0
        %v3733 = vadd.f32 %v3506, %v3732
        %v3734 = vpop.f32.mrf.mxu0
        %v3735 = vpop.f32.mrf.mxu0
        %v3736 = vpop.f32.mrf.mxu0
        %3737 = vmatprep.mubr.bf16.mxu0 %v2803
        %3738 = vmatmul.mubr.bf16.gmra.mxu0 %v2997
        %v3739 = vpop.f32.mrf.mxu0
        %v3740 = vadd.f32 %v3513, %v3739
        %v3741 = vpop.f32.mrf.mxu0
        %v3742 = vpop.f32.mrf.mxu0
        %v3743 = vadd.f32 %v3516, %v3742
        %v3744 = vpop.f32.mrf.mxu0
        %3745 = vmatprep.mubr.bf16.mxu0 %v2807
        %3746 = vmatmul.mubr.bf16.gmra.mxu0 %v3001
        %v3747 = vpop.f32.mrf.mxu0
        %v3748 = vpop.f32.mrf.mxu0
        %v3749 = vpop.f32.mrf.mxu0
        %v3750 = vadd.f32 %v3523, %v3749
        %v3751 = vpop.f32.mrf.mxu0
        %3752 = vmatprep.mubr.bf16.mxu0 %v2811
        %3753 = vmatmul.mubr.bf16.gmra.mxu0 %v3005
        %v3754 = vpop.f32.mrf.mxu0
        %v3755 = vadd.f32 %v3528, %v3754
        %v3756 = vpop.f32.mrf.mxu0
        %v3757 = vpop.f32.mrf.mxu0
        %v3758 = vpop.f32.mrf.mxu0
        %3759 = vmatprep.mubr.bf16.mxu0 %v2815
        %3760 = vmatmul.mubr.bf16.gmra.mxu0 %v3009
        %v3761 = vpop.f32.mrf.mxu0
        %v3762 = vadd.f32 %v3535, %v3761
        %v3763 = vpop.f32.mrf.mxu0
        %v3764 = vpop.f32.mrf.mxu0
        %v3765 = vadd.f32 %v3538, %v3764
        %v3766 = vpop.f32.mrf.mxu0
        %3767 = vmatprep.mubr.bf16.mxu0 %v2819
        %3768 = vmatmul.mubr.bf16.gmra.mxu0 %v3013
        %v3769 = vpop.f32.mrf.mxu0
        %v3770 = vpop.f32.mrf.mxu0
        %v3771 = vpop.f32.mrf.mxu0
        %v3772 = vadd.f32 %v3545, %v3771
        %v3773 = vpop.f32.mrf.mxu0
        %3774 = vmatprep.mubr.bf16.mxu0 %v2823
        %3775 = vmatmul.mubr.bf16.gmra.mxu0 %v3017
        %v3776 = vpop.f32.mrf.mxu0
        %v3777 = vadd.f32 %v3550, %v3776
        %v3778 = vpop.f32.mrf.mxu0
        %v3779 = vpop.f32.mrf.mxu0
        %v3780 = vpop.f32.mrf.mxu0
        %3781 = vmatprep.mubr.bf16.mxu0 %v2827
        %3782 = vmatmul.mubr.bf16.gmra.mxu0 %v3021
        %v3783 = vpop.f32.mrf.mxu0
        %v3784 = vadd.f32 %v3557, %v3783
        %v3785 = vpop.f32.mrf.mxu0
        %v3786 = vpop.f32.mrf.mxu0
        %v3787 = vadd.f32 %v3560, %v3786
        %v3788 = vpop.f32.mrf.mxu0
        %3789 = vmatprep.mubr.bf16.mxu0 %v2831
        %3790 = vmatmul.mubr.bf16.gmra.mxu0 %v3025
        %v3791 = vpop.f32.mrf.mxu0
        %v3792 = vpop.f32.mrf.mxu0
        %v3793 = vpop.f32.mrf.mxu0
        %v3794 = vadd.f32 %v3567, %v3793
        %v3795 = vpop.f32.mrf.mxu0
        %3796 = vmatprep.mubr.bf16.mxu0 %v2835
        %3797 = vmatmul.mubr.bf16.gmra.mxu0 %v3029
        %v3798 = vpop.f32.mrf.mxu0
        %v3799 = vadd.f32 %v3572, %v3798
        %v3800 = vpop.f32.mrf.mxu0
        %v3801 = vpop.f32.mrf.mxu0
        %v3802 = vpop.f32.mrf.mxu0
        %3803 = vmatprep.mubr.bf16.mxu0 %v2839
        %3804 = vmatmul.mubr.bf16.gmra.mxu0 %v3033
        %v3805 = vpop.f32.mrf.mxu0
        %v3806 = vadd.f32 %v3579, %v3805
        %v3807 = vpop.f32.mrf.mxu0
        %v3808 = vpop.f32.mrf.mxu0
        %v3809 = vadd.f32 %v3582, %v3808
        %v3810 = vpop.f32.mrf.mxu0
        %3811 = vmatprep.mubr.bf16.mxu0 %v2843
        %3812 = vmatmul.mubr.bf16.gmra.mxu0 %v3037
        %v3813 = vpop.f32.mrf.mxu0
        %v3814 = vpop.f32.mrf.mxu0
        %v3815 = vpop.f32.mrf.mxu0
        %v3816 = vadd.f32 %v3589, %v3815
        %v3817 = vpop.f32.mrf.mxu0
        %3818 = vmatprep.mubr.bf16.mxu0 %v2847
        %3819 = vmatmul.mubr.bf16.gmra.mxu0 %v3041
        %v3820 = vpop.f32.mrf.mxu0
        %v3821 = vadd.f32 %v3594, %v3820
        %v3822 = vpop.f32.mrf.mxu0
        %v3823 = vpop.f32.mrf.mxu0
        %v3824 = vpop.f32.mrf.mxu0
        %3825 = vmatprep.mubr.bf16.mxu0 %v800
        %3826 = vmatmul.mubr.bf16.gmra.mxu0 %v3045
        %v3827 = vpop.f32.mrf.mxu0
        %v3828 = vadd.f32 %v3601, %v3827
        %v3829 = vpop.f32.mrf.mxu0
        %v3830 = vpop.f32.mrf.mxu0
        %v3831 = vadd.f32 %v3604, %v3830
        %v3832 = vpop.f32.mrf.mxu0
        %3833 = vmatprep.mubr.bf16.mxu0 %v800
        %3834 = vmatmul.mubr.bf16.gmra.mxu0 %v1006
        %v3835 = vpop.f32.mrf.mxu0
        %v3836 = vpop.f32.mrf.mxu0
        %v3837 = vpop.f32.mrf.mxu0
        %v3838 = vpop.f32.mrf.mxu0
        %3839 = vmatprep.mubr.bf16.mxu0 %v800
        %3840 = vmatmul.mubr.bf16.gmra.mxu0 %v1006
        %v3841 = vpop.f32.mrf.mxu0
        %v3842 = vpop.f32.mrf.mxu0
        %v3843 = vpop.f32.mrf.mxu0
        %v3844 = vpop.f32.mrf.mxu0
        %3845 = vdwg.mxu0
        %3846 = vmatprep.subr.bf16.mxu0 0
        %3847 = vmatpush1.bf16.msra.mxu0 0
        %3848 = vmatprep.subr.bf16.mxu0 0
        %3849 = vmatpush1.bf16.msra.mxu0 0
        %3850 = vmatprep.subr.bf16.mxu0 0
        %3851 = vmatpush1.bf16.msra.mxu0 0
        %3852 = vmatprep.subr.bf16.mxu0 0
        %3853 = vmatpush1.bf16.msra.mxu0 0
        %3854 = vmatprep.subr.bf16.mxu0 0
        %3855 = vmatpush1.bf16.msra.mxu0 %v3305
        %3856 = vmatprep.subr.bf16.mxu0 0
        %3857 = vmatpush1.bf16.msra.mxu0 %v3304
        %3858 = vmatprep.subr.bf16.mxu0 0
        %3859 = vmatpush1.bf16.msra.mxu0 %v3303
        %3860 = vmatprep.subr.bf16.mxu0 0
        %3861 = vmatpush1.bf16.msra.mxu0 %v3302
        %3862 = vmatprep.subr.bf16.mxu0 0
        %3863 = vmatpush2.bf16.msra.mxu0 0
        %3864 = vmatprep.subr.bf16.mxu0 0
        %3865 = vmatpush2.bf16.msra.mxu0 0
        %3866 = vmatprep.subr.bf16.mxu0 0
        %3867 = vmatpush2.bf16.msra.mxu0 0
        %3868 = vmatprep.subr.bf16.mxu0 0
        %3869 = vmatpush2.bf16.msra.mxu0 0
        %3870 = vmatprep.subr.bf16.mxu0 0
        %3871 = vmatpush2.bf16.msra.mxu0 0
        %3872 = vmatprep.subr.bf16.mxu0 0
        %3873 = vmatpush2.bf16.msra.mxu0 0
        %3874 = vmatprep.subr.bf16.mxu0 0
        %3875 = vmatpush2.bf16.msra.mxu0 0
        %3876 = vmatprep.subr.bf16.mxu0 0
        %3877 = vmatpush2.bf16.msra.mxu0 0
        %3878 = vmatprep.mubr.bf16.mxu0 0
        %3879 = vmatmul.mubr.bf16.gmra.mxu0 %v3342
        %v3880 = vpop.f32.mrf.mxu0
        %v3881 = vpop.f32.mrf.mxu0
        %v3882 = vpop.f32.mrf.mxu0
        %v3883 = vpop.f32.mrf.mxu0
        %3884 = vmatprep.mubr.bf16.mxu0 0
        %3885 = vmatmul.mubr.bf16.gmra.mxu0 %v3344
        %v3886 = vpop.f32.mrf.mxu0
        %v3887 = vpop.f32.mrf.mxu0
        %v3888 = vpop.f32.mrf.mxu0
        %v3889 = vadd.f32 %v3662, %v3888
        %v3890 = vpop.f32.mrf.mxu0
        %3891 = vmatprep.mubr.bf16.mxu0 0
        %3892 = vmatmul.mubr.bf16.gmra.mxu0 %v3346
        %v3893 = vpop.f32.mrf.mxu0
        %v3894 = vadd.f32 %v3667, %v3893
        %v3895 = vpop.f32.mrf.mxu0
        %v3896 = vpop.f32.mrf.mxu0
        %v3897 = vpop.f32.mrf.mxu0
        %3898 = vmatprep.mubr.bf16.mxu0 0
        %3899 = vmatmul.mubr.bf16.gmra.mxu0 %v3348
        %v3900 = vpop.f32.mrf.mxu0
        %v3901 = vadd.f32 %v3674, %v3900
        %v3902 = vpop.f32.mrf.mxu0
        %v3903 = vpop.f32.mrf.mxu0
        %v3904 = vadd.f32 %v3677, %v3903
        %v3905 = vpop.f32.mrf.mxu0
        %3906 = vmatprep.mubr.bf16.mxu0 0
        %3907 = vmatmul.mubr.bf16.gmra.mxu0 %v3350
        %v3908 = vpop.f32.mrf.mxu0
        %v3909 = vpop.f32.mrf.mxu0
        %v3910 = vpop.f32.mrf.mxu0
        %v3911 = vadd.f32 %v3684, %v3910
        %v3912 = vpop.f32.mrf.mxu0
        %3913 = vmatprep.mubr.bf16.mxu0 0
        %3914 = vmatmul.mubr.bf16.gmra.mxu0 %v3352
        %v3915 = vpop.f32.mrf.mxu0
        %v3916 = vadd.f32 %v3689, %v3915
        %v3917 = vpop.f32.mrf.mxu0
        %v3918 = vpop.f32.mrf.mxu0
        %v3919 = vpop.f32.mrf.mxu0
        %3920 = vmatprep.mubr.bf16.mxu0 0
        %3921 = vmatmul.mubr.bf16.gmra.mxu0 %v3354
        %v3922 = vpop.f32.mrf.mxu0
        %v3923 = vadd.f32 %v3696, %v3922
        %v3924 = vpop.f32.mrf.mxu0
        %v3925 = vpop.f32.mrf.mxu0
        %v3926 = vadd.f32 %v3699, %v3925
        %v3927 = vpop.f32.mrf.mxu0
        %3928 = vmatprep.mubr.bf16.mxu0 0
        %3929 = vmatmul.mubr.bf16.gmra.mxu0 %v3356
        %v3930 = vpop.f32.mrf.mxu0
        %v3931 = vpop.f32.mrf.mxu0
        %v3932 = vpop.f32.mrf.mxu0
        %v3933 = vadd.f32 %v3706, %v3932
        %v3934 = vpop.f32.mrf.mxu0
        %3935 = vmatprep.mubr.bf16.mxu0 0
        %3936 = vmatmul.mubr.bf16.gmra.mxu0 %v3358
        %v3937 = vpop.f32.mrf.mxu0
        %v3938 = vadd.f32 %v3711, %v3937
        %v3939 = vpop.f32.mrf.mxu0
        %v3940 = vpop.f32.mrf.mxu0
        %v3941 = vpop.f32.mrf.mxu0
        %3942 = vmatprep.mubr.bf16.mxu0 0
        %3943 = vmatmul.mubr.bf16.gmra.mxu0 %v3360
        %v3944 = vpop.f32.mrf.mxu0
        %v3945 = vadd.f32 %v3718, %v3944
        %v3946 = vpop.f32.mrf.mxu0
        %v3947 = vpop.f32.mrf.mxu0
        %v3948 = vadd.f32 %v3721, %v3947
        %v3949 = vpop.f32.mrf.mxu0
        %3950 = vmatprep.mubr.bf16.mxu0 0
        %3951 = vmatmul.mubr.bf16.gmra.mxu0 %v3362
        %v3952 = vpop.f32.mrf.mxu0
        %v3953 = vpop.f32.mrf.mxu0
        %v3954 = vpop.f32.mrf.mxu0
        %v3955 = vadd.f32 %v3728, %v3954
        %v3956 = vpop.f32.mrf.mxu0
        %3957 = vmatprep.mubr.bf16.mxu0 0
        %3958 = vmatmul.mubr.bf16.gmra.mxu0 %v3364
        %v3959 = vpop.f32.mrf.mxu0
        %v3960 = vadd.f32 %v3733, %v3959
        %v3961 = vpop.f32.mrf.mxu0
        %v3962 = vpop.f32.mrf.mxu0
        %v3963 = vpop.f32.mrf.mxu0
        %3964 = vmatprep.mubr.bf16.mxu0 0
        %3965 = vmatmul.mubr.bf16.gmra.mxu0 %v3366
        %v3966 = vpop.f32.mrf.mxu0
        %v3967 = vadd.f32 %v3740, %v3966
        %v3968 = vpop.f32.mrf.mxu0
        %v3969 = vpop.f32.mrf.mxu0
        %v3970 = vadd.f32 %v3743, %v3969
        %v3971 = vpop.f32.mrf.mxu0
        %3972 = vmatprep.mubr.bf16.mxu0 0
        %3973 = vmatmul.mubr.bf16.gmra.mxu0 %v3368
        %v3974 = vpop.f32.mrf.mxu0
        %v3975 = vpop.f32.mrf.mxu0
        %v3976 = vpop.f32.mrf.mxu0
        %v3977 = vadd.f32 %v3750, %v3976
        %v3978 = vpop.f32.mrf.mxu0
        %3979 = vmatprep.mubr.bf16.mxu0 0
        %3980 = vmatmul.mubr.bf16.gmra.mxu0 %v3370
        %v3981 = vpop.f32.mrf.mxu0
        %v3982 = vadd.f32 %v3755, %v3981
        %v3983 = vpop.f32.mrf.mxu0
        %v3984 = vpop.f32.mrf.mxu0
        %v3985 = vpop.f32.mrf.mxu0
        %3986 = vmatprep.mubr.bf16.mxu0 0
        %3987 = vmatmul.mubr.bf16.gmra.mxu0 %v3372
        %v3988 = vpop.f32.mrf.mxu0
        %v3989 = vadd.f32 %v3762, %v3988
        %v3990 = vpop.f32.mrf.mxu0
        %v3991 = vpop.f32.mrf.mxu0
        %v3992 = vadd.f32 %v3765, %v3991
        %v3993 = vpop.f32.mrf.mxu0
        %3994 = vmatprep.mubr.bf16.mxu0 0
        %3995 = vmatmul.mubr.bf16.gmra.mxu0 %v3374
        %v3996 = vpop.f32.mrf.mxu0
        %v3997 = vpop.f32.mrf.mxu0
        %v3998 = vpop.f32.mrf.mxu0
        %v3999 = vadd.f32 %v3772, %v3998
        %v4000 = vpop.f32.mrf.mxu0
        %4001 = vmatprep.mubr.bf16.mxu0 0
        %4002 = vmatmul.mubr.bf16.gmra.mxu0 %v3376
        %v4003 = vpop.f32.mrf.mxu0
        %v4004 = vadd.f32 %v3777, %v4003
        %v4005 = vpop.f32.mrf.mxu0
        %v4006 = vpop.f32.mrf.mxu0
        %v4007 = vpop.f32.mrf.mxu0
        %4008 = vmatprep.mubr.bf16.mxu0 0
        %4009 = vmatmul.mubr.bf16.gmra.mxu0 %v3378
        %v4010 = vpop.f32.mrf.mxu0
        %v4011 = vadd.f32 %v3784, %v4010
        %v4012 = vpop.f32.mrf.mxu0
        %v4013 = vpop.f32.mrf.mxu0
        %v4014 = vadd.f32 %v3787, %v4013
        %v4015 = vpop.f32.mrf.mxu0
        %4016 = vmatprep.mubr.bf16.mxu0 0
        %4017 = vmatmul.mubr.bf16.gmra.mxu0 %v3380
        %v4018 = vpop.f32.mrf.mxu0
        %v4019 = vpop.f32.mrf.mxu0
        %v4020 = vpop.f32.mrf.mxu0
        %v4021 = vadd.f32 %v3794, %v4020
        %v4022 = vpop.f32.mrf.mxu0
        %4023 = vmatprep.mubr.bf16.mxu0 0
        %4024 = vmatmul.mubr.bf16.gmra.mxu0 %v3382
        %v4025 = vpop.f32.mrf.mxu0
        %v4026 = vadd.f32 %v3799, %v4025
        %v4027 = vpop.f32.mrf.mxu0
        %v4028 = vpop.f32.mrf.mxu0
        %v4029 = vpop.f32.mrf.mxu0
        %4030 = vmatprep.mubr.bf16.mxu0 0
        %4031 = vmatmul.mubr.bf16.gmra.mxu0 %v3384
        %v4032 = vpop.f32.mrf.mxu0
        %v4033 = vadd.f32 %v3806, %v4032
        %v4034 = vpop.f32.mrf.mxu0
        %v4035 = vpop.f32.mrf.mxu0
        %v4036 = vadd.f32 %v3809, %v4035
        %v4037 = vpop.f32.mrf.mxu0
        %4038 = vmatprep.mubr.bf16.mxu0 0
        %4039 = vmatmul.mubr.bf16.gmra.mxu0 %v3386
        %v4040 = vpop.f32.mrf.mxu0
        %v4041 = vpop.f32.mrf.mxu0
        %v4042 = vpop.f32.mrf.mxu0
        %v4043 = vadd.f32 %v3816, %v4042
        %v4044 = vpop.f32.mrf.mxu0
        %4045 = vmatprep.mubr.bf16.mxu0 0
        %4046 = vmatmul.mubr.bf16.gmra.mxu0 %v3388
        %v4047 = vpop.f32.mrf.mxu0
        %v4048 = vadd.f32 %v3821, %v4047
        %v4049 = vpop.f32.mrf.mxu0
        %v4050 = vpop.f32.mrf.mxu0
        %v4051 = vpop.f32.mrf.mxu0
        %4052 = vmatprep.mubr.bf16.mxu0 0
        %4053 = vmatmul.mubr.bf16.gmra.mxu0 %v1447
        %v4054 = vpop.f32.mrf.mxu0
        %v4055 = vadd.f32 %v3828, %v4054
        %v4056 = vpop.f32.mrf.mxu0
        %v4057 = vpop.f32.mrf.mxu0
        %v4058 = vadd.f32 %v3831, %v4057
        %v4059 = vpop.f32.mrf.mxu0
        %4060 = vmatprep.mubr.bf16.mxu0 0
        %4061 = vmatmul.mubr.bf16.gmra.mxu0 %v1447
        %v4062 = vpop.f32.mrf.mxu0
        %v4063 = vpop.f32.mrf.mxu0
        %v4064 = vpop.f32.mrf.mxu0
        %v4065 = vpop.f32.mrf.mxu0
        %4066 = vmatprep.mubr.bf16.mxu0 0
        %4067 = vmatmul.mubr.bf16.gmra.mxu0 %v3390
        %v4068 = vpop.f32.mrf.mxu0
        %v4069 = vpop.f32.mrf.mxu0
        %v4070 = vpop.f32.mrf.mxu0
        %v4071 = vpop.f32.mrf.mxu0
        %4072 = vdwg.mxu0
        %v4073 = vadd.f32 %v3889, %v224
        %v4074 = vadd.f32 %v3894, %v225
        %v4075 = vadd.f32 %v3901, %v226
        %v4076 = vadd.f32 %v3904, %v227
        %v4077 = vadd.f32 %v3911, %v228
        %v4078 = vadd.f32 %v3916, %v229
        %v4079 = vadd.f32 %v3923, %v230
        %v4080 = vadd.f32 %v3926, %v231
        %v4081 = vadd.f32 %v3933, %v232
        %v4082 = vadd.f32 %v3938, %v233
        %v4083 = vadd.f32 %v3945, %v234
        %v4084 = vadd.f32 %v3948, %v235
        %v4085 = vadd.f32 %v3955, %v236
        %v4086 = vadd.f32 %v3960, %v237
        %v4087 = vadd.f32 %v3967, %v238
        %v4088 = vadd.f32 %v3970, %v239
        %v4089 = vadd.f32 %v3977, %v240
        %v4090 = vadd.f32 %v3982, %v241
        %v4091 = vadd.f32 %v3989, %v242
        %v4092 = vadd.f32 %v3992, %v243
        %v4093 = vadd.f32 %v3999, %v244
        %v4094 = vadd.f32 %v4004, %v245
        %v4095 = vadd.f32 %v4011, %v246
        %v4096 = vadd.f32 %v4014, %v247
        %v4097 = vadd.f32 %v4021, %v248
        %v4098 = vadd.f32 %v4026, %v249
        %v4099 = vadd.f32 %v4033, %v250
        %v4100 = vadd.f32 %v4036, %v251
        %v4101 = vadd.f32 %v4043, %v252
        %v4102 = vadd.f32 %v4048, %v253
        %v4103 = vadd.f32 %v4055, %v254
        %v4104 = vadd.f32 %v4058, %v255
        %4105 = vst.msk [vmem:[%s217] sm:$0xff] %vm797, %v4073
        %4106 = vst.msk [vmem:[%s217 + $0x8] sm:$0xff] %vm797, %v4074
        %4107 = vst.msk [vmem:[%s217 + $0x10] sm:$0xff] %vm797, %v4075
        %4108 = vst.msk [vmem:[%s217 + $0x18] sm:$0xff] %vm797, %v4076
        %4109 = vst.msk [vmem:[%s217 + $0x20] sm:$0xff] %vm797, %v4077
        %4110 = vst.msk [vmem:[%s217 + $0x28] sm:$0xff] %vm797, %v4078
        %4111 = vst.msk [vmem:[%s217 + $0x30] sm:$0xff] %vm797, %v4079
        %4112 = vst.msk [vmem:[%s217 + $0x38] sm:$0xff] %vm797, %v4080
        %4113 = vst.msk [vmem:[%s217 + $0x40] sm:$0xff] %vm797, %v4081
        %4114 = vst.msk [vmem:[%s217 + $0x48] sm:$0xff] %vm797, %v4082
        %4115 = vst.msk [vmem:[%s217 + $0x50] sm:$0xff] %vm797, %v4083
        %4116 = vst.msk [vmem:[%s217 + $0x58] sm:$0xff] %vm797, %v4084
        %4117 = vst.msk [vmem:[%s217 + $0x60] sm:$0xff] %vm797, %v4085
        %4118 = vst.msk [vmem:[%s217 + $0x68] sm:$0xff] %vm797, %v4086
        %4119 = vst.msk [vmem:[%s217 + $0x70] sm:$0xff] %vm797, %v4087
        %4120 = vst.msk [vmem:[%s217 + $0x78] sm:$0xff] %vm797, %v4088
        %4121 = vst.msk [vmem:[%s217 + $0x80] sm:$0xff] %vm797, %v4089
        %4122 = vst.msk [vmem:[%s217 + $0x88] sm:$0xff] %vm797, %v4090
        %4123 = vst.msk [vmem:[%s217 + $0x90] sm:$0xff] %vm797, %v4091
        %4124 = vst.msk [vmem:[%s217 + $0x98] sm:$0xff] %vm797, %v4092
        %4125 = vst.msk [vmem:[%s217 + $0xa0] sm:$0xff] %vm797, %v4093
        %4126 = vst.msk [vmem:[%s217 + $0xa8] sm:$0xff] %vm797, %v4094
        %4127 = vst.msk [vmem:[%s217 + $0xb0] sm:$0xff] %vm797, %v4095
        %4128 = vst.msk [vmem:[%s217 + $0xb8] sm:$0xff] %vm797, %v4096
        %4129 = vst.msk [vmem:[%s217 + $0xc0] sm:$0xff] %vm797, %v4097
        %4130 = vst.msk [vmem:[%s217 + $0xc8] sm:$0xff] %vm797, %v4098
        %4131 = vst.msk [vmem:[%s217 + $0xd0] sm:$0xff] %vm797, %v4099
        %4132 = vst.msk [vmem:[%s217 + $0xd8] sm:$0xff] %vm797, %v4100
        %4133 = vst.msk [vmem:[%s217 + $0xe0] sm:$0xff] %vm797, %v4101
        %4134 = vst.msk [vmem:[%s217 + $0xe8] sm:$0xff] %vm797, %v4102
        %4135 = vst.msk [vmem:[%s217 + $0xf0] sm:$0xff] %vm797, %v4103
        %4136 = vst.msk [vmem:[%s217 + $0xf8] sm:$0xff] %vm797, %v4104
        %s4137 = sand.u32 %s137, 1
        %s4138 = scalar_lea.sflag [#allocation3], %s4137
        %s4139 = sand.u32 %s137, 1
        %s4140 = smul.addr %s4139, 256
        %s4141 = scalar_lea.vmem [#allocation2], %s4140
        // Predicated region
        $region41: #{tpu_custom_call.1} parent=39 // pred_check
          %p4142 = pneg %p147
        $region42: #{tpu_custom_call.1} parent=39 // pred_check_branch
          %4144 = sbr.rel (%p4142) target = $region44
        $region43: #{tpu_custom_call.1} parent=39 // pred_region
          %s4146 = ssub.s32 4096, 4096
          %4147 = vsyncadd %s4138, %s4146
          %s4148 = smul.addr %s19, 32
          %s4149 = smul.addr %s4148, 128
          %s4150 = scalar_lea.hbm %s5, %s4149
          %s4151 = sshll.u32 %s4141, 4
          %s4152 = int_to_ptr.vmem [resolvable:$true] %s4151
          %4157 = dma.vmem_to_hbm [thread:$0]  %s4152, 4096, %s4150, %s4138, 128, 128, 8
        $region44: #{tpu_custom_call.1} parent=39 // pred_fallthru
          _
      $region40: #{tpu_custom_call.1} parent=5 // pred_fallthru
        _
      %p4158 = scmp.le.s32.totalorder 2, %s14
      // Predicated region
      $region45: #{tpu_custom_call.1} parent=5 // pred_check
        %p4159 = pneg %p4158
      $region46: #{tpu_custom_call.1} parent=5 // pred_check_branch
        %4161 = sbr.rel (%p4159) target = $region48
      $region47: #{tpu_custom_call.1} parent=5 // pred_region
        %s4162 = ssub.s32 %s14, 2
        // Predicated region
        $region49: #{tpu_custom_call.1} parent=47 // pred_check
          %p4163 = pneg %p153
        $region50: #{tpu_custom_call.1} parent=47 // pred_check_branch
          %4165 = sbr.rel (%p4163) target = $region52
        $region51: #{tpu_custom_call.1} parent=47 // pred_region
          %s4166 = sand.u32 %s138, 1
          %s4167 = scalar_lea.sflag [#allocation3], %s4166
          %s4168 = sand.u32 %s138, 1
          %s4169 = smul.addr %s4168, 256
          %s4170 = scalar_lea.vmem [#allocation2], %s4169
          %4171 = dma.done %s4167, 4096
        $region52: #{tpu_custom_call.1} parent=47 // pred_fallthru
          _
      $region48: #{tpu_custom_call.1} parent=5 // pred_fallthru
        _
    $region6: #{tpu_custom_call.1} parent=1 // loop_footer
      %s18 = sadd.s32 1, %s14
    $region7: #{tpu_custom_call.1} parent=1 // loop_footer_branch
      %13 = sbr.rel target = $region3
    $region8: #{tpu_custom_call.1} parent=1 // loop_exit
      _
    %4172 = vsyncpa [#allocation3], 1
    %s4173 = scalar_lea.sflag [#allocation3], 1
    %4174 = vsyncpa %s4173, 1

</llo_original>
